<compile_context>
chip_gen: v5e
topology: v5e:2x2
jax: 0.10.0
libtpu: 0.0.40
codegen_flags: <defaults>
</compile_context>

<pallas_src>
import jax
import jax.numpy as jnp
from jax.experimental import pallas as pl
from jax.experimental.pallas import tpu as pltpu


_MIN_PALLAS_ELEMS = 256 * 1024   # below this a single fused XLA reduction wins


def _round_up(x, m):
    return ((x + m - 1) // m) * m


def _tpu_config():
    """(vmem_capacity_bytes, num_splits) with conservative fallbacks."""
    vmem_cap = 64 * 2**20          # v7x per-TensorCore VMEM (smallest of the family)
    num_splits = 1
    try:
        info = pltpu.get_tpu_info()
        cap = getattr(info, "vmem_capacity_bytes", None)
        if cap:
            vmem_cap = int(cap)
    except Exception:
        pass
    try:
        kind = jax.devices()[0].device_kind.lower()
        if "v7" in kind:
            num_splits = 2         # 2 TensorCores/chip -> leading 'parallel' axis pays off
    except Exception:
        pass
    return vmem_cap, num_splits


def _xla_mse(out_flat, tgt_flat, n):
    d = out_flat.astype(jnp.float32) - tgt_flat.astype(jnp.float32)
    return jnp.sum(d * d) * (1.0 / n)


def _mse_pallas(out_flat, tgt_flat, n, *, max_tile_rows=None, num_splits=None):
    """MSE of two flat arrays whose length n is a multiple of 128 (no padding copies)."""
    vmem_cap, auto_splits = _tpu_config()
    if num_splits is None:
        num_splits = auto_splits

    # Lane-dense reshape: pure layout change, zero data movement, zero padding.
    if n % 512 == 0:
        lane_width = 512
    elif n % 256 == 0:
        lane_width = 256
    else:
        lane_width = 128
    rows = n // lane_width
    out2d = out_flat.reshape(rows, lane_width)
    tgt2d = tgt_flat.reshape(rows, lane_width)

    # Per-generation tile sizing (amortize ~0.35 us/step against HBM bandwidth).
    if max_tile_rows is None:
        target_tile_bytes = 4 * 2**20 if vmem_cap <= 72 * 2**20 else 8 * 2**20
        max_tile_rows = max(32, (target_tile_bytes // (lane_width * 4)) // 32 * 32)
    tile_rows = min(max_tile_rows, _round_up(pl.cdiv(rows, num_splits), 32))

    total_blocks = pl.cdiv(rows, tile_rows)
    steps_per_split = pl.cdiv(total_blocks, num_splits)
    needs_mask = (num_splits * steps_per_split * tile_rows) != rows
    last_block = total_blocks - 1
    rows_in_last_block = rows - last_block * tile_rows   # static

    def kernel(out_ref, tgt_ref, psum_ref, acc_ref):
        c = pl.program_id(0)
        i = pl.program_id(1)
        logical_block = c * steps_per_split + i

        @pl.when(i == 0)
        def _():
            acc_ref[...] = jnp.zeros_like(acc_ref)

        def sq_diff():
            d = out_ref[...].astype(jnp.float32) - tgt_ref[...].astype(jnp.float32)
            return d * d

        if not needs_mask:
            # Every block is full: pure VPU accumulate, no masking anywhere.
            acc_ref[...] += sq_diff()
        else:
            @pl.when(logical_block < last_block)
            def _():
                acc_ref[...] += sq_diff()

            @pl.when(logical_block == last_block)
            def _():
                row_ids = jax.lax.broadcasted_iota(
                    jnp.int32, (tile_rows, lane_width), 0)
                acc_ref[...] += jnp.where(row_ids < rows_in_last_block,
                                          sq_diff(), 0.0)
            # logical_block > last_block (fully out-of-range trailing step of
            # the last split): contributes nothing.

        @pl.when(i == steps_per_split - 1)
        def _():
            psum_ref[0, 0] = jnp.sum(acc_ref[...])

    def idx(c, i):
        # Clamp so the (rare) fully-out-of-range trailing step re-reads a valid
        # block; its contribution is masked to zero inside the kernel.
        return (jnp.minimum(c * steps_per_split + i, last_block), 0)

    # VMEM budget: double-buffered inputs + f32 accumulator + headroom.
    tile_in_bytes = tile_rows * lane_width * (
        jnp.dtype(out_flat.dtype).itemsize + jnp.dtype(tgt_flat.dtype).itemsize)
    acc_bytes = tile_rows * lane_width * 4
    vmem_limit = 2 * tile_in_bytes + acc_bytes + 4 * 2**20
    vmem_limit = max(vmem_limit, 16 * 2**20)
    vmem_limit = int(min(vmem_limit, vmem_cap - 8 * 2**20))

    partial_sums = pl.pallas_call(
        kernel,
        out_shape=jax.ShapeDtypeStruct((num_splits, 1), jnp.float32),
        grid=(num_splits, steps_per_split),
        in_specs=[
            pl.BlockSpec((tile_rows, lane_width), idx),
            pl.BlockSpec((tile_rows, lane_width), idx),
        ],
        out_specs=pl.BlockSpec((1, 1), lambda c, i: (c, 0),
                               memory_space=pltpu.SMEM),
        scratch_shapes=[pltpu.VMEM((tile_rows, lane_width), jnp.float32)],
        compiler_params=pltpu.CompilerParams(
            dimension_semantics=("parallel", "arbitrary"),
            vmem_limit_bytes=vmem_limit),
    )(out2d, tgt2d)

    return jnp.sum(partial_sums) * (1.0 / n)


def custom_loss_task(outputs, targets, firing_rate=None,
                     synchrony_fano_factor=None, criticality=None,
                     target_firing_rate=0.02, target_synchrony=1.4,
                     target_branching=1.0, batch_size=25):
    """JAX/Pallas equivalent of CustomLoss_task.forward (returns total_loss).

    rate_loss / criticality_loss / synchrony_loss in the reference module are
    constant zeros and firing_rate / synchrony / criticality never reach the
    returned value, so total_loss == MSE(outputs.squeeze(), targets).
    """
    del firing_rate, synchrony_fano_factor, criticality           # unused by forward
    del target_firing_rate, target_synchrony, target_branching, batch_size

    tgt = jnp.asarray(targets)
    out_sq = jnp.squeeze(jnp.asarray(outputs))
    if out_sq.shape != tgt.shape:
        # Guard the torch .squeeze() hazard (e.g. B == 1 or T == 1 also get dropped).
        if out_sq.size == tgt.size:
            out_sq = out_sq.reshape(tgt.shape)
        else:
            raise ValueError(
                f"squeezed outputs {out_sq.shape} incompatible with targets {tgt.shape}")

    # Keep each operand in its NATIVE dtype through the DMA (bf16 stays bf16);
    # the f32 upcast happens inside the kernel.
    out_flat = out_sq.reshape(-1)
    tgt_flat = tgt.reshape(-1)
    n = out_flat.size

    if n < _MIN_PALLAS_ELEMS or n % 128 != 0:
        # Tiny inputs: kernel fixed cost dominates.  Non-128-divisible lengths
        # would need a padding copy (extra HBM pass) -> plain XLA instead.
        return _xla_mse(out_flat, tgt_flat, n)

    return _mse_pallas(out_flat, tgt_flat, n)


if __name__ == "__main__":
    key = jax.random.PRNGKey(0)
    k1, k2, k3, k4, k5, k6, k7 = jax.random.split(key, 7)

    # Case 1: large enough to take the Pallas tiled-reduction path through the
    # public wrapper (no padding, auto per-generation tiling / split count).
    B, T = 32, 8192                      # 262144 elements
    outputs = jax.random.normal(k1, (B, T, 1), dtype=jnp.float32)   # squeezes to (B, T)
    targets = jax.random.normal(k2, (B, T), dtype=jnp.float32)
    firing_rate = jax.random.uniform(k3, (B,), dtype=jnp.float32)            # unused by forward
    synchrony_fano_factor = jax.random.uniform(k4, (B,), dtype=jnp.float32)  # unused by forward
    criticality = jax.random.uniform(k5, (B,), dtype=jnp.float32)            # unused by forward

    total_loss = jax.block_until_ready(
        custom_loss_task(outputs, targets, firing_rate,
                         synchrony_fano_factor, criticality, batch_size=B))
    ref = jnp.mean((jnp.squeeze(outputs) - targets) ** 2)
    assert jnp.allclose(total_loss, ref, rtol=1e-5, atol=1e-5), (total_loss, ref)

    # Case 2: directly exercise multi-step accumulation, the 2-way 'parallel'
    # split, the masked partial last block, the clamped out-of-range trailing
    # step and mixed native dtypes (f32 vs bf16) with small forced tiles.
    Bs, Ts = 20, 2048                    # rows = 80, tile_rows = 32 -> 3 blocks
    out_s = jax.random.normal(k6, (Bs, Ts), dtype=jnp.float32)
    tgt_s = jax.random.normal(k7, (Bs, Ts), dtype=jnp.bfloat16)
    loss_s = jax.block_until_ready(
        _mse_pallas(out_s.reshape(-1), tgt_s.reshape(-1), out_s.size,
                    max_tile_rows=32, num_splits=2))
    ref_s = jnp.mean((out_s - tgt_s.astype(jnp.float32)) ** 2)
    assert jnp.allclose(loss_s, ref_s, rtol=1e-4, atol=1e-5), (loss_s, ref_s)

    # Case 3: tiny demo shape takes the XLA short-circuit path.
    out_t = jax.random.normal(k1, (4, 16, 1), dtype=jnp.float32)
    tgt_t = jax.random.normal(k2, (4, 16), dtype=jnp.float32)
    loss_t = jax.block_until_ready(
        custom_loss_task(out_t, tgt_t, None, None, None, batch_size=4))
    ref_t = jnp.mean((jnp.squeeze(out_t) - tgt_t) ** 2)
    assert jnp.allclose(loss_t, ref_t, rtol=1e-5, atol=1e-6), (loss_t, ref_t)

    print("KERNEL_OK")
</pallas_src>

<mosaic_0001>
module attributes {stable_mosaic.version = 11 : i64} {
  func.func @kernel(%arg0: i32, %arg1: i32, %arg2: memref<512x512xf32, #tpu.memory_space<vmem>>, %arg3: memref<512x512xf32, #tpu.memory_space<vmem>>, %arg4: memref<1x1xf32, #tpu.memory_space<smem>>, %arg5: memref<512x512xf32, #tpu.memory_space<vmem>>) attributes {dimension_semantics = [#tpu.dimension_semantics<parallel>, #tpu.dimension_semantics<arbitrary>], iteration_bounds = array<i64: 1, 1>, scalar_prefetch = 0 : i64, scratch_operands = 1 : i64, tpu.core_type = #tpu.core_type<tc>, window_params = [{transform_indices = @transform_0, window_bounds = array<i64: 512, 512>}, {transform_indices = @transform_1, window_bounds = array<i64: 512, 512>}, {transform_indices = @transform_2, window_bounds = array<i64: 1, 1>}]} {
    %c0_i32 = arith.constant 0 : i32
    %0 = arith.cmpi eq, %arg1, %c0_i32 : i32
    %1 = arith.extui %0 : i1 to i32
    %c0_i32_0 = arith.constant 0 : i32
    %2 = arith.cmpi ne, %1, %c0_i32_0 : i32
    scf.if %2 {
      %cst = arith.constant 0.000000e+00 : f32
      %13 = vector.broadcast %cst : f32 to vector<512x512xf32>
      %c0_10 = arith.constant 0 : index
      %c0_11 = arith.constant 0 : index
      %14 = vector.load %arg5[%c0_10, %c0_11] : memref<512x512xf32, #tpu.memory_space<vmem>>, vector<512x512xf32>
      tpu.vector_store %arg5[%c0_10, %c0_11], %13 {strides = array<i32>} : memref<512x512xf32, #tpu.memory_space<vmem>>, vector<512x512xf32>,
    } else {
    }
    %c0 = arith.constant 0 : index
    %c0_1 = arith.constant 0 : index
    %3 = vector.load %arg5[%c0, %c0_1] : memref<512x512xf32, #tpu.memory_space<vmem>>, vector<512x512xf32>
    %c0_2 = arith.constant 0 : index
    %c0_3 = arith.constant 0 : index
    %4 = vector.load %arg2[%c0_2, %c0_3] : memref<512x512xf32, #tpu.memory_space<vmem>>, vector<512x512xf32>
    %c0_4 = arith.constant 0 : index
    %c0_5 = arith.constant 0 : index
    %5 = vector.load %arg3[%c0_4, %c0_5] : memref<512x512xf32, #tpu.memory_space<vmem>>, vector<512x512xf32>
    %6 = arith.subf %4, %5 : vector<512x512xf32>
    %7 = arith.mulf %6, %6 : vector<512x512xf32>
    %8 = arith.addf %3, %7 : vector<512x512xf32>
    %c0_6 = arith.constant 0 : index
    %c0_7 = arith.constant 0 : index
    %9 = vector.load %arg5[%c0_6, %c0_7] : memref<512x512xf32, #tpu.memory_space<vmem>>, vector<512x512xf32>
    tpu.vector_store %arg5[%c0_6, %c0_7], %8 {strides = array<i32>} : memref<512x512xf32, #tpu.memory_space<vmem>>, vector<512x512xf32>,
    %c0_i32_8 = arith.constant 0 : i32
    %10 = arith.cmpi eq, %arg1, %c0_i32_8 : i32
    %11 = arith.extui %10 : i1 to i32
    %c0_i32_9 = arith.constant 0 : i32
    %12 = arith.cmpi ne, %11, %c0_i32_9 : i32
    scf.if %12 {
      %c0_10 = arith.constant 0 : index
      %c0_11 = arith.constant 0 : index
      %13 = vector.load %arg5[%c0_10, %c0_11] : memref<512x512xf32, #tpu.memory_space<vmem>>, vector<512x512xf32>
      %14 = vector.shape_cast %13 : vector<512x512xf32> to vector<1x512x512xf32>
      %cst = arith.constant dense<0.000000e+00> : vector<1xf32>
      %15 = vector.multi_reduction <add>, %14, %cst [1, 2] : vector<1x512x512xf32> to vector<1xf32>
      %16 = vector.shape_cast %15 : vector<1xf32> to vector<1x1x1xf32>
      %17 = vector.extract %16[0, 0, 0] : f32 from vector<1x1x1xf32>
      %c0_12 = arith.constant 0 : index
      %c0_13 = arith.constant 0 : index
      %18 = memref.load %arg4[%c0_12, %c0_13] : memref<1x1xf32, #tpu.memory_space<smem>>
      memref.store %17, %arg4[%c0_12, %c0_13] : memref<1x1xf32, #tpu.memory_space<smem>>
    } else {
    }
    return
  }
  func.func @transform_0(%arg0: i32, %arg1: i32) -> (i32, i32) {
    %c1_i32 = arith.constant 1 : i32
    %0 = arith.muli %arg0, %c1_i32 : i32
    %1 = arith.addi %0, %arg1 : i32
    %c0_i32 = arith.constant 0 : i32
    %2 = arith.minsi %1, %c0_i32 : i32
    %c0_i32_0 = arith.constant 0 : i32
    %c0_i32_1 = arith.constant 0 : i32
    return %2, %c0_i32_0 : i32, i32
  }
  func.func @transform_1(%arg0: i32, %arg1: i32) -> (i32, i32) {
    %c1_i32 = arith.constant 1 : i32
    %0 = arith.muli %arg0, %c1_i32 : i32
    %1 = arith.addi %0, %arg1 : i32
    %c0_i32 = arith.constant 0 : i32
    %2 = arith.minsi %1, %c0_i32 : i32
    %c0_i32_0 = arith.constant 0 : i32
    %c0_i32_1 = arith.constant 0 : i32
    return %2, %c0_i32_0 : i32, i32
  }
  func.func @transform_2(%arg0: i32, %arg1: i32) -> (i32, i32) {
    %c0_i32 = arith.constant 0 : i32
    %c0_i32_0 = arith.constant 0 : i32
    return %arg0, %c0_i32 : i32, i32
  }
}

</mosaic_0001>

<llo_original>
// kernel: tpu_custom_call.1
$region0: #{tpu_custom_call.1}
  #allocation0 [shape = 'u32[]', space=smem, size = 0x4, offset = 0x4, fixed_abs, tag = 'smem constant byte address 0x4 - core index']
  #allocation1 [shape = 'u32[72,128]{1,0:T(1,128)}', space=vmem, size = 0x9000, scoped, tag = 'internal scratch']
  #allocation2 [shape = 'f32[512,512]{1,0:T(8,128)}', space=vmem, size = 0x100000, scoped, tag = 'scratch operand']
  %s0 = inlined_call_operand.hbm [shape: f32[512,512], index: 0, kind: input, shape index: {}]
  %s1 = inlined_call_operand.hbm [shape: f32[512,512], index: 1, kind: input, shape index: {}]
  %s2 = inlined_call_operand.hbm [shape: f32[1,1], index: 2, kind: output, shape index: {}]
  %s3 = sld [smem:[#allocation0]]
  $region34: #{tpu_custom_call.1} parent=0
    _
  %s5 = ssub.s32 1, %s3
  %s6 = scalar_select 0, %s5, %s3
  $region1: #{tpu_custom_call.1} parent=0
    #allocation3 [shape = 'u8[1048576]{0}', space=vmem, size = 0x100000, scoped, tag = 'input window, operand 0, single buffered']
    #allocation4 [shape = 's32[1]{0}', space=sflag, size = 0x4, scoped, tag = 'scoped memory for tpu_custom_call.1']
    #allocation5 [shape = 's32[1]{0}', space=sflag, size = 0x4, scoped, tag = 'scoped memory for tpu_custom_call.1']
    #allocation6 [shape = 'u8[1048576]{0}', space=vmem, size = 0x100000, scoped, tag = 'input window, operand 1, single buffered']
    #allocation7 [shape = 's32[1]{0}', space=sflag, size = 0x4, scoped, tag = 'scoped memory for tpu_custom_call.1']
    #allocation8 [shape = 'u8[512]{0}', space=smem, size = 0x200, scoped, tag = 'output window, operand 0, single buffered']
    %7 = vsyncpa [#allocation4], 0
    %8 = vsyncpa [#allocation7], 0
    %9 = vsyncpa [#allocation5], 0
    // Predicated region
    $region2: #{tpu_custom_call.1} parent=1 // pred_check
      _
    $region3: #{tpu_custom_call.1} parent=1 // pred_check_branch
      %11 = sbr.rel (0) target = $region5
    $region4: #{tpu_custom_call.1} parent=1 // pred_region
      %s12 = sadd.s32 0, 0
      %p13 = scmp.lt.s32.totalorder %s12, 0
      %s14 = scalar_select %p13, %s12, 0
      %s15 = smul.u32 64, %s14
      %17 = vsyncadd [#allocation4], 0
      %s18 = smul.addr %s15, 4
      %s19 = smul.addr %s18, 8
      %s20 = scalar_lea.hbm %s0, %s19
      %s21 = sshll.u32 %s20, 4
      %s22 = int_to_ptr.hbm [resolvable:$true] %s21
      %s23 = sshll.u32 [#allocation3], 4
      %s24 = int_to_ptr.vmem [resolvable:$true] %s23
      %29 = dma.hbm_to_vmem [thread:$0]  %s22, 32768, %s24, [#allocation4], 512, 512, 32
    $region5: #{tpu_custom_call.1} parent=1 // pred_fallthru
      _
    // Predicated region
    $region6: #{tpu_custom_call.1} parent=1 // pred_check
      _
    $region7: #{tpu_custom_call.1} parent=1 // pred_check_branch
      %31 = sbr.rel (0) target = $region9
    $region8: #{tpu_custom_call.1} parent=1 // pred_region
      %s32 = sadd.s32 0, 0
      %p33 = scmp.lt.s32.totalorder %s32, 0
      %s34 = scalar_select %p33, %s32, 0
      %s35 = smul.u32 64, %s34
      %37 = vsyncadd [#allocation7], 0
      %s38 = smul.addr %s35, 4
      %s39 = smul.addr %s38, 8
      %s40 = scalar_lea.hbm %s1, %s39
      %s41 = sshll.u32 %s40, 4
      %s42 = int_to_ptr.hbm [resolvable:$true] %s41
      %s43 = sshll.u32 [#allocation6], 4
      %s44 = int_to_ptr.vmem [resolvable:$true] %s43
      %49 = dma.hbm_to_vmem [thread:$0]  %s42, 32768, %s44, [#allocation7], 512, 512, 32
    $region9: #{tpu_custom_call.1} parent=1 // pred_fallthru
      _
    // Predicated region
    $region10: #{tpu_custom_call.1} parent=1 // pred_check
      _
    $region11: #{tpu_custom_call.1} parent=1 // pred_check_branch
      %51 = sbr.rel (0) target = $region13
    $region12: #{tpu_custom_call.1} parent=1 // pred_region
      %53 = dma.done [#allocation4], 32768
    $region13: #{tpu_custom_call.1} parent=1 // pred_fallthru
      _
    // Predicated region
    $region14: #{tpu_custom_call.1} parent=1 // pred_check
      _
    $region15: #{tpu_custom_call.1} parent=1 // pred_check_branch
      %55 = sbr.rel (0) target = $region17
    $region16: #{tpu_custom_call.1} parent=1 // pred_region
      %57 = dma.done [#allocation7], 32768
    $region17: #{tpu_custom_call.1} parent=1 // pred_fallthru
      _
    %s58 = sadd.s32 0, 0
    %p59 = scmp.lt.s32.totalorder %s58, 0
    %s60 = scalar_select %p59, %s58, 0
    %s61 = smul.u32 64, %s60
    %s62 = sadd.s32 0, 0
    %p63 = scmp.lt.s32.totalorder %s62, 0
    %s64 = scalar_select %p63, %s62, 0
    %s65 = smul.u32 64, %s64
    %p66 = scmp.eq.s32.totalorder 0, 0
    // Predicated region
    $region18: #{tpu_custom_call.1} parent=1 // pred_check
      %p67 = pneg %p66
    $region19: #{tpu_custom_call.1} parent=1 // pred_check_branch
      %69 = sbr.rel (%p67) target = $region21
    $region20: #{tpu_custom_call.1} parent=1 // pred_region
      %70 = vst [vmem:[#allocation2] sm:$0xff] 0.0
      %71 = vst [vmem:[#allocation2 + $0x8] sm:$0xff] 0.0
      %72 = vst [vmem:[#allocation2 + $0x10] sm:$0xff] 0.0
      %73 = vst [vmem:[#allocation2 + $0x18] sm:$0xff] 0.0
      %74 = vst [vmem:[#allocation2 + $0x20] sm:$0xff] 0.0
      %75 = vst [vmem:[#allocation2 + $0x28] sm:$0xff] 0.0
      %76 = vst [vmem:[#allocation2 + $0x30] sm:$0xff] 0.0
      %77 = vst [vmem:[#allocation2 + $0x38] sm:$0xff] 0.0
      %78 = vst [vmem:[#allocation2 + $0x40] sm:$0xff] 0.0
      %79 = vst [vmem:[#allocation2 + $0x48] sm:$0xff] 0.0
      %80 = vst [vmem:[#allocation2 + $0x50] sm:$0xff] 0.0
      %81 = vst [vmem:[#allocation2 + $0x58] sm:$0xff] 0.0
      %82 = vst [vmem:[#allocation2 + $0x60] sm:$0xff] 0.0
      %83 = vst [vmem:[#allocation2 + $0x68] sm:$0xff] 0.0
      %84 = vst [vmem:[#allocation2 + $0x70] sm:$0xff] 0.0
      %85 = vst [vmem:[#allocation2 + $0x78] sm:$0xff] 0.0
      %86 = vst [vmem:[#allocation2 + $0x80] sm:$0xff] 0.0
      %87 = vst [vmem:[#allocation2 + $0x88] sm:$0xff] 0.0
      %88 = vst [vmem:[#allocation2 + $0x90] sm:$0xff] 0.0
      %89 = vst [vmem:[#allocation2 + $0x98] sm:$0xff] 0.0
      %90 = vst [vmem:[#allocation2 + $0xa0] sm:$0xff] 0.0
      %91 = vst [vmem:[#allocation2 + $0xa8] sm:$0xff] 0.0
      %92 = vst [vmem:[#allocation2 + $0xb0] sm:$0xff] 0.0
      %93 = vst [vmem:[#allocation2 + $0xb8] sm:$0xff] 0.0
      %94 = vst [vmem:[#allocation2 + $0xc0] sm:$0xff] 0.0
      %95 = vst [vmem:[#allocation2 + $0xc8] sm:$0xff] 0.0
      %96 = vst [vmem:[#allocation2 + $0xd0] sm:$0xff] 0.0
      %97 = vst [vmem:[#allocation2 + $0xd8] sm:$0xff] 0.0
      %98 = vst [vmem:[#allocation2 + $0xe0] sm:$0xff] 0.0
      %99 = vst [vmem:[#allocation2 + $0xe8] sm:$0xff] 0.0
      %100 = vst [vmem:[#allocation2 + $0xf0] sm:$0xff] 0.0
      %101 = vst [vmem:[#allocation2 + $0xf8] sm:$0xff] 0.0
      %102 = vst [vmem:[#allocation2 + $0x100] sm:$0xff] 0.0
      %103 = vst [vmem:[#allocation2 + $0x108] sm:$0xff] 0.0
      %104 = vst [vmem:[#allocation2 + $0x110] sm:$0xff] 0.0
      %105 = vst [vmem:[#allocation2 + $0x118] sm:$0xff] 0.0
      %106 = vst [vmem:[#allocation2 + $0x120] sm:$0xff] 0.0
      %107 = vst [vmem:[#allocation2 + $0x128] sm:$0xff] 0.0
      %108 = vst [vmem:[#allocation2 + $0x130] sm:$0xff] 0.0
      %109 = vst [vmem:[#allocation2 + $0x138] sm:$0xff] 0.0
      %110 = vst [vmem:[#allocation2 + $0x140] sm:$0xff] 0.0
      %111 = vst [vmem:[#allocation2 + $0x148] sm:$0xff] 0.0
      %112 = vst [vmem:[#allocation2 + $0x150] sm:$0xff] 0.0
      %113 = vst [vmem:[#allocation2 + $0x158] sm:$0xff] 0.0
      %114 = vst [vmem:[#allocation2 + $0x160] sm:$0xff] 0.0
      %115 = vst [vmem:[#allocation2 + $0x168] sm:$0xff] 0.0
      %116 = vst [vmem:[#allocation2 + $0x170] sm:$0xff] 0.0
      %117 = vst [vmem:[#allocation2 + $0x178] sm:$0xff] 0.0
      %118 = vst [vmem:[#allocation2 + $0x180] sm:$0xff] 0.0
      %119 = vst [vmem:[#allocation2 + $0x188] sm:$0xff] 0.0
      %120 = vst [vmem:[#allocation2 + $0x190] sm:$0xff] 0.0
      %121 = vst [vmem:[#allocation2 + $0x198] sm:$0xff] 0.0
      %122 = vst [vmem:[#allocation2 + $0x1a0] sm:$0xff] 0.0
      %123 = vst [vmem:[#allocation2 + $0x1a8] sm:$0xff] 0.0
      %124 = vst [vmem:[#allocation2 + $0x1b0] sm:$0xff] 0.0
      %125 = vst [vmem:[#allocation2 + $0x1b8] sm:$0xff] 0.0
      %126 = vst [vmem:[#allocation2 + $0x1c0] sm:$0xff] 0.0
      %127 = vst [vmem:[#allocation2 + $0x1c8] sm:$0xff] 0.0
      %128 = vst [vmem:[#allocation2 + $0x1d0] sm:$0xff] 0.0
      %129 = vst [vmem:[#allocation2 + $0x1d8] sm:$0xff] 0.0
      %130 = vst [vmem:[#allocation2 + $0x1e0] sm:$0xff] 0.0
      %131 = vst [vmem:[#allocation2 + $0x1e8] sm:$0xff] 0.0
      %132 = vst [vmem:[#allocation2 + $0x1f0] sm:$0xff] 0.0
      %133 = vst [vmem:[#allocation2 + $0x1f8] sm:$0xff] 0.0
      %134 = vst [vmem:[#allocation2 + $0x200] sm:$0xff] 0.0
      %135 = vst [vmem:[#allocation2 + $0x208] sm:$0xff] 0.0
      %136 = vst [vmem:[#allocation2 + $0x210] sm:$0xff] 0.0
      %137 = vst [vmem:[#allocation2 + $0x218] sm:$0xff] 0.0
      %138 = vst [vmem:[#allocation2 + $0x220] sm:$0xff] 0.0
      %139 = vst [vmem:[#allocation2 + $0x228] sm:$0xff] 0.0
      %140 = vst [vmem:[#allocation2 + $0x230] sm:$0xff] 0.0
      %141 = vst [vmem:[#allocation2 + $0x238] sm:$0xff] 0.0
      %142 = vst [vmem:[#allocation2 + $0x240] sm:$0xff] 0.0
      %143 = vst [vmem:[#allocation2 + $0x248] sm:$0xff] 0.0
      %144 = vst [vmem:[#allocation2 + $0x250] sm:$0xff] 0.0
      %145 = vst [vmem:[#allocation2 + $0x258] sm:$0xff] 0.0
      %146 = vst [vmem:[#allocation2 + $0x260] sm:$0xff] 0.0
      %147 = vst [vmem:[#allocation2 + $0x268] sm:$0xff] 0.0
      %148 = vst [vmem:[#allocation2 + $0x270] sm:$0xff] 0.0
      %149 = vst [vmem:[#allocation2 + $0x278] sm:$0xff] 0.0
      %150 = vst [vmem:[#allocation2 + $0x280] sm:$0xff] 0.0
      %151 = vst [vmem:[#allocation2 + $0x288] sm:$0xff] 0.0
      %152 = vst [vmem:[#allocation2 + $0x290] sm:$0xff] 0.0
      %153 = vst [vmem:[#allocation2 + $0x298] sm:$0xff] 0.0
      %154 = vst [vmem:[#allocation2 + $0x2a0] sm:$0xff] 0.0
      %155 = vst [vmem:[#allocation2 + $0x2a8] sm:$0xff] 0.0
      %156 = vst [vmem:[#allocation2 + $0x2b0] sm:$0xff] 0.0
      %157 = vst [vmem:[#allocation2 + $0x2b8] sm:$0xff] 0.0
      %158 = vst [vmem:[#allocation2 + $0x2c0] sm:$0xff] 0.0
      %159 = vst [vmem:[#allocation2 + $0x2c8] sm:$0xff] 0.0
      %160 = vst [vmem:[#allocation2 + $0x2d0] sm:$0xff] 0.0
      %161 = vst [vmem:[#allocation2 + $0x2d8] sm:$0xff] 0.0
      %162 = vst [vmem:[#allocation2 + $0x2e0] sm:$0xff] 0.0
      %163 = vst [vmem:[#allocation2 + $0x2e8] sm:$0xff] 0.0
      %164 = vst [vmem:[#allocation2 + $0x2f0] sm:$0xff] 0.0
      %165 = vst [vmem:[#allocation2 + $0x2f8] sm:$0xff] 0.0
      %166 = vst [vmem:[#allocation2 + $0x300] sm:$0xff] 0.0
      %167 = vst [vmem:[#allocation2 + $0x308] sm:$0xff] 0.0
      %168 = vst [vmem:[#allocation2 + $0x310] sm:$0xff] 0.0
      %169 = vst [vmem:[#allocation2 + $0x318] sm:$0xff] 0.0
      %170 = vst [vmem:[#allocation2 + $0x320] sm:$0xff] 0.0
      %171 = vst [vmem:[#allocation2 + $0x328] sm:$0xff] 0.0
      %172 = vst [vmem:[#allocation2 + $0x330] sm:$0xff] 0.0
      %173 = vst [vmem:[#allocation2 + $0x338] sm:$0xff] 0.0
      %174 = vst [vmem:[#allocation2 + $0x340] sm:$0xff] 0.0
      %175 = vst [vmem:[#allocation2 + $0x348] sm:$0xff] 0.0
      %176 = vst [vmem:[#allocation2 + $0x350] sm:$0xff] 0.0
      %177 = vst [vmem:[#allocation2 + $0x358] sm:$0xff] 0.0
      %178 = vst [vmem:[#allocation2 + $0x360] sm:$0xff] 0.0
      %179 = vst [vmem:[#allocation2 + $0x368] sm:$0xff] 0.0
      %180 = vst [vmem:[#allocation2 + $0x370] sm:$0xff] 0.0
      %181 = vst [vmem:[#allocation2 + $0x378] sm:$0xff] 0.0
      %182 = vst [vmem:[#allocation2 + $0x380] sm:$0xff] 0.0
      %183 = vst [vmem:[#allocation2 + $0x388] sm:$0xff] 0.0
      %184 = vst [vmem:[#allocation2 + $0x390] sm:$0xff] 0.0
      %185 = vst [vmem:[#allocation2 + $0x398] sm:$0xff] 0.0
      %186 = vst [vmem:[#allocation2 + $0x3a0] sm:$0xff] 0.0
      %187 = vst [vmem:[#allocation2 + $0x3a8] sm:$0xff] 0.0
      %188 = vst [vmem:[#allocation2 + $0x3b0] sm:$0xff] 0.0
      %189 = vst [vmem:[#allocation2 + $0x3b8] sm:$0xff] 0.0
      %190 = vst [vmem:[#allocation2 + $0x3c0] sm:$0xff] 0.0
      %191 = vst [vmem:[#allocation2 + $0x3c8] sm:$0xff] 0.0
      %192 = vst [vmem:[#allocation2 + $0x3d0] sm:$0xff] 0.0
      %193 = vst [vmem:[#allocation2 + $0x3d8] sm:$0xff] 0.0
      %194 = vst [vmem:[#allocation2 + $0x3e0] sm:$0xff] 0.0
      %195 = vst [vmem:[#allocation2 + $0x3e8] sm:$0xff] 0.0
      %196 = vst [vmem:[#allocation2 + $0x3f0] sm:$0xff] 0.0
      %197 = vst [vmem:[#allocation2 + $0x3f8] sm:$0xff] 0.0
      %198 = vst [vmem:[#allocation2 + $0x400] sm:$0xff] 0.0
      %199 = vst [vmem:[#allocation2 + $0x408] sm:$0xff] 0.0
      %200 = vst [vmem:[#allocation2 + $0x410] sm:$0xff] 0.0
      %201 = vst [vmem:[#allocation2 + $0x418] sm:$0xff] 0.0
      %202 = vst [vmem:[#allocation2 + $0x420] sm:$0xff] 0.0
      %203 = vst [vmem:[#allocation2 + $0x428] sm:$0xff] 0.0
      %204 = vst [vmem:[#allocation2 + $0x430] sm:$0xff] 0.0
      %205 = vst [vmem:[#allocation2 + $0x438] sm:$0xff] 0.0
      %206 = vst [vmem:[#allocation2 + $0x440] sm:$0xff] 0.0
      %207 = vst [vmem:[#allocation2 + $0x448] sm:$0xff] 0.0
      %208 = vst [vmem:[#allocation2 + $0x450] sm:$0xff] 0.0
      %209 = vst [vmem:[#allocation2 + $0x458] sm:$0xff] 0.0
      %210 = vst [vmem:[#allocation2 + $0x460] sm:$0xff] 0.0
      %211 = vst [vmem:[#allocation2 + $0x468] sm:$0xff] 0.0
      %212 = vst [vmem:[#allocation2 + $0x470] sm:$0xff] 0.0
      %213 = vst [vmem:[#allocation2 + $0x478] sm:$0xff] 0.0
      %214 = vst [vmem:[#allocation2 + $0x480] sm:$0xff] 0.0
      %215 = vst [vmem:[#allocation2 + $0x488] sm:$0xff] 0.0
      %216 = vst [vmem:[#allocation2 + $0x490] sm:$0xff] 0.0
      %217 = vst [vmem:[#allocation2 + $0x498] sm:$0xff] 0.0
      %218 = vst [vmem:[#allocation2 + $0x4a0] sm:$0xff] 0.0
      %219 = vst [vmem:[#allocation2 + $0x4a8] sm:$0xff] 0.0
      %220 = vst [vmem:[#allocation2 + $0x4b0] sm:$0xff] 0.0
      %221 = vst [vmem:[#allocation2 + $0x4b8] sm:$0xff] 0.0
      %222 = vst [vmem:[#allocation2 + $0x4c0] sm:$0xff] 0.0
      %223 = vst [vmem:[#allocation2 + $0x4c8] sm:$0xff] 0.0
      %224 = vst [vmem:[#allocation2 + $0x4d0] sm:$0xff] 0.0
      %225 = vst [vmem:[#allocation2 + $0x4d8] sm:$0xff] 0.0
      %226 = vst [vmem:[#allocation2 + $0x4e0] sm:$0xff] 0.0
      %227 = vst [vmem:[#allocation2 + $0x4e8] sm:$0xff] 0.0
      %228 = vst [vmem:[#allocation2 + $0x4f0] sm:$0xff] 0.0
      %229 = vst [vmem:[#allocation2 + $0x4f8] sm:$0xff] 0.0
      %230 = vst [vmem:[#allocation2 + $0x500] sm:$0xff] 0.0
      %231 = vst [vmem:[#allocation2 + $0x508] sm:$0xff] 0.0
      %232 = vst [vmem:[#allocation2 + $0x510] sm:$0xff] 0.0
      %233 = vst [vmem:[#allocation2 + $0x518] sm:$0xff] 0.0
      %234 = vst [vmem:[#allocation2 + $0x520] sm:$0xff] 0.0
      %235 = vst [vmem:[#allocation2 + $0x528] sm:$0xff] 0.0
      %236 = vst [vmem:[#allocation2 + $0x530] sm:$0xff] 0.0
      %237 = vst [vmem:[#allocation2 + $0x538] sm:$0xff] 0.0
      %238 = vst [vmem:[#allocation2 + $0x540] sm:$0xff] 0.0
      %239 = vst [vmem:[#allocation2 + $0x548] sm:$0xff] 0.0
      %240 = vst [vmem:[#allocation2 + $0x550] sm:$0xff] 0.0
      %241 = vst [vmem:[#allocation2 + $0x558] sm:$0xff] 0.0
      %242 = vst [vmem:[#allocation2 + $0x560] sm:$0xff] 0.0
      %243 = vst [vmem:[#allocation2 + $0x568] sm:$0xff] 0.0
      %244 = vst [vmem:[#allocation2 + $0x570] sm:$0xff] 0.0
      %245 = vst [vmem:[#allocation2 + $0x578] sm:$0xff] 0.0
      %246 = vst [vmem:[#allocation2 + $0x580] sm:$0xff] 0.0
      %247 = vst [vmem:[#allocation2 + $0x588] sm:$0xff] 0.0
      %248 = vst [vmem:[#allocation2 + $0x590] sm:$0xff] 0.0
      %249 = vst [vmem:[#allocation2 + $0x598] sm:$0xff] 0.0
      %250 = vst [vmem:[#allocation2 + $0x5a0] sm:$0xff] 0.0
      %251 = vst [vmem:[#allocation2 + $0x5a8] sm:$0xff] 0.0
      %252 = vst [vmem:[#allocation2 + $0x5b0] sm:$0xff] 0.0
      %253 = vst [vmem:[#allocation2 + $0x5b8] sm:$0xff] 0.0
      %254 = vst [vmem:[#allocation2 + $0x5c0] sm:$0xff] 0.0
      %255 = vst [vmem:[#allocation2 + $0x5c8] sm:$0xff] 0.0
      %256 = vst [vmem:[#allocation2 + $0x5d0] sm:$0xff] 0.0
      %257 = vst [vmem:[#allocation2 + $0x5d8] sm:$0xff] 0.0
      %258 = vst [vmem:[#allocation2 + $0x5e0] sm:$0xff] 0.0
      %259 = vst [vmem:[#allocation2 + $0x5e8] sm:$0xff] 0.0
      %260 = vst [vmem:[#allocation2 + $0x5f0] sm:$0xff] 0.0
      %261 = vst [vmem:[#allocation2 + $0x5f8] sm:$0xff] 0.0
      %262 = vst [vmem:[#allocation2 + $0x600] sm:$0xff] 0.0
      %263 = vst [vmem:[#allocation2 + $0x608] sm:$0xff] 0.0
      %264 = vst [vmem:[#allocation2 + $0x610] sm:$0xff] 0.0
      %265 = vst [vmem:[#allocation2 + $0x618] sm:$0xff] 0.0
      %266 = vst [vmem:[#allocation2 + $0x620] sm:$0xff] 0.0
      %267 = vst [vmem:[#allocation2 + $0x628] sm:$0xff] 0.0
      %268 = vst [vmem:[#allocation2 + $0x630] sm:$0xff] 0.0
      %269 = vst [vmem:[#allocation2 + $0x638] sm:$0xff] 0.0
      %270 = vst [vmem:[#allocation2 + $0x640] sm:$0xff] 0.0
      %271 = vst [vmem:[#allocation2 + $0x648] sm:$0xff] 0.0
      %272 = vst [vmem:[#allocation2 + $0x650] sm:$0xff] 0.0
      %273 = vst [vmem:[#allocation2 + $0x658] sm:$0xff] 0.0
      %274 = vst [vmem:[#allocation2 + $0x660] sm:$0xff] 0.0
      %275 = vst [vmem:[#allocation2 + $0x668] sm:$0xff] 0.0
      %276 = vst [vmem:[#allocation2 + $0x670] sm:$0xff] 0.0
      %277 = vst [vmem:[#allocation2 + $0x678] sm:$0xff] 0.0
      %278 = vst [vmem:[#allocation2 + $0x680] sm:$0xff] 0.0
      %279 = vst [vmem:[#allocation2 + $0x688] sm:$0xff] 0.0
      %280 = vst [vmem:[#allocation2 + $0x690] sm:$0xff] 0.0
      %281 = vst [vmem:[#allocation2 + $0x698] sm:$0xff] 0.0
      %282 = vst [vmem:[#allocation2 + $0x6a0] sm:$0xff] 0.0
      %283 = vst [vmem:[#allocation2 + $0x6a8] sm:$0xff] 0.0
      %284 = vst [vmem:[#allocation2 + $0x6b0] sm:$0xff] 0.0
      %285 = vst [vmem:[#allocation2 + $0x6b8] sm:$0xff] 0.0
      %286 = vst [vmem:[#allocation2 + $0x6c0] sm:$0xff] 0.0
      %287 = vst [vmem:[#allocation2 + $0x6c8] sm:$0xff] 0.0
      %288 = vst [vmem:[#allocation2 + $0x6d0] sm:$0xff] 0.0
      %289 = vst [vmem:[#allocation2 + $0x6d8] sm:$0xff] 0.0
      %290 = vst [vmem:[#allocation2 + $0x6e0] sm:$0xff] 0.0
      %291 = vst [vmem:[#allocation2 + $0x6e8] sm:$0xff] 0.0
      %292 = vst [vmem:[#allocation2 + $0x6f0] sm:$0xff] 0.0
      %293 = vst [vmem:[#allocation2 + $0x6f8] sm:$0xff] 0.0
      %294 = vst [vmem:[#allocation2 + $0x700] sm:$0xff] 0.0
      %295 = vst [vmem:[#allocation2 + $0x708] sm:$0xff] 0.0
      %296 = vst [vmem:[#allocation2 + $0x710] sm:$0xff] 0.0
      %297 = vst [vmem:[#allocation2 + $0x718] sm:$0xff] 0.0
      %298 = vst [vmem:[#allocation2 + $0x720] sm:$0xff] 0.0
      %299 = vst [vmem:[#allocation2 + $0x728] sm:$0xff] 0.0
      %300 = vst [vmem:[#allocation2 + $0x730] sm:$0xff] 0.0
      %301 = vst [vmem:[#allocation2 + $0x738] sm:$0xff] 0.0
      %302 = vst [vmem:[#allocation2 + $0x740] sm:$0xff] 0.0
      %303 = vst [vmem:[#allocation2 + $0x748] sm:$0xff] 0.0
      %304 = vst [vmem:[#allocation2 + $0x750] sm:$0xff] 0.0
      %305 = vst [vmem:[#allocation2 + $0x758] sm:$0xff] 0.0
      %306 = vst [vmem:[#allocation2 + $0x760] sm:$0xff] 0.0
      %307 = vst [vmem:[#allocation2 + $0x768] sm:$0xff] 0.0
      %308 = vst [vmem:[#allocation2 + $0x770] sm:$0xff] 0.0
      %309 = vst [vmem:[#allocation2 + $0x778] sm:$0xff] 0.0
      %310 = vst [vmem:[#allocation2 + $0x780] sm:$0xff] 0.0
      %311 = vst [vmem:[#allocation2 + $0x788] sm:$0xff] 0.0
      %312 = vst [vmem:[#allocation2 + $0x790] sm:$0xff] 0.0
      %313 = vst [vmem:[#allocation2 + $0x798] sm:$0xff] 0.0
      %314 = vst [vmem:[#allocation2 + $0x7a0] sm:$0xff] 0.0
      %315 = vst [vmem:[#allocation2 + $0x7a8] sm:$0xff] 0.0
      %316 = vst [vmem:[#allocation2 + $0x7b0] sm:$0xff] 0.0
      %317 = vst [vmem:[#allocation2 + $0x7b8] sm:$0xff] 0.0
      %318 = vst [vmem:[#allocation2 + $0x7c0] sm:$0xff] 0.0
      %319 = vst [vmem:[#allocation2 + $0x7c8] sm:$0xff] 0.0
      %320 = vst [vmem:[#allocation2 + $0x7d0] sm:$0xff] 0.0
      %321 = vst [vmem:[#allocation2 + $0x7d8] sm:$0xff] 0.0
      %322 = vst [vmem:[#allocation2 + $0x7e0] sm:$0xff] 0.0
      %323 = vst [vmem:[#allocation2 + $0x7e8] sm:$0xff] 0.0
      %324 = vst [vmem:[#allocation2 + $0x7f0] sm:$0xff] 0.0
      %325 = vst [vmem:[#allocation2 + $0x7f8] sm:$0xff] 0.0
    $region21: #{tpu_custom_call.1} parent=1 // pred_fallthru
      _
    %v326 = vld [vmem:[#allocation2] sm:$0xff]
    %v327 = vld [vmem:[#allocation2 + $0x8] sm:$0xff]
    %v328 = vld [vmem:[#allocation2 + $0x10] sm:$0xff]
    %v329 = vld [vmem:[#allocation2 + $0x18] sm:$0xff]
    %v330 = vld [vmem:[#allocation2 + $0x20] sm:$0xff]
    %v331 = vld [vmem:[#allocation2 + $0x28] sm:$0xff]
    %v332 = vld [vmem:[#allocation2 + $0x30] sm:$0xff]
    %v333 = vld [vmem:[#allocation2 + $0x38] sm:$0xff]
    %v334 = vld [vmem:[#allocation2 + $0x40] sm:$0xff]
    %v335 = vld [vmem:[#allocation2 + $0x48] sm:$0xff]
    %v336 = vld [vmem:[#allocation2 + $0x50] sm:$0xff]
    %v337 = vld [vmem:[#allocation2 + $0x58] sm:$0xff]
    %v338 = vld [vmem:[#allocation2 + $0x60] sm:$0xff]
    %v339 = vld [vmem:[#allocation2 + $0x68] sm:$0xff]
    %v340 = vld [vmem:[#allocation2 + $0x70] sm:$0xff]
    %v341 = vld [vmem:[#allocation2 + $0x78] sm:$0xff]
    %v342 = vld [vmem:[#allocation2 + $0x80] sm:$0xff]
    %v343 = vld [vmem:[#allocation2 + $0x88] sm:$0xff]
    %v344 = vld [vmem:[#allocation2 + $0x90] sm:$0xff]
    %v345 = vld [vmem:[#allocation2 + $0x98] sm:$0xff]
    %v346 = vld [vmem:[#allocation2 + $0xa0] sm:$0xff]
    %v347 = vld [vmem:[#allocation2 + $0xa8] sm:$0xff]
    %v348 = vld [vmem:[#allocation2 + $0xb0] sm:$0xff]
    %v349 = vld [vmem:[#allocation2 + $0xb8] sm:$0xff]
    %v350 = vld [vmem:[#allocation2 + $0xc0] sm:$0xff]
    %v351 = vld [vmem:[#allocation2 + $0xc8] sm:$0xff]
    %v352 = vld [vmem:[#allocation2 + $0xd0] sm:$0xff]
    %v353 = vld [vmem:[#allocation2 + $0xd8] sm:$0xff]
    %v354 = vld [vmem:[#allocation2 + $0xe0] sm:$0xff]
    %v355 = vld [vmem:[#allocation2 + $0xe8] sm:$0xff]
    %v356 = vld [vmem:[#allocation2 + $0xf0] sm:$0xff]
    %v357 = vld [vmem:[#allocation2 + $0xf8] sm:$0xff]
    %v358 = vld [vmem:[#allocation2 + $0x100] sm:$0xff]
    %v359 = vld [vmem:[#allocation2 + $0x108] sm:$0xff]
    %v360 = vld [vmem:[#allocation2 + $0x110] sm:$0xff]
    %v361 = vld [vmem:[#allocation2 + $0x118] sm:$0xff]
    %v362 = vld [vmem:[#allocation2 + $0x120] sm:$0xff]
    %v363 = vld [vmem:[#allocation2 + $0x128] sm:$0xff]
    %v364 = vld [vmem:[#allocation2 + $0x130] sm:$0xff]
    %v365 = vld [vmem:[#allocation2 + $0x138] sm:$0xff]
    %v366 = vld [vmem:[#allocation2 + $0x140] sm:$0xff]
    %v367 = vld [vmem:[#allocation2 + $0x148] sm:$0xff]
    %v368 = vld [vmem:[#allocation2 + $0x150] sm:$0xff]
    %v369 = vld [vmem:[#allocation2 + $0x158] sm:$0xff]
    %v370 = vld [vmem:[#allocation2 + $0x160] sm:$0xff]
    %v371 = vld [vmem:[#allocation2 + $0x168] sm:$0xff]
    %v372 = vld [vmem:[#allocation2 + $0x170] sm:$0xff]
    %v373 = vld [vmem:[#allocation2 + $0x178] sm:$0xff]
    %v374 = vld [vmem:[#allocation2 + $0x180] sm:$0xff]
    %v375 = vld [vmem:[#allocation2 + $0x188] sm:$0xff]
    %v376 = vld [vmem:[#allocation2 + $0x190] sm:$0xff]
    %v377 = vld [vmem:[#allocation2 + $0x198] sm:$0xff]
    %v378 = vld [vmem:[#allocation2 + $0x1a0] sm:$0xff]
    %v379 = vld [vmem:[#allocation2 + $0x1a8] sm:$0xff]
    %v380 = vld [vmem:[#allocation2 + $0x1b0] sm:$0xff]
    %v381 = vld [vmem:[#allocation2 + $0x1b8] sm:$0xff]
    %v382 = vld [vmem:[#allocation2 + $0x1c0] sm:$0xff]
    %v383 = vld [vmem:[#allocation2 + $0x1c8] sm:$0xff]
    %v384 = vld [vmem:[#allocation2 + $0x1d0] sm:$0xff]
    %v385 = vld [vmem:[#allocation2 + $0x1d8] sm:$0xff]
    %v386 = vld [vmem:[#allocation2 + $0x1e0] sm:$0xff]
    %v387 = vld [vmem:[#allocation2 + $0x1e8] sm:$0xff]
    %v388 = vld [vmem:[#allocation2 + $0x1f0] sm:$0xff]
    %v389 = vld [vmem:[#allocation2 + $0x1f8] sm:$0xff]
    %v390 = vld [vmem:[#allocation2 + $0x200] sm:$0xff]
    %v391 = vld [vmem:[#allocation2 + $0x208] sm:$0xff]
    %v392 = vld [vmem:[#allocation2 + $0x210] sm:$0xff]
    %v393 = vld [vmem:[#allocation2 + $0x218] sm:$0xff]
    %v394 = vld [vmem:[#allocation2 + $0x220] sm:$0xff]
    %v395 = vld [vmem:[#allocation2 + $0x228] sm:$0xff]
    %v396 = vld [vmem:[#allocation2 + $0x230] sm:$0xff]
    %v397 = vld [vmem:[#allocation2 + $0x238] sm:$0xff]
    %v398 = vld [vmem:[#allocation2 + $0x240] sm:$0xff]
    %v399 = vld [vmem:[#allocation2 + $0x248] sm:$0xff]
    %v400 = vld [vmem:[#allocation2 + $0x250] sm:$0xff]
    %v401 = vld [vmem:[#allocation2 + $0x258] sm:$0xff]
    %v402 = vld [vmem:[#allocation2 + $0x260] sm:$0xff]
    %v403 = vld [vmem:[#allocation2 + $0x268] sm:$0xff]
    %v404 = vld [vmem:[#allocation2 + $0x270] sm:$0xff]
    %v405 = vld [vmem:[#allocation2 + $0x278] sm:$0xff]
    %v406 = vld [vmem:[#allocation2 + $0x280] sm:$0xff]
    %v407 = vld [vmem:[#allocation2 + $0x288] sm:$0xff]
    %v408 = vld [vmem:[#allocation2 + $0x290] sm:$0xff]
    %v409 = vld [vmem:[#allocation2 + $0x298] sm:$0xff]
    %v410 = vld [vmem:[#allocation2 + $0x2a0] sm:$0xff]
    %v411 = vld [vmem:[#allocation2 + $0x2a8] sm:$0xff]
    %v412 = vld [vmem:[#allocation2 + $0x2b0] sm:$0xff]
    %v413 = vld [vmem:[#allocation2 + $0x2b8] sm:$0xff]
    %v414 = vld [vmem:[#allocation2 + $0x2c0] sm:$0xff]
    %v415 = vld [vmem:[#allocation2 + $0x2c8] sm:$0xff]
    %v416 = vld [vmem:[#allocation2 + $0x2d0] sm:$0xff]
    %v417 = vld [vmem:[#allocation2 + $0x2d8] sm:$0xff]
    %v418 = vld [vmem:[#allocation2 + $0x2e0] sm:$0xff]
    %v419 = vld [vmem:[#allocation2 + $0x2e8] sm:$0xff]
    %v420 = vld [vmem:[#allocation2 + $0x2f0] sm:$0xff]
    %v421 = vld [vmem:[#allocation2 + $0x2f8] sm:$0xff]
    %v422 = vld [vmem:[#allocation2 + $0x300] sm:$0xff]
    %v423 = vld [vmem:[#allocation2 + $0x308] sm:$0xff]
    %v424 = vld [vmem:[#allocation2 + $0x310] sm:$0xff]
    %v425 = vld [vmem:[#allocation2 + $0x318] sm:$0xff]
    %v426 = vld [vmem:[#allocation2 + $0x320] sm:$0xff]
    %v427 = vld [vmem:[#allocation2 + $0x328] sm:$0xff]
    %v428 = vld [vmem:[#allocation2 + $0x330] sm:$0xff]
    %v429 = vld [vmem:[#allocation2 + $0x338] sm:$0xff]
    %v430 = vld [vmem:[#allocation2 + $0x340] sm:$0xff]
    %v431 = vld [vmem:[#allocation2 + $0x348] sm:$0xff]
    %v432 = vld [vmem:[#allocation2 + $0x350] sm:$0xff]
    %v433 = vld [vmem:[#allocation2 + $0x358] sm:$0xff]
    %v434 = vld [vmem:[#allocation2 + $0x360] sm:$0xff]
    %v435 = vld [vmem:[#allocation2 + $0x368] sm:$0xff]
    %v436 = vld [vmem:[#allocation2 + $0x370] sm:$0xff]
    %v437 = vld [vmem:[#allocation2 + $0x378] sm:$0xff]
    %v438 = vld [vmem:[#allocation2 + $0x380] sm:$0xff]
    %v439 = vld [vmem:[#allocation2 + $0x388] sm:$0xff]
    %v440 = vld [vmem:[#allocation2 + $0x390] sm:$0xff]
    %v441 = vld [vmem:[#allocation2 + $0x398] sm:$0xff]
    %v442 = vld [vmem:[#allocation2 + $0x3a0] sm:$0xff]
    %v443 = vld [vmem:[#allocation2 + $0x3a8] sm:$0xff]
    %v444 = vld [vmem:[#allocation2 + $0x3b0] sm:$0xff]
    %v445 = vld [vmem:[#allocation2 + $0x3b8] sm:$0xff]
    %v446 = vld [vmem:[#allocation2 + $0x3c0] sm:$0xff]
    %v447 = vld [vmem:[#allocation2 + $0x3c8] sm:$0xff]
    %v448 = vld [vmem:[#allocation2 + $0x3d0] sm:$0xff]
    %v449 = vld [vmem:[#allocation2 + $0x3d8] sm:$0xff]
    %v450 = vld [vmem:[#allocation2 + $0x3e0] sm:$0xff]
    %v451 = vld [vmem:[#allocation2 + $0x3e8] sm:$0xff]
    %v452 = vld [vmem:[#allocation2 + $0x3f0] sm:$0xff]
    %v453 = vld [vmem:[#allocation2 + $0x3f8] sm:$0xff]
    %v454 = vld [vmem:[#allocation2 + $0x400] sm:$0xff]
    %v455 = vld [vmem:[#allocation2 + $0x408] sm:$0xff]
    %v456 = vld [vmem:[#allocation2 + $0x410] sm:$0xff]
    %v457 = vld [vmem:[#allocation2 + $0x418] sm:$0xff]
    %v458 = vld [vmem:[#allocation2 + $0x420] sm:$0xff]
    %v459 = vld [vmem:[#allocation2 + $0x428] sm:$0xff]
    %v460 = vld [vmem:[#allocation2 + $0x430] sm:$0xff]
    %v461 = vld [vmem:[#allocation2 + $0x438] sm:$0xff]
    %v462 = vld [vmem:[#allocation2 + $0x440] sm:$0xff]
    %v463 = vld [vmem:[#allocation2 + $0x448] sm:$0xff]
    %v464 = vld [vmem:[#allocation2 + $0x450] sm:$0xff]
    %v465 = vld [vmem:[#allocation2 + $0x458] sm:$0xff]
    %v466 = vld [vmem:[#allocation2 + $0x460] sm:$0xff]
    %v467 = vld [vmem:[#allocation2 + $0x468] sm:$0xff]
    %v468 = vld [vmem:[#allocation2 + $0x470] sm:$0xff]
    %v469 = vld [vmem:[#allocation2 + $0x478] sm:$0xff]
    %v470 = vld [vmem:[#allocation2 + $0x480] sm:$0xff]
    %v471 = vld [vmem:[#allocation2 + $0x488] sm:$0xff]
    %v472 = vld [vmem:[#allocation2 + $0x490] sm:$0xff]
    %v473 = vld [vmem:[#allocation2 + $0x498] sm:$0xff]
    %v474 = vld [vmem:[#allocation2 + $0x4a0] sm:$0xff]
    %v475 = vld [vmem:[#allocation2 + $0x4a8] sm:$0xff]
    %v476 = vld [vmem:[#allocation2 + $0x4b0] sm:$0xff]
    %v477 = vld [vmem:[#allocation2 + $0x4b8] sm:$0xff]
    %v478 = vld [vmem:[#allocation2 + $0x4c0] sm:$0xff]
    %v479 = vld [vmem:[#allocation2 + $0x4c8] sm:$0xff]
    %v480 = vld [vmem:[#allocation2 + $0x4d0] sm:$0xff]
    %v481 = vld [vmem:[#allocation2 + $0x4d8] sm:$0xff]
    %v482 = vld [vmem:[#allocation2 + $0x4e0] sm:$0xff]
    %v483 = vld [vmem:[#allocation2 + $0x4e8] sm:$0xff]
    %v484 = vld [vmem:[#allocation2 + $0x4f0] sm:$0xff]
    %v485 = vld [vmem:[#allocation2 + $0x4f8] sm:$0xff]
    %v486 = vld [vmem:[#allocation2 + $0x500] sm:$0xff]
    %v487 = vld [vmem:[#allocation2 + $0x508] sm:$0xff]
    %v488 = vld [vmem:[#allocation2 + $0x510] sm:$0xff]
    %v489 = vld [vmem:[#allocation2 + $0x518] sm:$0xff]
    %v490 = vld [vmem:[#allocation2 + $0x520] sm:$0xff]
    %v491 = vld [vmem:[#allocation2 + $0x528] sm:$0xff]
    %v492 = vld [vmem:[#allocation2 + $0x530] sm:$0xff]
    %v493 = vld [vmem:[#allocation2 + $0x538] sm:$0xff]
    %v494 = vld [vmem:[#allocation2 + $0x540] sm:$0xff]
    %v495 = vld [vmem:[#allocation2 + $0x548] sm:$0xff]
    %v496 = vld [vmem:[#allocation2 + $0x550] sm:$0xff]
    %v497 = vld [vmem:[#allocation2 + $0x558] sm:$0xff]
    %v498 = vld [vmem:[#allocation2 + $0x560] sm:$0xff]
    %v499 = vld [vmem:[#allocation2 + $0x568] sm:$0xff]
    %v500 = vld [vmem:[#allocation2 + $0x570] sm:$0xff]
    %v501 = vld [vmem:[#allocation2 + $0x578] sm:$0xff]
    %v502 = vld [vmem:[#allocation2 + $0x580] sm:$0xff]
    %v503 = vld [vmem:[#allocation2 + $0x588] sm:$0xff]
    %v504 = vld [vmem:[#allocation2 + $0x590] sm:$0xff]
    %v505 = vld [vmem:[#allocation2 + $0x598] sm:$0xff]
    %v506 = vld [vmem:[#allocation2 + $0x5a0] sm:$0xff]
    %v507 = vld [vmem:[#allocation2 + $0x5a8] sm:$0xff]
    %v508 = vld [vmem:[#allocation2 + $0x5b0] sm:$0xff]
    %v509 = vld [vmem:[#allocation2 + $0x5b8] sm:$0xff]
    %v510 = vld [vmem:[#allocation2 + $0x5c0] sm:$0xff]
    %v511 = vld [vmem:[#allocation2 + $0x5c8] sm:$0xff]
    %v512 = vld [vmem:[#allocation2 + $0x5d0] sm:$0xff]
    %v513 = vld [vmem:[#allocation2 + $0x5d8] sm:$0xff]
    %v514 = vld [vmem:[#allocation2 + $0x5e0] sm:$0xff]
    %v515 = vld [vmem:[#allocation2 + $0x5e8] sm:$0xff]
    %v516 = vld [vmem:[#allocation2 + $0x5f0] sm:$0xff]
    %v517 = vld [vmem:[#allocation2 + $0x5f8] sm:$0xff]
    %v518 = vld [vmem:[#allocation2 + $0x600] sm:$0xff]
    %v519 = vld [vmem:[#allocation2 + $0x608] sm:$0xff]
    %v520 = vld [vmem:[#allocation2 + $0x610] sm:$0xff]
    %v521 = vld [vmem:[#allocation2 + $0x618] sm:$0xff]
    %v522 = vld [vmem:[#allocation2 + $0x620] sm:$0xff]
    %v523 = vld [vmem:[#allocation2 + $0x628] sm:$0xff]
    %v524 = vld [vmem:[#allocation2 + $0x630] sm:$0xff]
    %v525 = vld [vmem:[#allocation2 + $0x638] sm:$0xff]
    %v526 = vld [vmem:[#allocation2 + $0x640] sm:$0xff]
    %v527 = vld [vmem:[#allocation2 + $0x648] sm:$0xff]
    %v528 = vld [vmem:[#allocation2 + $0x650] sm:$0xff]
    %v529 = vld [vmem:[#allocation2 + $0x658] sm:$0xff]
    %v530 = vld [vmem:[#allocation2 + $0x660] sm:$0xff]
    %v531 = vld [vmem:[#allocation2 + $0x668] sm:$0xff]
    %v532 = vld [vmem:[#allocation2 + $0x670] sm:$0xff]
    %v533 = vld [vmem:[#allocation2 + $0x678] sm:$0xff]
    %v534 = vld [vmem:[#allocation2 + $0x680] sm:$0xff]
    %v535 = vld [vmem:[#allocation2 + $0x688] sm:$0xff]
    %v536 = vld [vmem:[#allocation2 + $0x690] sm:$0xff]
    %v537 = vld [vmem:[#allocation2 + $0x698] sm:$0xff]
    %v538 = vld [vmem:[#allocation2 + $0x6a0] sm:$0xff]
    %v539 = vld [vmem:[#allocation2 + $0x6a8] sm:$0xff]
    %v540 = vld [vmem:[#allocation2 + $0x6b0] sm:$0xff]
    %v541 = vld [vmem:[#allocation2 + $0x6b8] sm:$0xff]
    %v542 = vld [vmem:[#allocation2 + $0x6c0] sm:$0xff]
    %v543 = vld [vmem:[#allocation2 + $0x6c8] sm:$0xff]
    %v544 = vld [vmem:[#allocation2 + $0x6d0] sm:$0xff]
    %v545 = vld [vmem:[#allocation2 + $0x6d8] sm:$0xff]
    %v546 = vld [vmem:[#allocation2 + $0x6e0] sm:$0xff]
    %v547 = vld [vmem:[#allocation2 + $0x6e8] sm:$0xff]
    %v548 = vld [vmem:[#allocation2 + $0x6f0] sm:$0xff]
    %v549 = vld [vmem:[#allocation2 + $0x6f8] sm:$0xff]
    %v550 = vld [vmem:[#allocation2 + $0x700] sm:$0xff]
    %v551 = vld [vmem:[#allocation2 + $0x708] sm:$0xff]
    %v552 = vld [vmem:[#allocation2 + $0x710] sm:$0xff]
    %v553 = vld [vmem:[#allocation2 + $0x718] sm:$0xff]
    %v554 = vld [vmem:[#allocation2 + $0x720] sm:$0xff]
    %v555 = vld [vmem:[#allocation2 + $0x728] sm:$0xff]
    %v556 = vld [vmem:[#allocation2 + $0x730] sm:$0xff]
    %v557 = vld [vmem:[#allocation2 + $0x738] sm:$0xff]
    %v558 = vld [vmem:[#allocation2 + $0x740] sm:$0xff]
    %v559 = vld [vmem:[#allocation2 + $0x748] sm:$0xff]
    %v560 = vld [vmem:[#allocation2 + $0x750] sm:$0xff]
    %v561 = vld [vmem:[#allocation2 + $0x758] sm:$0xff]
    %v562 = vld [vmem:[#allocation2 + $0x760] sm:$0xff]
    %v563 = vld [vmem:[#allocation2 + $0x768] sm:$0xff]
    %v564 = vld [vmem:[#allocation2 + $0x770] sm:$0xff]
    %v565 = vld [vmem:[#allocation2 + $0x778] sm:$0xff]
    %v566 = vld [vmem:[#allocation2 + $0x780] sm:$0xff]
    %v567 = vld [vmem:[#allocation2 + $0x788] sm:$0xff]
    %v568 = vld [vmem:[#allocation2 + $0x790] sm:$0xff]
    %v569 = vld [vmem:[#allocation2 + $0x798] sm:$0xff]
    %v570 = vld [vmem:[#allocation2 + $0x7a0] sm:$0xff]
    %v571 = vld [vmem:[#allocation2 + $0x7a8] sm:$0xff]
    %v572 = vld [vmem:[#allocation2 + $0x7b0] sm:$0xff]
    %v573 = vld [vmem:[#allocation2 + $0x7b8] sm:$0xff]
    %v574 = vld [vmem:[#allocation2 + $0x7c0] sm:$0xff]
    %v575 = vld [vmem:[#allocation2 + $0x7c8] sm:$0xff]
    %v576 = vld [vmem:[#allocation2 + $0x7d0] sm:$0xff]
    %v577 = vld [vmem:[#allocation2 + $0x7d8] sm:$0xff]
    %v578 = vld [vmem:[#allocation2 + $0x7e0] sm:$0xff]
    %v579 = vld [vmem:[#allocation2 + $0x7e8] sm:$0xff]
    %v580 = vld [vmem:[#allocation2 + $0x7f0] sm:$0xff]
    %v581 = vld [vmem:[#allocation2 + $0x7f8] sm:$0xff]
    %v582 = vld [vmem:[#allocation3] sm:$0xff]
    %v583 = vld [vmem:[#allocation3 + $0x8] sm:$0xff]
    %v584 = vld [vmem:[#allocation3 + $0x10] sm:$0xff]
    %v585 = vld [vmem:[#allocation3 + $0x18] sm:$0xff]
    %v586 = vld [vmem:[#allocation3 + $0x20] sm:$0xff]
    %v587 = vld [vmem:[#allocation3 + $0x28] sm:$0xff]
    %v588 = vld [vmem:[#allocation3 + $0x30] sm:$0xff]
    %v589 = vld [vmem:[#allocation3 + $0x38] sm:$0xff]
    %v590 = vld [vmem:[#allocation3 + $0x40] sm:$0xff]
    %v591 = vld [vmem:[#allocation3 + $0x48] sm:$0xff]
    %v592 = vld [vmem:[#allocation3 + $0x50] sm:$0xff]
    %v593 = vld [vmem:[#allocation3 + $0x58] sm:$0xff]
    %v594 = vld [vmem:[#allocation3 + $0x60] sm:$0xff]
    %v595 = vld [vmem:[#allocation3 + $0x68] sm:$0xff]
    %v596 = vld [vmem:[#allocation3 + $0x70] sm:$0xff]
    %v597 = vld [vmem:[#allocation3 + $0x78] sm:$0xff]
    %v598 = vld [vmem:[#allocation3 + $0x80] sm:$0xff]
    %v599 = vld [vmem:[#allocation3 + $0x88] sm:$0xff]
    %v600 = vld [vmem:[#allocation3 + $0x90] sm:$0xff]
    %v601 = vld [vmem:[#allocation3 + $0x98] sm:$0xff]
    %v602 = vld [vmem:[#allocation3 + $0xa0] sm:$0xff]
    %v603 = vld [vmem:[#allocation3 + $0xa8] sm:$0xff]
    %v604 = vld [vmem:[#allocation3 + $0xb0] sm:$0xff]
    %v605 = vld [vmem:[#allocation3 + $0xb8] sm:$0xff]
    %v606 = vld [vmem:[#allocation3 + $0xc0] sm:$0xff]
    %v607 = vld [vmem:[#allocation3 + $0xc8] sm:$0xff]
    %v608 = vld [vmem:[#allocation3 + $0xd0] sm:$0xff]
    %v609 = vld [vmem:[#allocation3 + $0xd8] sm:$0xff]
    %v610 = vld [vmem:[#allocation3 + $0xe0] sm:$0xff]
    %v611 = vld [vmem:[#allocation3 + $0xe8] sm:$0xff]
    %v612 = vld [vmem:[#allocation3 + $0xf0] sm:$0xff]
    %v613 = vld [vmem:[#allocation3 + $0xf8] sm:$0xff]
    %v614 = vld [vmem:[#allocation3 + $0x100] sm:$0xff]
    %v615 = vld [vmem:[#allocation3 + $0x108] sm:$0xff]
    %v616 = vld [vmem:[#allocation3 + $0x110] sm:$0xff]
    %v617 = vld [vmem:[#allocation3 + $0x118] sm:$0xff]
    %v618 = vld [vmem:[#allocation3 + $0x120] sm:$0xff]
    %v619 = vld [vmem:[#allocation3 + $0x128] sm:$0xff]
    %v620 = vld [vmem:[#allocation3 + $0x130] sm:$0xff]
    %v621 = vld [vmem:[#allocation3 + $0x138] sm:$0xff]
    %v622 = vld [vmem:[#allocation3 + $0x140] sm:$0xff]
    %v623 = vld [vmem:[#allocation3 + $0x148] sm:$0xff]
    %v624 = vld [vmem:[#allocation3 + $0x150] sm:$0xff]
    %v625 = vld [vmem:[#allocation3 + $0x158] sm:$0xff]
    %v626 = vld [vmem:[#allocation3 + $0x160] sm:$0xff]
    %v627 = vld [vmem:[#allocation3 + $0x168] sm:$0xff]
    %v628 = vld [vmem:[#allocation3 + $0x170] sm:$0xff]
    %v629 = vld [vmem:[#allocation3 + $0x178] sm:$0xff]
    %v630 = vld [vmem:[#allocation3 + $0x180] sm:$0xff]
    %v631 = vld [vmem:[#allocation3 + $0x188] sm:$0xff]
    %v632 = vld [vmem:[#allocation3 + $0x190] sm:$0xff]
    %v633 = vld [vmem:[#allocation3 + $0x198] sm:$0xff]
    %v634 = vld [vmem:[#allocation3 + $0x1a0] sm:$0xff]
    %v635 = vld [vmem:[#allocation3 + $0x1a8] sm:$0xff]
    %v636 = vld [vmem:[#allocation3 + $0x1b0] sm:$0xff]
    %v637 = vld [vmem:[#allocation3 + $0x1b8] sm:$0xff]
    %v638 = vld [vmem:[#allocation3 + $0x1c0] sm:$0xff]
    %v639 = vld [vmem:[#allocation3 + $0x1c8] sm:$0xff]
    %v640 = vld [vmem:[#allocation3 + $0x1d0] sm:$0xff]
    %v641 = vld [vmem:[#allocation3 + $0x1d8] sm:$0xff]
    %v642 = vld [vmem:[#allocation3 + $0x1e0] sm:$0xff]
    %v643 = vld [vmem:[#allocation3 + $0x1e8] sm:$0xff]
    %v644 = vld [vmem:[#allocation3 + $0x1f0] sm:$0xff]
    %v645 = vld [vmem:[#allocation3 + $0x1f8] sm:$0xff]
    %v646 = vld [vmem:[#allocation3 + $0x200] sm:$0xff]
    %v647 = vld [vmem:[#allocation3 + $0x208] sm:$0xff]
    %v648 = vld [vmem:[#allocation3 + $0x210] sm:$0xff]
    %v649 = vld [vmem:[#allocation3 + $0x218] sm:$0xff]
    %v650 = vld [vmem:[#allocation3 + $0x220] sm:$0xff]
    %v651 = vld [vmem:[#allocation3 + $0x228] sm:$0xff]
    %v652 = vld [vmem:[#allocation3 + $0x230] sm:$0xff]
    %v653 = vld [vmem:[#allocation3 + $0x238] sm:$0xff]
    %v654 = vld [vmem:[#allocation3 + $0x240] sm:$0xff]
    %v655 = vld [vmem:[#allocation3 + $0x248] sm:$0xff]
    %v656 = vld [vmem:[#allocation3 + $0x250] sm:$0xff]
    %v657 = vld [vmem:[#allocation3 + $0x258] sm:$0xff]
    %v658 = vld [vmem:[#allocation3 + $0x260] sm:$0xff]
    %v659 = vld [vmem:[#allocation3 + $0x268] sm:$0xff]
    %v660 = vld [vmem:[#allocation3 + $0x270] sm:$0xff]
    %v661 = vld [vmem:[#allocation3 + $0x278] sm:$0xff]
    %v662 = vld [vmem:[#allocation3 + $0x280] sm:$0xff]
    %v663 = vld [vmem:[#allocation3 + $0x288] sm:$0xff]
    %v664 = vld [vmem:[#allocation3 + $0x290] sm:$0xff]
    %v665 = vld [vmem:[#allocation3 + $0x298] sm:$0xff]
    %v666 = vld [vmem:[#allocation3 + $0x2a0] sm:$0xff]
    %v667 = vld [vmem:[#allocation3 + $0x2a8] sm:$0xff]
    %v668 = vld [vmem:[#allocation3 + $0x2b0] sm:$0xff]
    %v669 = vld [vmem:[#allocation3 + $0x2b8] sm:$0xff]
    %v670 = vld [vmem:[#allocation3 + $0x2c0] sm:$0xff]
    %v671 = vld [vmem:[#allocation3 + $0x2c8] sm:$0xff]
    %v672 = vld [vmem:[#allocation3 + $0x2d0] sm:$0xff]
    %v673 = vld [vmem:[#allocation3 + $0x2d8] sm:$0xff]
    %v674 = vld [vmem:[#allocation3 + $0x2e0] sm:$0xff]
    %v675 = vld [vmem:[#allocation3 + $0x2e8] sm:$0xff]
    %v676 = vld [vmem:[#allocation3 + $0x2f0] sm:$0xff]
    %v677 = vld [vmem:[#allocation3 + $0x2f8] sm:$0xff]
    %v678 = vld [vmem:[#allocation3 + $0x300] sm:$0xff]
    %v679 = vld [vmem:[#allocation3 + $0x308] sm:$0xff]
    %v680 = vld [vmem:[#allocation3 + $0x310] sm:$0xff]
    %v681 = vld [vmem:[#allocation3 + $0x318] sm:$0xff]
    %v682 = vld [vmem:[#allocation3 + $0x320] sm:$0xff]
    %v683 = vld [vmem:[#allocation3 + $0x328] sm:$0xff]
    %v684 = vld [vmem:[#allocation3 + $0x330] sm:$0xff]
    %v685 = vld [vmem:[#allocation3 + $0x338] sm:$0xff]
    %v686 = vld [vmem:[#allocation3 + $0x340] sm:$0xff]
    %v687 = vld [vmem:[#allocation3 + $0x348] sm:$0xff]
    %v688 = vld [vmem:[#allocation3 + $0x350] sm:$0xff]
    %v689 = vld [vmem:[#allocation3 + $0x358] sm:$0xff]
    %v690 = vld [vmem:[#allocation3 + $0x360] sm:$0xff]
    %v691 = vld [vmem:[#allocation3 + $0x368] sm:$0xff]
    %v692 = vld [vmem:[#allocation3 + $0x370] sm:$0xff]
    %v693 = vld [vmem:[#allocation3 + $0x378] sm:$0xff]
    %v694 = vld [vmem:[#allocation3 + $0x380] sm:$0xff]
    %v695 = vld [vmem:[#allocation3 + $0x388] sm:$0xff]
    %v696 = vld [vmem:[#allocation3 + $0x390] sm:$0xff]
    %v697 = vld [vmem:[#allocation3 + $0x398] sm:$0xff]
    %v698 = vld [vmem:[#allocation3 + $0x3a0] sm:$0xff]
    %v699 = vld [vmem:[#allocation3 + $0x3a8] sm:$0xff]
    %v700 = vld [vmem:[#allocation3 + $0x3b0] sm:$0xff]
    %v701 = vld [vmem:[#allocation3 + $0x3b8] sm:$0xff]
    %v702 = vld [vmem:[#allocation3 + $0x3c0] sm:$0xff]
    %v703 = vld [vmem:[#allocation3 + $0x3c8] sm:$0xff]
    %v704 = vld [vmem:[#allocation3 + $0x3d0] sm:$0xff]
    %v705 = vld [vmem:[#allocation3 + $0x3d8] sm:$0xff]
    %v706 = vld [vmem:[#allocation3 + $0x3e0] sm:$0xff]
    %v707 = vld [vmem:[#allocation3 + $0x3e8] sm:$0xff]
    %v708 = vld [vmem:[#allocation3 + $0x3f0] sm:$0xff]
    %v709 = vld [vmem:[#allocation3 + $0x3f8] sm:$0xff]
    %v710 = vld [vmem:[#allocation3 + $0x400] sm:$0xff]
    %v711 = vld [vmem:[#allocation3 + $0x408] sm:$0xff]
    %v712 = vld [vmem:[#allocation3 + $0x410] sm:$0xff]
    %v713 = vld [vmem:[#allocation3 + $0x418] sm:$0xff]
    %v714 = vld [vmem:[#allocation3 + $0x420] sm:$0xff]
    %v715 = vld [vmem:[#allocation3 + $0x428] sm:$0xff]
    %v716 = vld [vmem:[#allocation3 + $0x430] sm:$0xff]
    %v717 = vld [vmem:[#allocation3 + $0x438] sm:$0xff]
    %v718 = vld [vmem:[#allocation3 + $0x440] sm:$0xff]
    %v719 = vld [vmem:[#allocation3 + $0x448] sm:$0xff]
    %v720 = vld [vmem:[#allocation3 + $0x450] sm:$0xff]
    %v721 = vld [vmem:[#allocation3 + $0x458] sm:$0xff]
    %v722 = vld [vmem:[#allocation3 + $0x460] sm:$0xff]
    %v723 = vld [vmem:[#allocation3 + $0x468] sm:$0xff]
    %v724 = vld [vmem:[#allocation3 + $0x470] sm:$0xff]
    %v725 = vld [vmem:[#allocation3 + $0x478] sm:$0xff]
    %v726 = vld [vmem:[#allocation3 + $0x480] sm:$0xff]
    %v727 = vld [vmem:[#allocation3 + $0x488] sm:$0xff]
    %v728 = vld [vmem:[#allocation3 + $0x490] sm:$0xff]
    %v729 = vld [vmem:[#allocation3 + $0x498] sm:$0xff]
    %v730 = vld [vmem:[#allocation3 + $0x4a0] sm:$0xff]
    %v731 = vld [vmem:[#allocation3 + $0x4a8] sm:$0xff]
    %v732 = vld [vmem:[#allocation3 + $0x4b0] sm:$0xff]
    %v733 = vld [vmem:[#allocation3 + $0x4b8] sm:$0xff]
    %v734 = vld [vmem:[#allocation3 + $0x4c0] sm:$0xff]
    %v735 = vld [vmem:[#allocation3 + $0x4c8] sm:$0xff]
    %v736 = vld [vmem:[#allocation3 + $0x4d0] sm:$0xff]
    %v737 = vld [vmem:[#allocation3 + $0x4d8] sm:$0xff]
    %v738 = vld [vmem:[#allocation3 + $0x4e0] sm:$0xff]
    %v739 = vld [vmem:[#allocation3 + $0x4e8] sm:$0xff]
    %v740 = vld [vmem:[#allocation3 + $0x4f0] sm:$0xff]
    %v741 = vld [vmem:[#allocation3 + $0x4f8] sm:$0xff]
    %v742 = vld [vmem:[#allocation3 + $0x500] sm:$0xff]
    %v743 = vld [vmem:[#allocation3 + $0x508] sm:$0xff]
    %v744 = vld [vmem:[#allocation3 + $0x510] sm:$0xff]
    %v745 = vld [vmem:[#allocation3 + $0x518] sm:$0xff]
    %v746 = vld [vmem:[#allocation3 + $0x520] sm:$0xff]
    %v747 = vld [vmem:[#allocation3 + $0x528] sm:$0xff]
    %v748 = vld [vmem:[#allocation3 + $0x530] sm:$0xff]
    %v749 = vld [vmem:[#allocation3 + $0x538] sm:$0xff]
    %v750 = vld [vmem:[#allocation3 + $0x540] sm:$0xff]
    %v751 = vld [vmem:[#allocation3 + $0x548] sm:$0xff]
    %v752 = vld [vmem:[#allocation3 + $0x550] sm:$0xff]
    %v753 = vld [vmem:[#allocation3 + $0x558] sm:$0xff]
    %v754 = vld [vmem:[#allocation3 + $0x560] sm:$0xff]
    %v755 = vld [vmem:[#allocation3 + $0x568] sm:$0xff]
    %v756 = vld [vmem:[#allocation3 + $0x570] sm:$0xff]
    %v757 = vld [vmem:[#allocation3 + $0x578] sm:$0xff]
    %v758 = vld [vmem:[#allocation3 + $0x580] sm:$0xff]
    %v759 = vld [vmem:[#allocation3 + $0x588] sm:$0xff]
    %v760 = vld [vmem:[#allocation3 + $0x590] sm:$0xff]
    %v761 = vld [vmem:[#allocation3 + $0x598] sm:$0xff]
    %v762 = vld [vmem:[#allocation3 + $0x5a0] sm:$0xff]
    %v763 = vld [vmem:[#allocation3 + $0x5a8] sm:$0xff]
    %v764 = vld [vmem:[#allocation3 + $0x5b0] sm:$0xff]
    %v765 = vld [vmem:[#allocation3 + $0x5b8] sm:$0xff]
    %v766 = vld [vmem:[#allocation3 + $0x5c0] sm:$0xff]
    %v767 = vld [vmem:[#allocation3 + $0x5c8] sm:$0xff]
    %v768 = vld [vmem:[#allocation3 + $0x5d0] sm:$0xff]
    %v769 = vld [vmem:[#allocation3 + $0x5d8] sm:$0xff]
    %v770 = vld [vmem:[#allocation3 + $0x5e0] sm:$0xff]
    %v771 = vld [vmem:[#allocation3 + $0x5e8] sm:$0xff]
    %v772 = vld [vmem:[#allocation3 + $0x5f0] sm:$0xff]
    %v773 = vld [vmem:[#allocation3 + $0x5f8] sm:$0xff]
    %v774 = vld [vmem:[#allocation3 + $0x600] sm:$0xff]
    %v775 = vld [vmem:[#allocation3 + $0x608] sm:$0xff]
    %v776 = vld [vmem:[#allocation3 + $0x610] sm:$0xff]
    %v777 = vld [vmem:[#allocation3 + $0x618] sm:$0xff]
    %v778 = vld [vmem:[#allocation3 + $0x620] sm:$0xff]
    %v779 = vld [vmem:[#allocation3 + $0x628] sm:$0xff]
    %v780 = vld [vmem:[#allocation3 + $0x630] sm:$0xff]
    %v781 = vld [vmem:[#allocation3 + $0x638] sm:$0xff]
    %v782 = vld [vmem:[#allocation3 + $0x640] sm:$0xff]
    %v783 = vld [vmem:[#allocation3 + $0x648] sm:$0xff]
    %v784 = vld [vmem:[#allocation3 + $0x650] sm:$0xff]
    %v785 = vld [vmem:[#allocation3 + $0x658] sm:$0xff]
    %v786 = vld [vmem:[#allocation3 + $0x660] sm:$0xff]
    %v787 = vld [vmem:[#allocation3 + $0x668] sm:$0xff]
    %v788 = vld [vmem:[#allocation3 + $0x670] sm:$0xff]
    %v789 = vld [vmem:[#allocation3 + $0x678] sm:$0xff]
    %v790 = vld [vmem:[#allocation3 + $0x680] sm:$0xff]
    %v791 = vld [vmem:[#allocation3 + $0x688] sm:$0xff]
    %v792 = vld [vmem:[#allocation3 + $0x690] sm:$0xff]
    %v793 = vld [vmem:[#allocation3 + $0x698] sm:$0xff]
    %v794 = vld [vmem:[#allocation3 + $0x6a0] sm:$0xff]
    %v795 = vld [vmem:[#allocation3 + $0x6a8] sm:$0xff]
    %v796 = vld [vmem:[#allocation3 + $0x6b0] sm:$0xff]
    %v797 = vld [vmem:[#allocation3 + $0x6b8] sm:$0xff]
    %v798 = vld [vmem:[#allocation3 + $0x6c0] sm:$0xff]
    %v799 = vld [vmem:[#allocation3 + $0x6c8] sm:$0xff]
    %v800 = vld [vmem:[#allocation3 + $0x6d0] sm:$0xff]
    %v801 = vld [vmem:[#allocation3 + $0x6d8] sm:$0xff]
    %v802 = vld [vmem:[#allocation3 + $0x6e0] sm:$0xff]
    %v803 = vld [vmem:[#allocation3 + $0x6e8] sm:$0xff]
    %v804 = vld [vmem:[#allocation3 + $0x6f0] sm:$0xff]
    %v805 = vld [vmem:[#allocation3 + $0x6f8] sm:$0xff]
    %v806 = vld [vmem:[#allocation3 + $0x700] sm:$0xff]
    %v807 = vld [vmem:[#allocation3 + $0x708] sm:$0xff]
    %v808 = vld [vmem:[#allocation3 + $0x710] sm:$0xff]
    %v809 = vld [vmem:[#allocation3 + $0x718] sm:$0xff]
    %v810 = vld [vmem:[#allocation3 + $0x720] sm:$0xff]
    %v811 = vld [vmem:[#allocation3 + $0x728] sm:$0xff]
    %v812 = vld [vmem:[#allocation3 + $0x730] sm:$0xff]
    %v813 = vld [vmem:[#allocation3 + $0x738] sm:$0xff]
    %v814 = vld [vmem:[#allocation3 + $0x740] sm:$0xff]
    %v815 = vld [vmem:[#allocation3 + $0x748] sm:$0xff]
    %v816 = vld [vmem:[#allocation3 + $0x750] sm:$0xff]
    %v817 = vld [vmem:[#allocation3 + $0x758] sm:$0xff]
    %v818 = vld [vmem:[#allocation3 + $0x760] sm:$0xff]
    %v819 = vld [vmem:[#allocation3 + $0x768] sm:$0xff]
    %v820 = vld [vmem:[#allocation3 + $0x770] sm:$0xff]
    %v821 = vld [vmem:[#allocation3 + $0x778] sm:$0xff]
    %v822 = vld [vmem:[#allocation3 + $0x780] sm:$0xff]
    %v823 = vld [vmem:[#allocation3 + $0x788] sm:$0xff]
    %v824 = vld [vmem:[#allocation3 + $0x790] sm:$0xff]
    %v825 = vld [vmem:[#allocation3 + $0x798] sm:$0xff]
    %v826 = vld [vmem:[#allocation3 + $0x7a0] sm:$0xff]
    %v827 = vld [vmem:[#allocation3 + $0x7a8] sm:$0xff]
    %v828 = vld [vmem:[#allocation3 + $0x7b0] sm:$0xff]
    %v829 = vld [vmem:[#allocation3 + $0x7b8] sm:$0xff]
    %v830 = vld [vmem:[#allocation3 + $0x7c0] sm:$0xff]
    %v831 = vld [vmem:[#allocation3 + $0x7c8] sm:$0xff]
    %v832 = vld [vmem:[#allocation3 + $0x7d0] sm:$0xff]
    %v833 = vld [vmem:[#allocation3 + $0x7d8] sm:$0xff]
    %v834 = vld [vmem:[#allocation3 + $0x7e0] sm:$0xff]
    %v835 = vld [vmem:[#allocation3 + $0x7e8] sm:$0xff]
    %v836 = vld [vmem:[#allocation3 + $0x7f0] sm:$0xff]
    %v837 = vld [vmem:[#allocation3 + $0x7f8] sm:$0xff]
    %v838 = vld [vmem:[#allocation6] sm:$0xff]
    %v839 = vld [vmem:[#allocation6 + $0x8] sm:$0xff]
    %v840 = vld [vmem:[#allocation6 + $0x10] sm:$0xff]
    %v841 = vld [vmem:[#allocation6 + $0x18] sm:$0xff]
    %v842 = vld [vmem:[#allocation6 + $0x20] sm:$0xff]
    %v843 = vld [vmem:[#allocation6 + $0x28] sm:$0xff]
    %v844 = vld [vmem:[#allocation6 + $0x30] sm:$0xff]
    %v845 = vld [vmem:[#allocation6 + $0x38] sm:$0xff]
    %v846 = vld [vmem:[#allocation6 + $0x40] sm:$0xff]
    %v847 = vld [vmem:[#allocation6 + $0x48] sm:$0xff]
    %v848 = vld [vmem:[#allocation6 + $0x50] sm:$0xff]
    %v849 = vld [vmem:[#allocation6 + $0x58] sm:$0xff]
    %v850 = vld [vmem:[#allocation6 + $0x60] sm:$0xff]
    %v851 = vld [vmem:[#allocation6 + $0x68] sm:$0xff]
    %v852 = vld [vmem:[#allocation6 + $0x70] sm:$0xff]
    %v853 = vld [vmem:[#allocation6 + $0x78] sm:$0xff]
    %v854 = vld [vmem:[#allocation6 + $0x80] sm:$0xff]
    %v855 = vld [vmem:[#allocation6 + $0x88] sm:$0xff]
    %v856 = vld [vmem:[#allocation6 + $0x90] sm:$0xff]
    %v857 = vld [vmem:[#allocation6 + $0x98] sm:$0xff]
    %v858 = vld [vmem:[#allocation6 + $0xa0] sm:$0xff]
    %v859 = vld [vmem:[#allocation6 + $0xa8] sm:$0xff]
    %v860 = vld [vmem:[#allocation6 + $0xb0] sm:$0xff]
    %v861 = vld [vmem:[#allocation6 + $0xb8] sm:$0xff]
    %v862 = vld [vmem:[#allocation6 + $0xc0] sm:$0xff]
    %v863 = vld [vmem:[#allocation6 + $0xc8] sm:$0xff]
    %v864 = vld [vmem:[#allocation6 + $0xd0] sm:$0xff]
    %v865 = vld [vmem:[#allocation6 + $0xd8] sm:$0xff]
    %v866 = vld [vmem:[#allocation6 + $0xe0] sm:$0xff]
    %v867 = vld [vmem:[#allocation6 + $0xe8] sm:$0xff]
    %v868 = vld [vmem:[#allocation6 + $0xf0] sm:$0xff]
    %v869 = vld [vmem:[#allocation6 + $0xf8] sm:$0xff]
    %v870 = vld [vmem:[#allocation6 + $0x100] sm:$0xff]
    %v871 = vld [vmem:[#allocation6 + $0x108] sm:$0xff]
    %v872 = vld [vmem:[#allocation6 + $0x110] sm:$0xff]
    %v873 = vld [vmem:[#allocation6 + $0x118] sm:$0xff]
    %v874 = vld [vmem:[#allocation6 + $0x120] sm:$0xff]
    %v875 = vld [vmem:[#allocation6 + $0x128] sm:$0xff]
    %v876 = vld [vmem:[#allocation6 + $0x130] sm:$0xff]
    %v877 = vld [vmem:[#allocation6 + $0x138] sm:$0xff]
    %v878 = vld [vmem:[#allocation6 + $0x140] sm:$0xff]
    %v879 = vld [vmem:[#allocation6 + $0x148] sm:$0xff]
    %v880 = vld [vmem:[#allocation6 + $0x150] sm:$0xff]
    %v881 = vld [vmem:[#allocation6 + $0x158] sm:$0xff]
    %v882 = vld [vmem:[#allocation6 + $0x160] sm:$0xff]
    %v883 = vld [vmem:[#allocation6 + $0x168] sm:$0xff]
    %v884 = vld [vmem:[#allocation6 + $0x170] sm:$0xff]
    %v885 = vld [vmem:[#allocation6 + $0x178] sm:$0xff]
    %v886 = vld [vmem:[#allocation6 + $0x180] sm:$0xff]
    %v887 = vld [vmem:[#allocation6 + $0x188] sm:$0xff]
    %v888 = vld [vmem:[#allocation6 + $0x190] sm:$0xff]
    %v889 = vld [vmem:[#allocation6 + $0x198] sm:$0xff]
    %v890 = vld [vmem:[#allocation6 + $0x1a0] sm:$0xff]
    %v891 = vld [vmem:[#allocation6 + $0x1a8] sm:$0xff]
    %v892 = vld [vmem:[#allocation6 + $0x1b0] sm:$0xff]
    %v893 = vld [vmem:[#allocation6 + $0x1b8] sm:$0xff]
    %v894 = vld [vmem:[#allocation6 + $0x1c0] sm:$0xff]
    %v895 = vld [vmem:[#allocation6 + $0x1c8] sm:$0xff]
    %v896 = vld [vmem:[#allocation6 + $0x1d0] sm:$0xff]
    %v897 = vld [vmem:[#allocation6 + $0x1d8] sm:$0xff]
    %v898 = vld [vmem:[#allocation6 + $0x1e0] sm:$0xff]
    %v899 = vld [vmem:[#allocation6 + $0x1e8] sm:$0xff]
    %v900 = vld [vmem:[#allocation6 + $0x1f0] sm:$0xff]
    %v901 = vld [vmem:[#allocation6 + $0x1f8] sm:$0xff]
    %v902 = vld [vmem:[#allocation6 + $0x200] sm:$0xff]
    %v903 = vld [vmem:[#allocation6 + $0x208] sm:$0xff]
    %v904 = vld [vmem:[#allocation6 + $0x210] sm:$0xff]
    %v905 = vld [vmem:[#allocation6 + $0x218] sm:$0xff]
    %v906 = vld [vmem:[#allocation6 + $0x220] sm:$0xff]
    %v907 = vld [vmem:[#allocation6 + $0x228] sm:$0xff]
    %v908 = vld [vmem:[#allocation6 + $0x230] sm:$0xff]
    %v909 = vld [vmem:[#allocation6 + $0x238] sm:$0xff]
    %v910 = vld [vmem:[#allocation6 + $0x240] sm:$0xff]
    %v911 = vld [vmem:[#allocation6 + $0x248] sm:$0xff]
    %v912 = vld [vmem:[#allocation6 + $0x250] sm:$0xff]
    %v913 = vld [vmem:[#allocation6 + $0x258] sm:$0xff]
    %v914 = vld [vmem:[#allocation6 + $0x260] sm:$0xff]
    %v915 = vld [vmem:[#allocation6 + $0x268] sm:$0xff]
    %v916 = vld [vmem:[#allocation6 + $0x270] sm:$0xff]
    %v917 = vld [vmem:[#allocation6 + $0x278] sm:$0xff]
    %v918 = vld [vmem:[#allocation6 + $0x280] sm:$0xff]
    %v919 = vld [vmem:[#allocation6 + $0x288] sm:$0xff]
    %v920 = vld [vmem:[#allocation6 + $0x290] sm:$0xff]
    %v921 = vld [vmem:[#allocation6 + $0x298] sm:$0xff]
    %v922 = vld [vmem:[#allocation6 + $0x2a0] sm:$0xff]
    %v923 = vld [vmem:[#allocation6 + $0x2a8] sm:$0xff]
    %v924 = vld [vmem:[#allocation6 + $0x2b0] sm:$0xff]
    %v925 = vld [vmem:[#allocation6 + $0x2b8] sm:$0xff]
    %v926 = vld [vmem:[#allocation6 + $0x2c0] sm:$0xff]
    %v927 = vld [vmem:[#allocation6 + $0x2c8] sm:$0xff]
    %v928 = vld [vmem:[#allocation6 + $0x2d0] sm:$0xff]
    %v929 = vld [vmem:[#allocation6 + $0x2d8] sm:$0xff]
    %v930 = vld [vmem:[#allocation6 + $0x2e0] sm:$0xff]
    %v931 = vld [vmem:[#allocation6 + $0x2e8] sm:$0xff]
    %v932 = vld [vmem:[#allocation6 + $0x2f0] sm:$0xff]
    %v933 = vld [vmem:[#allocation6 + $0x2f8] sm:$0xff]
    %v934 = vld [vmem:[#allocation6 + $0x300] sm:$0xff]
    %v935 = vld [vmem:[#allocation6 + $0x308] sm:$0xff]
    %v936 = vld [vmem:[#allocation6 + $0x310] sm:$0xff]
    %v937 = vld [vmem:[#allocation6 + $0x318] sm:$0xff]
    %v938 = vld [vmem:[#allocation6 + $0x320] sm:$0xff]
    %v939 = vld [vmem:[#allocation6 + $0x328] sm:$0xff]
    %v940 = vld [vmem:[#allocation6 + $0x330] sm:$0xff]
    %v941 = vld [vmem:[#allocation6 + $0x338] sm:$0xff]
    %v942 = vld [vmem:[#allocation6 + $0x340] sm:$0xff]
    %v943 = vld [vmem:[#allocation6 + $0x348] sm:$0xff]
    %v944 = vld [vmem:[#allocation6 + $0x350] sm:$0xff]
    %v945 = vld [vmem:[#allocation6 + $0x358] sm:$0xff]
    %v946 = vld [vmem:[#allocation6 + $0x360] sm:$0xff]
    %v947 = vld [vmem:[#allocation6 + $0x368] sm:$0xff]
    %v948 = vld [vmem:[#allocation6 + $0x370] sm:$0xff]
    %v949 = vld [vmem:[#allocation6 + $0x378] sm:$0xff]
    %v950 = vld [vmem:[#allocation6 + $0x380] sm:$0xff]
    %v951 = vld [vmem:[#allocation6 + $0x388] sm:$0xff]
    %v952 = vld [vmem:[#allocation6 + $0x390] sm:$0xff]
    %v953 = vld [vmem:[#allocation6 + $0x398] sm:$0xff]
    %v954 = vld [vmem:[#allocation6 + $0x3a0] sm:$0xff]
    %v955 = vld [vmem:[#allocation6 + $0x3a8] sm:$0xff]
    %v956 = vld [vmem:[#allocation6 + $0x3b0] sm:$0xff]
    %v957 = vld [vmem:[#allocation6 + $0x3b8] sm:$0xff]
    %v958 = vld [vmem:[#allocation6 + $0x3c0] sm:$0xff]
    %v959 = vld [vmem:[#allocation6 + $0x3c8] sm:$0xff]
    %v960 = vld [vmem:[#allocation6 + $0x3d0] sm:$0xff]
    %v961 = vld [vmem:[#allocation6 + $0x3d8] sm:$0xff]
    %v962 = vld [vmem:[#allocation6 + $0x3e0] sm:$0xff]
    %v963 = vld [vmem:[#allocation6 + $0x3e8] sm:$0xff]
    %v964 = vld [vmem:[#allocation6 + $0x3f0] sm:$0xff]
    %v965 = vld [vmem:[#allocation6 + $0x3f8] sm:$0xff]
    %v966 = vld [vmem:[#allocation6 + $0x400] sm:$0xff]
    %v967 = vld [vmem:[#allocation6 + $0x408] sm:$0xff]
    %v968 = vld [vmem:[#allocation6 + $0x410] sm:$0xff]
    %v969 = vld [vmem:[#allocation6 + $0x418] sm:$0xff]
    %v970 = vld [vmem:[#allocation6 + $0x420] sm:$0xff]
    %v971 = vld [vmem:[#allocation6 + $0x428] sm:$0xff]
    %v972 = vld [vmem:[#allocation6 + $0x430] sm:$0xff]
    %v973 = vld [vmem:[#allocation6 + $0x438] sm:$0xff]
    %v974 = vld [vmem:[#allocation6 + $0x440] sm:$0xff]
    %v975 = vld [vmem:[#allocation6 + $0x448] sm:$0xff]
    %v976 = vld [vmem:[#allocation6 + $0x450] sm:$0xff]
    %v977 = vld [vmem:[#allocation6 + $0x458] sm:$0xff]
    %v978 = vld [vmem:[#allocation6 + $0x460] sm:$0xff]
    %v979 = vld [vmem:[#allocation6 + $0x468] sm:$0xff]
    %v980 = vld [vmem:[#allocation6 + $0x470] sm:$0xff]
    %v981 = vld [vmem:[#allocation6 + $0x478] sm:$0xff]
    %v982 = vld [vmem:[#allocation6 + $0x480] sm:$0xff]
    %v983 = vld [vmem:[#allocation6 + $0x488] sm:$0xff]
    %v984 = vld [vmem:[#allocation6 + $0x490] sm:$0xff]
    %v985 = vld [vmem:[#allocation6 + $0x498] sm:$0xff]
    %v986 = vld [vmem:[#allocation6 + $0x4a0] sm:$0xff]
    %v987 = vld [vmem:[#allocation6 + $0x4a8] sm:$0xff]
    %v988 = vld [vmem:[#allocation6 + $0x4b0] sm:$0xff]
    %v989 = vld [vmem:[#allocation6 + $0x4b8] sm:$0xff]
    %v990 = vld [vmem:[#allocation6 + $0x4c0] sm:$0xff]
    %v991 = vld [vmem:[#allocation6 + $0x4c8] sm:$0xff]
    %v992 = vld [vmem:[#allocation6 + $0x4d0] sm:$0xff]
    %v993 = vld [vmem:[#allocation6 + $0x4d8] sm:$0xff]
    %v994 = vld [vmem:[#allocation6 + $0x4e0] sm:$0xff]
    %v995 = vld [vmem:[#allocation6 + $0x4e8] sm:$0xff]
    %v996 = vld [vmem:[#allocation6 + $0x4f0] sm:$0xff]
    %v997 = vld [vmem:[#allocation6 + $0x4f8] sm:$0xff]
    %v998 = vld [vmem:[#allocation6 + $0x500] sm:$0xff]
    %v999 = vld [vmem:[#allocation6 + $0x508] sm:$0xff]
    %v1000 = vld [vmem:[#allocation6 + $0x510] sm:$0xff]
    %v1001 = vld [vmem:[#allocation6 + $0x518] sm:$0xff]
    %v1002 = vld [vmem:[#allocation6 + $0x520] sm:$0xff]
    %v1003 = vld [vmem:[#allocation6 + $0x528] sm:$0xff]
    %v1004 = vld [vmem:[#allocation6 + $0x530] sm:$0xff]
    %v1005 = vld [vmem:[#allocation6 + $0x538] sm:$0xff]
    %v1006 = vld [vmem:[#allocation6 + $0x540] sm:$0xff]
    %v1007 = vld [vmem:[#allocation6 + $0x548] sm:$0xff]
    %v1008 = vld [vmem:[#allocation6 + $0x550] sm:$0xff]
    %v1009 = vld [vmem:[#allocation6 + $0x558] sm:$0xff]
    %v1010 = vld [vmem:[#allocation6 + $0x560] sm:$0xff]
    %v1011 = vld [vmem:[#allocation6 + $0x568] sm:$0xff]
    %v1012 = vld [vmem:[#allocation6 + $0x570] sm:$0xff]
    %v1013 = vld [vmem:[#allocation6 + $0x578] sm:$0xff]
    %v1014 = vld [vmem:[#allocation6 + $0x580] sm:$0xff]
    %v1015 = vld [vmem:[#allocation6 + $0x588] sm:$0xff]
    %v1016 = vld [vmem:[#allocation6 + $0x590] sm:$0xff]
    %v1017 = vld [vmem:[#allocation6 + $0x598] sm:$0xff]
    %v1018 = vld [vmem:[#allocation6 + $0x5a0] sm:$0xff]
    %v1019 = vld [vmem:[#allocation6 + $0x5a8] sm:$0xff]
    %v1020 = vld [vmem:[#allocation6 + $0x5b0] sm:$0xff]
    %v1021 = vld [vmem:[#allocation6 + $0x5b8] sm:$0xff]
    %v1022 = vld [vmem:[#allocation6 + $0x5c0] sm:$0xff]
    %v1023 = vld [vmem:[#allocation6 + $0x5c8] sm:$0xff]
    %v1024 = vld [vmem:[#allocation6 + $0x5d0] sm:$0xff]
    %v1025 = vld [vmem:[#allocation6 + $0x5d8] sm:$0xff]
    %v1026 = vld [vmem:[#allocation6 + $0x5e0] sm:$0xff]
    %v1027 = vld [vmem:[#allocation6 + $0x5e8] sm:$0xff]
    %v1028 = vld [vmem:[#allocation6 + $0x5f0] sm:$0xff]
    %v1029 = vld [vmem:[#allocation6 + $0x5f8] sm:$0xff]
    %v1030 = vld [vmem:[#allocation6 + $0x600] sm:$0xff]
    %v1031 = vld [vmem:[#allocation6 + $0x608] sm:$0xff]
    %v1032 = vld [vmem:[#allocation6 + $0x610] sm:$0xff]
    %v1033 = vld [vmem:[#allocation6 + $0x618] sm:$0xff]
    %v1034 = vld [vmem:[#allocation6 + $0x620] sm:$0xff]
    %v1035 = vld [vmem:[#allocation6 + $0x628] sm:$0xff]
    %v1036 = vld [vmem:[#allocation6 + $0x630] sm:$0xff]
    %v1037 = vld [vmem:[#allocation6 + $0x638] sm:$0xff]
    %v1038 = vld [vmem:[#allocation6 + $0x640] sm:$0xff]
    %v1039 = vld [vmem:[#allocation6 + $0x648] sm:$0xff]
    %v1040 = vld [vmem:[#allocation6 + $0x650] sm:$0xff]
    %v1041 = vld [vmem:[#allocation6 + $0x658] sm:$0xff]
    %v1042 = vld [vmem:[#allocation6 + $0x660] sm:$0xff]
    %v1043 = vld [vmem:[#allocation6 + $0x668] sm:$0xff]
    %v1044 = vld [vmem:[#allocation6 + $0x670] sm:$0xff]
    %v1045 = vld [vmem:[#allocation6 + $0x678] sm:$0xff]
    %v1046 = vld [vmem:[#allocation6 + $0x680] sm:$0xff]
    %v1047 = vld [vmem:[#allocation6 + $0x688] sm:$0xff]
    %v1048 = vld [vmem:[#allocation6 + $0x690] sm:$0xff]
    %v1049 = vld [vmem:[#allocation6 + $0x698] sm:$0xff]
    %v1050 = vld [vmem:[#allocation6 + $0x6a0] sm:$0xff]
    %v1051 = vld [vmem:[#allocation6 + $0x6a8] sm:$0xff]
    %v1052 = vld [vmem:[#allocation6 + $0x6b0] sm:$0xff]
    %v1053 = vld [vmem:[#allocation6 + $0x6b8] sm:$0xff]
    %v1054 = vld [vmem:[#allocation6 + $0x6c0] sm:$0xff]
    %v1055 = vld [vmem:[#allocation6 + $0x6c8] sm:$0xff]
    %v1056 = vld [vmem:[#allocation6 + $0x6d0] sm:$0xff]
    %v1057 = vld [vmem:[#allocation6 + $0x6d8] sm:$0xff]
    %v1058 = vld [vmem:[#allocation6 + $0x6e0] sm:$0xff]
    %v1059 = vld [vmem:[#allocation6 + $0x6e8] sm:$0xff]
    %v1060 = vld [vmem:[#allocation6 + $0x6f0] sm:$0xff]
    %v1061 = vld [vmem:[#allocation6 + $0x6f8] sm:$0xff]
    %v1062 = vld [vmem:[#allocation6 + $0x700] sm:$0xff]
    %v1063 = vld [vmem:[#allocation6 + $0x708] sm:$0xff]
    %v1064 = vld [vmem:[#allocation6 + $0x710] sm:$0xff]
    %v1065 = vld [vmem:[#allocation6 + $0x718] sm:$0xff]
    %v1066 = vld [vmem:[#allocation6 + $0x720] sm:$0xff]
    %v1067 = vld [vmem:[#allocation6 + $0x728] sm:$0xff]
    %v1068 = vld [vmem:[#allocation6 + $0x730] sm:$0xff]
    %v1069 = vld [vmem:[#allocation6 + $0x738] sm:$0xff]
    %v1070 = vld [vmem:[#allocation6 + $0x740] sm:$0xff]
    %v1071 = vld [vmem:[#allocation6 + $0x748] sm:$0xff]
    %v1072 = vld [vmem:[#allocation6 + $0x750] sm:$0xff]
    %v1073 = vld [vmem:[#allocation6 + $0x758] sm:$0xff]
    %v1074 = vld [vmem:[#allocation6 + $0x760] sm:$0xff]
    %v1075 = vld [vmem:[#allocation6 + $0x768] sm:$0xff]
    %v1076 = vld [vmem:[#allocation6 + $0x770] sm:$0xff]
    %v1077 = vld [vmem:[#allocation6 + $0x778] sm:$0xff]
    %v1078 = vld [vmem:[#allocation6 + $0x780] sm:$0xff]
    %v1079 = vld [vmem:[#allocation6 + $0x788] sm:$0xff]
    %v1080 = vld [vmem:[#allocation6 + $0x790] sm:$0xff]
    %v1081 = vld [vmem:[#allocation6 + $0x798] sm:$0xff]
    %v1082 = vld [vmem:[#allocation6 + $0x7a0] sm:$0xff]
    %v1083 = vld [vmem:[#allocation6 + $0x7a8] sm:$0xff]
    %v1084 = vld [vmem:[#allocation6 + $0x7b0] sm:$0xff]
    %v1085 = vld [vmem:[#allocation6 + $0x7b8] sm:$0xff]
    %v1086 = vld [vmem:[#allocation6 + $0x7c0] sm:$0xff]
    %v1087 = vld [vmem:[#allocation6 + $0x7c8] sm:$0xff]
    %v1088 = vld [vmem:[#allocation6 + $0x7d0] sm:$0xff]
    %v1089 = vld [vmem:[#allocation6 + $0x7d8] sm:$0xff]
    %v1090 = vld [vmem:[#allocation6 + $0x7e0] sm:$0xff]
    %v1091 = vld [vmem:[#allocation6 + $0x7e8] sm:$0xff]
    %v1092 = vld [vmem:[#allocation6 + $0x7f0] sm:$0xff]
    %v1093 = vld [vmem:[#allocation6 + $0x7f8] sm:$0xff]
    %v1094 = vsub.f32 %v582, %v838
    %v1095 = vsub.f32 %v583, %v839
    %v1096 = vsub.f32 %v584, %v840
    %v1097 = vsub.f32 %v585, %v841
    %v1098 = vsub.f32 %v586, %v842
    %v1099 = vsub.f32 %v587, %v843
    %v1100 = vsub.f32 %v588, %v844
    %v1101 = vsub.f32 %v589, %v845
    %v1102 = vsub.f32 %v590, %v846
    %v1103 = vsub.f32 %v591, %v847
    %v1104 = vsub.f32 %v592, %v848
    %v1105 = vsub.f32 %v593, %v849
    %v1106 = vsub.f32 %v594, %v850
    %v1107 = vsub.f32 %v595, %v851
    %v1108 = vsub.f32 %v596, %v852
    %v1109 = vsub.f32 %v597, %v853
    %v1110 = vsub.f32 %v598, %v854
    %v1111 = vsub.f32 %v599, %v855
    %v1112 = vsub.f32 %v600, %v856
    %v1113 = vsub.f32 %v601, %v857
    %v1114 = vsub.f32 %v602, %v858
    %v1115 = vsub.f32 %v603, %v859
    %v1116 = vsub.f32 %v604, %v860
    %v1117 = vsub.f32 %v605, %v861
    %v1118 = vsub.f32 %v606, %v862
    %v1119 = vsub.f32 %v607, %v863
    %v1120 = vsub.f32 %v608, %v864
    %v1121 = vsub.f32 %v609, %v865
    %v1122 = vsub.f32 %v610, %v866
    %v1123 = vsub.f32 %v611, %v867
    %v1124 = vsub.f32 %v612, %v868
    %v1125 = vsub.f32 %v613, %v869
    %v1126 = vsub.f32 %v614, %v870
    %v1127 = vsub.f32 %v615, %v871
    %v1128 = vsub.f32 %v616, %v872
    %v1129 = vsub.f32 %v617, %v873
    %v1130 = vsub.f32 %v618, %v874
    %v1131 = vsub.f32 %v619, %v875
    %v1132 = vsub.f32 %v620, %v876
    %v1133 = vsub.f32 %v621, %v877
    %v1134 = vsub.f32 %v622, %v878
    %v1135 = vsub.f32 %v623, %v879
    %v1136 = vsub.f32 %v624, %v880
    %v1137 = vsub.f32 %v625, %v881
    %v1138 = vsub.f32 %v626, %v882
    %v1139 = vsub.f32 %v627, %v883
    %v1140 = vsub.f32 %v628, %v884
    %v1141 = vsub.f32 %v629, %v885
    %v1142 = vsub.f32 %v630, %v886
    %v1143 = vsub.f32 %v631, %v887
    %v1144 = vsub.f32 %v632, %v888
    %v1145 = vsub.f32 %v633, %v889
    %v1146 = vsub.f32 %v634, %v890
    %v1147 = vsub.f32 %v635, %v891
    %v1148 = vsub.f32 %v636, %v892
    %v1149 = vsub.f32 %v637, %v893
    %v1150 = vsub.f32 %v638, %v894
    %v1151 = vsub.f32 %v639, %v895
    %v1152 = vsub.f32 %v640, %v896
    %v1153 = vsub.f32 %v641, %v897
    %v1154 = vsub.f32 %v642, %v898
    %v1155 = vsub.f32 %v643, %v899
    %v1156 = vsub.f32 %v644, %v900
    %v1157 = vsub.f32 %v645, %v901
    %v1158 = vsub.f32 %v646, %v902
    %v1159 = vsub.f32 %v647, %v903
    %v1160 = vsub.f32 %v648, %v904
    %v1161 = vsub.f32 %v649, %v905
    %v1162 = vsub.f32 %v650, %v906
    %v1163 = vsub.f32 %v651, %v907
    %v1164 = vsub.f32 %v652, %v908
    %v1165 = vsub.f32 %v653, %v909
    %v1166 = vsub.f32 %v654, %v910
    %v1167 = vsub.f32 %v655, %v911
    %v1168 = vsub.f32 %v656, %v912
    %v1169 = vsub.f32 %v657, %v913
    %v1170 = vsub.f32 %v658, %v914
    %v1171 = vsub.f32 %v659, %v915
    %v1172 = vsub.f32 %v660, %v916
    %v1173 = vsub.f32 %v661, %v917
    %v1174 = vsub.f32 %v662, %v918
    %v1175 = vsub.f32 %v663, %v919
    %v1176 = vsub.f32 %v664, %v920
    %v1177 = vsub.f32 %v665, %v921
    %v1178 = vsub.f32 %v666, %v922
    %v1179 = vsub.f32 %v667, %v923
    %v1180 = vsub.f32 %v668, %v924
    %v1181 = vsub.f32 %v669, %v925
    %v1182 = vsub.f32 %v670, %v926
    %v1183 = vsub.f32 %v671, %v927
    %v1184 = vsub.f32 %v672, %v928
    %v1185 = vsub.f32 %v673, %v929
    %v1186 = vsub.f32 %v674, %v930
    %v1187 = vsub.f32 %v675, %v931
    %v1188 = vsub.f32 %v676, %v932
    %v1189 = vsub.f32 %v677, %v933
    %v1190 = vsub.f32 %v678, %v934
    %v1191 = vsub.f32 %v679, %v935
    %v1192 = vsub.f32 %v680, %v936
    %v1193 = vsub.f32 %v681, %v937
    %v1194 = vsub.f32 %v682, %v938
    %v1195 = vsub.f32 %v683, %v939
    %v1196 = vsub.f32 %v684, %v940
    %v1197 = vsub.f32 %v685, %v941
    %v1198 = vsub.f32 %v686, %v942
    %v1199 = vsub.f32 %v687, %v943
    %v1200 = vsub.f32 %v688, %v944
    %v1201 = vsub.f32 %v689, %v945
    %v1202 = vsub.f32 %v690, %v946
    %v1203 = vsub.f32 %v691, %v947
    %v1204 = vsub.f32 %v692, %v948
    %v1205 = vsub.f32 %v693, %v949
    %v1206 = vsub.f32 %v694, %v950
    %v1207 = vsub.f32 %v695, %v951
    %v1208 = vsub.f32 %v696, %v952
    %v1209 = vsub.f32 %v697, %v953
    %v1210 = vsub.f32 %v698, %v954
    %v1211 = vsub.f32 %v699, %v955
    %v1212 = vsub.f32 %v700, %v956
    %v1213 = vsub.f32 %v701, %v957
    %v1214 = vsub.f32 %v702, %v958
    %v1215 = vsub.f32 %v703, %v959
    %v1216 = vsub.f32 %v704, %v960
    %v1217 = vsub.f32 %v705, %v961
    %v1218 = vsub.f32 %v706, %v962
    %v1219 = vsub.f32 %v707, %v963
    %v1220 = vsub.f32 %v708, %v964
    %v1221 = vsub.f32 %v709, %v965
    %v1222 = vsub.f32 %v710, %v966
    %v1223 = vsub.f32 %v711, %v967
    %v1224 = vsub.f32 %v712, %v968
    %v1225 = vsub.f32 %v713, %v969
    %v1226 = vsub.f32 %v714, %v970
    %v1227 = vsub.f32 %v715, %v971
    %v1228 = vsub.f32 %v716, %v972
    %v1229 = vsub.f32 %v717, %v973
    %v1230 = vsub.f32 %v718, %v974
    %v1231 = vsub.f32 %v719, %v975
    %v1232 = vsub.f32 %v720, %v976
    %v1233 = vsub.f32 %v721, %v977
    %v1234 = vsub.f32 %v722, %v978
    %v1235 = vsub.f32 %v723, %v979
    %v1236 = vsub.f32 %v724, %v980
    %v1237 = vsub.f32 %v725, %v981
    %v1238 = vsub.f32 %v726, %v982
    %v1239 = vsub.f32 %v727, %v983
    %v1240 = vsub.f32 %v728, %v984
    %v1241 = vsub.f32 %v729, %v985
    %v1242 = vsub.f32 %v730, %v986
    %v1243 = vsub.f32 %v731, %v987
    %v1244 = vsub.f32 %v732, %v988
    %v1245 = vsub.f32 %v733, %v989
    %v1246 = vsub.f32 %v734, %v990
    %v1247 = vsub.f32 %v735, %v991
    %v1248 = vsub.f32 %v736, %v992
    %v1249 = vsub.f32 %v737, %v993
    %v1250 = vsub.f32 %v738, %v994
    %v1251 = vsub.f32 %v739, %v995
    %v1252 = vsub.f32 %v740, %v996
    %v1253 = vsub.f32 %v741, %v997
    %v1254 = vsub.f32 %v742, %v998
    %v1255 = vsub.f32 %v743, %v999
    %v1256 = vsub.f32 %v744, %v1000
    %v1257 = vsub.f32 %v745, %v1001
    %v1258 = vsub.f32 %v746, %v1002
    %v1259 = vsub.f32 %v747, %v1003
    %v1260 = vsub.f32 %v748, %v1004
    %v1261 = vsub.f32 %v749, %v1005
    %v1262 = vsub.f32 %v750, %v1006
    %v1263 = vsub.f32 %v751, %v1007
    %v1264 = vsub.f32 %v752, %v1008
    %v1265 = vsub.f32 %v753, %v1009
    %v1266 = vsub.f32 %v754, %v1010
    %v1267 = vsub.f32 %v755, %v1011
    %v1268 = vsub.f32 %v756, %v1012
    %v1269 = vsub.f32 %v757, %v1013
    %v1270 = vsub.f32 %v758, %v1014
    %v1271 = vsub.f32 %v759, %v1015
    %v1272 = vsub.f32 %v760, %v1016
    %v1273 = vsub.f32 %v761, %v1017
    %v1274 = vsub.f32 %v762, %v1018
    %v1275 = vsub.f32 %v763, %v1019
    %v1276 = vsub.f32 %v764, %v1020
    %v1277 = vsub.f32 %v765, %v1021
    %v1278 = vsub.f32 %v766, %v1022
    %v1279 = vsub.f32 %v767, %v1023
    %v1280 = vsub.f32 %v768, %v1024
    %v1281 = vsub.f32 %v769, %v1025
    %v1282 = vsub.f32 %v770, %v1026
    %v1283 = vsub.f32 %v771, %v1027
    %v1284 = vsub.f32 %v772, %v1028
    %v1285 = vsub.f32 %v773, %v1029
    %v1286 = vsub.f32 %v774, %v1030
    %v1287 = vsub.f32 %v775, %v1031
    %v1288 = vsub.f32 %v776, %v1032
    %v1289 = vsub.f32 %v777, %v1033
    %v1290 = vsub.f32 %v778, %v1034
    %v1291 = vsub.f32 %v779, %v1035
    %v1292 = vsub.f32 %v780, %v1036
    %v1293 = vsub.f32 %v781, %v1037
    %v1294 = vsub.f32 %v782, %v1038
    %v1295 = vsub.f32 %v783, %v1039
    %v1296 = vsub.f32 %v784, %v1040
    %v1297 = vsub.f32 %v785, %v1041
    %v1298 = vsub.f32 %v786, %v1042
    %v1299 = vsub.f32 %v787, %v1043
    %v1300 = vsub.f32 %v788, %v1044
    %v1301 = vsub.f32 %v789, %v1045
    %v1302 = vsub.f32 %v790, %v1046
    %v1303 = vsub.f32 %v791, %v1047
    %v1304 = vsub.f32 %v792, %v1048
    %v1305 = vsub.f32 %v793, %v1049
    %v1306 = vsub.f32 %v794, %v1050
    %v1307 = vsub.f32 %v795, %v1051
    %v1308 = vsub.f32 %v796, %v1052
    %v1309 = vsub.f32 %v797, %v1053
    %v1310 = vsub.f32 %v798, %v1054
    %v1311 = vsub.f32 %v799, %v1055
    %v1312 = vsub.f32 %v800, %v1056
    %v1313 = vsub.f32 %v801, %v1057
    %v1314 = vsub.f32 %v802, %v1058
    %v1315 = vsub.f32 %v803, %v1059
    %v1316 = vsub.f32 %v804, %v1060
    %v1317 = vsub.f32 %v805, %v1061
    %v1318 = vsub.f32 %v806, %v1062
    %v1319 = vsub.f32 %v807, %v1063
    %v1320 = vsub.f32 %v808, %v1064
    %v1321 = vsub.f32 %v809, %v1065
    %v1322 = vsub.f32 %v810, %v1066
    %v1323 = vsub.f32 %v811, %v1067
    %v1324 = vsub.f32 %v812, %v1068
    %v1325 = vsub.f32 %v813, %v1069
    %v1326 = vsub.f32 %v814, %v1070
    %v1327 = vsub.f32 %v815, %v1071
    %v1328 = vsub.f32 %v816, %v1072
    %v1329 = vsub.f32 %v817, %v1073
    %v1330 = vsub.f32 %v818, %v1074
    %v1331 = vsub.f32 %v819, %v1075
    %v1332 = vsub.f32 %v820, %v1076
    %v1333 = vsub.f32 %v821, %v1077
    %v1334 = vsub.f32 %v822, %v1078
    %v1335 = vsub.f32 %v823, %v1079
    %v1336 = vsub.f32 %v824, %v1080
    %v1337 = vsub.f32 %v825, %v1081
    %v1338 = vsub.f32 %v826, %v1082
    %v1339 = vsub.f32 %v827, %v1083
    %v1340 = vsub.f32 %v828, %v1084
    %v1341 = vsub.f32 %v829, %v1085
    %v1342 = vsub.f32 %v830, %v1086
    %v1343 = vsub.f32 %v831, %v1087
    %v1344 = vsub.f32 %v832, %v1088
    %v1345 = vsub.f32 %v833, %v1089
    %v1346 = vsub.f32 %v834, %v1090
    %v1347 = vsub.f32 %v835, %v1091
    %v1348 = vsub.f32 %v836, %v1092
    %v1349 = vsub.f32 %v837, %v1093
    %v1350 = vmul.f32 %v1094, %v1094
    %v1351 = vmul.f32 %v1095, %v1095
    %v1352 = vmul.f32 %v1096, %v1096
    %v1353 = vmul.f32 %v1097, %v1097
    %v1354 = vmul.f32 %v1098, %v1098
    %v1355 = vmul.f32 %v1099, %v1099
    %v1356 = vmul.f32 %v1100, %v1100
    %v1357 = vmul.f32 %v1101, %v1101
    %v1358 = vmul.f32 %v1102, %v1102
    %v1359 = vmul.f32 %v1103, %v1103
    %v1360 = vmul.f32 %v1104, %v1104
    %v1361 = vmul.f32 %v1105, %v1105
    %v1362 = vmul.f32 %v1106, %v1106
    %v1363 = vmul.f32 %v1107, %v1107
    %v1364 = vmul.f32 %v1108, %v1108
    %v1365 = vmul.f32 %v1109, %v1109
    %v1366 = vmul.f32 %v1110, %v1110
    %v1367 = vmul.f32 %v1111, %v1111
    %v1368 = vmul.f32 %v1112, %v1112
    %v1369 = vmul.f32 %v1113, %v1113
    %v1370 = vmul.f32 %v1114, %v1114
    %v1371 = vmul.f32 %v1115, %v1115
    %v1372 = vmul.f32 %v1116, %v1116
    %v1373 = vmul.f32 %v1117, %v1117
    %v1374 = vmul.f32 %v1118, %v1118
    %v1375 = vmul.f32 %v1119, %v1119
    %v1376 = vmul.f32 %v1120, %v1120
    %v1377 = vmul.f32 %v1121, %v1121
    %v1378 = vmul.f32 %v1122, %v1122
    %v1379 = vmul.f32 %v1123, %v1123
    %v1380 = vmul.f32 %v1124, %v1124
    %v1381 = vmul.f32 %v1125, %v1125
    %v1382 = vmul.f32 %v1126, %v1126
    %v1383 = vmul.f32 %v1127, %v1127
    %v1384 = vmul.f32 %v1128, %v1128
    %v1385 = vmul.f32 %v1129, %v1129
    %v1386 = vmul.f32 %v1130, %v1130
    %v1387 = vmul.f32 %v1131, %v1131
    %v1388 = vmul.f32 %v1132, %v1132
    %v1389 = vmul.f32 %v1133, %v1133
    %v1390 = vmul.f32 %v1134, %v1134
    %v1391 = vmul.f32 %v1135, %v1135
    %v1392 = vmul.f32 %v1136, %v1136
    %v1393 = vmul.f32 %v1137, %v1137
    %v1394 = vmul.f32 %v1138, %v1138
    %v1395 = vmul.f32 %v1139, %v1139
    %v1396 = vmul.f32 %v1140, %v1140
    %v1397 = vmul.f32 %v1141, %v1141
    %v1398 = vmul.f32 %v1142, %v1142
    %v1399 = vmul.f32 %v1143, %v1143
    %v1400 = vmul.f32 %v1144, %v1144
    %v1401 = vmul.f32 %v1145, %v1145
    %v1402 = vmul.f32 %v1146, %v1146
    %v1403 = vmul.f32 %v1147, %v1147
    %v1404 = vmul.f32 %v1148, %v1148
    %v1405 = vmul.f32 %v1149, %v1149
    %v1406 = vmul.f32 %v1150, %v1150
    %v1407 = vmul.f32 %v1151, %v1151
    %v1408 = vmul.f32 %v1152, %v1152
    %v1409 = vmul.f32 %v1153, %v1153
    %v1410 = vmul.f32 %v1154, %v1154
    %v1411 = vmul.f32 %v1155, %v1155
    %v1412 = vmul.f32 %v1156, %v1156
    %v1413 = vmul.f32 %v1157, %v1157
    %v1414 = vmul.f32 %v1158, %v1158
    %v1415 = vmul.f32 %v1159, %v1159
    %v1416 = vmul.f32 %v1160, %v1160
    %v1417 = vmul.f32 %v1161, %v1161
    %v1418 = vmul.f32 %v1162, %v1162
    %v1419 = vmul.f32 %v1163, %v1163
    %v1420 = vmul.f32 %v1164, %v1164
    %v1421 = vmul.f32 %v1165, %v1165
    %v1422 = vmul.f32 %v1166, %v1166
    %v1423 = vmul.f32 %v1167, %v1167
    %v1424 = vmul.f32 %v1168, %v1168
    %v1425 = vmul.f32 %v1169, %v1169
    %v1426 = vmul.f32 %v1170, %v1170
    %v1427 = vmul.f32 %v1171, %v1171
    %v1428 = vmul.f32 %v1172, %v1172
    %v1429 = vmul.f32 %v1173, %v1173
    %v1430 = vmul.f32 %v1174, %v1174
    %v1431 = vmul.f32 %v1175, %v1175
    %v1432 = vmul.f32 %v1176, %v1176
    %v1433 = vmul.f32 %v1177, %v1177
    %v1434 = vmul.f32 %v1178, %v1178
    %v1435 = vmul.f32 %v1179, %v1179
    %v1436 = vmul.f32 %v1180, %v1180
    %v1437 = vmul.f32 %v1181, %v1181
    %v1438 = vmul.f32 %v1182, %v1182
    %v1439 = vmul.f32 %v1183, %v1183
    %v1440 = vmul.f32 %v1184, %v1184
    %v1441 = vmul.f32 %v1185, %v1185
    %v1442 = vmul.f32 %v1186, %v1186
    %v1443 = vmul.f32 %v1187, %v1187
    %v1444 = vmul.f32 %v1188, %v1188
    %v1445 = vmul.f32 %v1189, %v1189
    %v1446 = vmul.f32 %v1190, %v1190
    %v1447 = vmul.f32 %v1191, %v1191
    %v1448 = vmul.f32 %v1192, %v1192
    %v1449 = vmul.f32 %v1193, %v1193
    %v1450 = vmul.f32 %v1194, %v1194
    %v1451 = vmul.f32 %v1195, %v1195
    %v1452 = vmul.f32 %v1196, %v1196
    %v1453 = vmul.f32 %v1197, %v1197
    %v1454 = vmul.f32 %v1198, %v1198
    %v1455 = vmul.f32 %v1199, %v1199
    %v1456 = vmul.f32 %v1200, %v1200
    %v1457 = vmul.f32 %v1201, %v1201
    %v1458 = vmul.f32 %v1202, %v1202
    %v1459 = vmul.f32 %v1203, %v1203
    %v1460 = vmul.f32 %v1204, %v1204
    %v1461 = vmul.f32 %v1205, %v1205
    %v1462 = vmul.f32 %v1206, %v1206
    %v1463 = vmul.f32 %v1207, %v1207
    %v1464 = vmul.f32 %v1208, %v1208
    %v1465 = vmul.f32 %v1209, %v1209
    %v1466 = vmul.f32 %v1210, %v1210
    %v1467 = vmul.f32 %v1211, %v1211
    %v1468 = vmul.f32 %v1212, %v1212
    %v1469 = vmul.f32 %v1213, %v1213
    %v1470 = vmul.f32 %v1214, %v1214
    %v1471 = vmul.f32 %v1215, %v1215
    %v1472 = vmul.f32 %v1216, %v1216
    %v1473 = vmul.f32 %v1217, %v1217
    %v1474 = vmul.f32 %v1218, %v1218
    %v1475 = vmul.f32 %v1219, %v1219
    %v1476 = vmul.f32 %v1220, %v1220
    %v1477 = vmul.f32 %v1221, %v1221
    %v1478 = vmul.f32 %v1222, %v1222
    %v1479 = vmul.f32 %v1223, %v1223
    %v1480 = vmul.f32 %v1224, %v1224
    %v1481 = vmul.f32 %v1225, %v1225
    %v1482 = vmul.f32 %v1226, %v1226
    %v1483 = vmul.f32 %v1227, %v1227
    %v1484 = vmul.f32 %v1228, %v1228
    %v1485 = vmul.f32 %v1229, %v1229
    %v1486 = vmul.f32 %v1230, %v1230
    %v1487 = vmul.f32 %v1231, %v1231
    %v1488 = vmul.f32 %v1232, %v1232
    %v1489 = vmul.f32 %v1233, %v1233
    %v1490 = vmul.f32 %v1234, %v1234
    %v1491 = vmul.f32 %v1235, %v1235
    %v1492 = vmul.f32 %v1236, %v1236
    %v1493 = vmul.f32 %v1237, %v1237
    %v1494 = vmul.f32 %v1238, %v1238
    %v1495 = vmul.f32 %v1239, %v1239
    %v1496 = vmul.f32 %v1240, %v1240
    %v1497 = vmul.f32 %v1241, %v1241
    %v1498 = vmul.f32 %v1242, %v1242
    %v1499 = vmul.f32 %v1243, %v1243
    %v1500 = vmul.f32 %v1244, %v1244
    %v1501 = vmul.f32 %v1245, %v1245
    %v1502 = vmul.f32 %v1246, %v1246
    %v1503 = vmul.f32 %v1247, %v1247
    %v1504 = vmul.f32 %v1248, %v1248
    %v1505 = vmul.f32 %v1249, %v1249
    %v1506 = vmul.f32 %v1250, %v1250
    %v1507 = vmul.f32 %v1251, %v1251
    %v1508 = vmul.f32 %v1252, %v1252
    %v1509 = vmul.f32 %v1253, %v1253
    %v1510 = vmul.f32 %v1254, %v1254
    %v1511 = vmul.f32 %v1255, %v1255
    %v1512 = vmul.f32 %v1256, %v1256
    %v1513 = vmul.f32 %v1257, %v1257
    %v1514 = vmul.f32 %v1258, %v1258
    %v1515 = vmul.f32 %v1259, %v1259
    %v1516 = vmul.f32 %v1260, %v1260
    %v1517 = vmul.f32 %v1261, %v1261
    %v1518 = vmul.f32 %v1262, %v1262
    %v1519 = vmul.f32 %v1263, %v1263
    %v1520 = vmul.f32 %v1264, %v1264
    %v1521 = vmul.f32 %v1265, %v1265
    %v1522 = vmul.f32 %v1266, %v1266
    %v1523 = vmul.f32 %v1267, %v1267
    %v1524 = vmul.f32 %v1268, %v1268
    %v1525 = vmul.f32 %v1269, %v1269
    %v1526 = vmul.f32 %v1270, %v1270
    %v1527 = vmul.f32 %v1271, %v1271
    %v1528 = vmul.f32 %v1272, %v1272
    %v1529 = vmul.f32 %v1273, %v1273
    %v1530 = vmul.f32 %v1274, %v1274
    %v1531 = vmul.f32 %v1275, %v1275
    %v1532 = vmul.f32 %v1276, %v1276
    %v1533 = vmul.f32 %v1277, %v1277
    %v1534 = vmul.f32 %v1278, %v1278
    %v1535 = vmul.f32 %v1279, %v1279
    %v1536 = vmul.f32 %v1280, %v1280
    %v1537 = vmul.f32 %v1281, %v1281
    %v1538 = vmul.f32 %v1282, %v1282
    %v1539 = vmul.f32 %v1283, %v1283
    %v1540 = vmul.f32 %v1284, %v1284
    %v1541 = vmul.f32 %v1285, %v1285
    %v1542 = vmul.f32 %v1286, %v1286
    %v1543 = vmul.f32 %v1287, %v1287
    %v1544 = vmul.f32 %v1288, %v1288
    %v1545 = vmul.f32 %v1289, %v1289
    %v1546 = vmul.f32 %v1290, %v1290
    %v1547 = vmul.f32 %v1291, %v1291
    %v1548 = vmul.f32 %v1292, %v1292
    %v1549 = vmul.f32 %v1293, %v1293
    %v1550 = vmul.f32 %v1294, %v1294
    %v1551 = vmul.f32 %v1295, %v1295
    %v1552 = vmul.f32 %v1296, %v1296
    %v1553 = vmul.f32 %v1297, %v1297
    %v1554 = vmul.f32 %v1298, %v1298
    %v1555 = vmul.f32 %v1299, %v1299
    %v1556 = vmul.f32 %v1300, %v1300
    %v1557 = vmul.f32 %v1301, %v1301
    %v1558 = vmul.f32 %v1302, %v1302
    %v1559 = vmul.f32 %v1303, %v1303
    %v1560 = vmul.f32 %v1304, %v1304
    %v1561 = vmul.f32 %v1305, %v1305
    %v1562 = vmul.f32 %v1306, %v1306
    %v1563 = vmul.f32 %v1307, %v1307
    %v1564 = vmul.f32 %v1308, %v1308
    %v1565 = vmul.f32 %v1309, %v1309
    %v1566 = vmul.f32 %v1310, %v1310
    %v1567 = vmul.f32 %v1311, %v1311
    %v1568 = vmul.f32 %v1312, %v1312
    %v1569 = vmul.f32 %v1313, %v1313
    %v1570 = vmul.f32 %v1314, %v1314
    %v1571 = vmul.f32 %v1315, %v1315
    %v1572 = vmul.f32 %v1316, %v1316
    %v1573 = vmul.f32 %v1317, %v1317
    %v1574 = vmul.f32 %v1318, %v1318
    %v1575 = vmul.f32 %v1319, %v1319
    %v1576 = vmul.f32 %v1320, %v1320
    %v1577 = vmul.f32 %v1321, %v1321
    %v1578 = vmul.f32 %v1322, %v1322
    %v1579 = vmul.f32 %v1323, %v1323
    %v1580 = vmul.f32 %v1324, %v1324
    %v1581 = vmul.f32 %v1325, %v1325
    %v1582 = vmul.f32 %v1326, %v1326
    %v1583 = vmul.f32 %v1327, %v1327
    %v1584 = vmul.f32 %v1328, %v1328
    %v1585 = vmul.f32 %v1329, %v1329
    %v1586 = vmul.f32 %v1330, %v1330
    %v1587 = vmul.f32 %v1331, %v1331
    %v1588 = vmul.f32 %v1332, %v1332
    %v1589 = vmul.f32 %v1333, %v1333
    %v1590 = vmul.f32 %v1334, %v1334
    %v1591 = vmul.f32 %v1335, %v1335
    %v1592 = vmul.f32 %v1336, %v1336
    %v1593 = vmul.f32 %v1337, %v1337
    %v1594 = vmul.f32 %v1338, %v1338
    %v1595 = vmul.f32 %v1339, %v1339
    %v1596 = vmul.f32 %v1340, %v1340
    %v1597 = vmul.f32 %v1341, %v1341
    %v1598 = vmul.f32 %v1342, %v1342
    %v1599 = vmul.f32 %v1343, %v1343
    %v1600 = vmul.f32 %v1344, %v1344
    %v1601 = vmul.f32 %v1345, %v1345
    %v1602 = vmul.f32 %v1346, %v1346
    %v1603 = vmul.f32 %v1347, %v1347
    %v1604 = vmul.f32 %v1348, %v1348
    %v1605 = vmul.f32 %v1349, %v1349
    %v1606 = vadd.f32 %v326, %v1350
    %v1607 = vadd.f32 %v327, %v1351
    %v1608 = vadd.f32 %v328, %v1352
    %v1609 = vadd.f32 %v329, %v1353
    %v1610 = vadd.f32 %v330, %v1354
    %v1611 = vadd.f32 %v331, %v1355
    %v1612 = vadd.f32 %v332, %v1356
    %v1613 = vadd.f32 %v333, %v1357
    %v1614 = vadd.f32 %v334, %v1358
    %v1615 = vadd.f32 %v335, %v1359
    %v1616 = vadd.f32 %v336, %v1360
    %v1617 = vadd.f32 %v337, %v1361
    %v1618 = vadd.f32 %v338, %v1362
    %v1619 = vadd.f32 %v339, %v1363
    %v1620 = vadd.f32 %v340, %v1364
    %v1621 = vadd.f32 %v341, %v1365
    %v1622 = vadd.f32 %v342, %v1366
    %v1623 = vadd.f32 %v343, %v1367
    %v1624 = vadd.f32 %v344, %v1368
    %v1625 = vadd.f32 %v345, %v1369
    %v1626 = vadd.f32 %v346, %v1370
    %v1627 = vadd.f32 %v347, %v1371
    %v1628 = vadd.f32 %v348, %v1372
    %v1629 = vadd.f32 %v349, %v1373
    %v1630 = vadd.f32 %v350, %v1374
    %v1631 = vadd.f32 %v351, %v1375
    %v1632 = vadd.f32 %v352, %v1376
    %v1633 = vadd.f32 %v353, %v1377
    %v1634 = vadd.f32 %v354, %v1378
    %v1635 = vadd.f32 %v355, %v1379
    %v1636 = vadd.f32 %v356, %v1380
    %v1637 = vadd.f32 %v357, %v1381
    %v1638 = vadd.f32 %v358, %v1382
    %v1639 = vadd.f32 %v359, %v1383
    %v1640 = vadd.f32 %v360, %v1384
    %v1641 = vadd.f32 %v361, %v1385
    %v1642 = vadd.f32 %v362, %v1386
    %v1643 = vadd.f32 %v363, %v1387
    %v1644 = vadd.f32 %v364, %v1388
    %v1645 = vadd.f32 %v365, %v1389
    %v1646 = vadd.f32 %v366, %v1390
    %v1647 = vadd.f32 %v367, %v1391
    %v1648 = vadd.f32 %v368, %v1392
    %v1649 = vadd.f32 %v369, %v1393
    %v1650 = vadd.f32 %v370, %v1394
    %v1651 = vadd.f32 %v371, %v1395
    %v1652 = vadd.f32 %v372, %v1396
    %v1653 = vadd.f32 %v373, %v1397
    %v1654 = vadd.f32 %v374, %v1398
    %v1655 = vadd.f32 %v375, %v1399
    %v1656 = vadd.f32 %v376, %v1400
    %v1657 = vadd.f32 %v377, %v1401
    %v1658 = vadd.f32 %v378, %v1402
    %v1659 = vadd.f32 %v379, %v1403
    %v1660 = vadd.f32 %v380, %v1404
    %v1661 = vadd.f32 %v381, %v1405
    %v1662 = vadd.f32 %v382, %v1406
    %v1663 = vadd.f32 %v383, %v1407
    %v1664 = vadd.f32 %v384, %v1408
    %v1665 = vadd.f32 %v385, %v1409
    %v1666 = vadd.f32 %v386, %v1410
    %v1667 = vadd.f32 %v387, %v1411
    %v1668 = vadd.f32 %v388, %v1412
    %v1669 = vadd.f32 %v389, %v1413
    %v1670 = vadd.f32 %v390, %v1414
    %v1671 = vadd.f32 %v391, %v1415
    %v1672 = vadd.f32 %v392, %v1416
    %v1673 = vadd.f32 %v393, %v1417
    %v1674 = vadd.f32 %v394, %v1418
    %v1675 = vadd.f32 %v395, %v1419
    %v1676 = vadd.f32 %v396, %v1420
    %v1677 = vadd.f32 %v397, %v1421
    %v1678 = vadd.f32 %v398, %v1422
    %v1679 = vadd.f32 %v399, %v1423
    %v1680 = vadd.f32 %v400, %v1424
    %v1681 = vadd.f32 %v401, %v1425
    %v1682 = vadd.f32 %v402, %v1426
    %v1683 = vadd.f32 %v403, %v1427
    %v1684 = vadd.f32 %v404, %v1428
    %v1685 = vadd.f32 %v405, %v1429
    %v1686 = vadd.f32 %v406, %v1430
    %v1687 = vadd.f32 %v407, %v1431
    %v1688 = vadd.f32 %v408, %v1432
    %v1689 = vadd.f32 %v409, %v1433
    %v1690 = vadd.f32 %v410, %v1434
    %v1691 = vadd.f32 %v411, %v1435
    %v1692 = vadd.f32 %v412, %v1436
    %v1693 = vadd.f32 %v413, %v1437
    %v1694 = vadd.f32 %v414, %v1438
    %v1695 = vadd.f32 %v415, %v1439
    %v1696 = vadd.f32 %v416, %v1440
    %v1697 = vadd.f32 %v417, %v1441
    %v1698 = vadd.f32 %v418, %v1442
    %v1699 = vadd.f32 %v419, %v1443
    %v1700 = vadd.f32 %v420, %v1444
    %v1701 = vadd.f32 %v421, %v1445
    %v1702 = vadd.f32 %v422, %v1446
    %v1703 = vadd.f32 %v423, %v1447
    %v1704 = vadd.f32 %v424, %v1448
    %v1705 = vadd.f32 %v425, %v1449
    %v1706 = vadd.f32 %v426, %v1450
    %v1707 = vadd.f32 %v427, %v1451
    %v1708 = vadd.f32 %v428, %v1452
    %v1709 = vadd.f32 %v429, %v1453
    %v1710 = vadd.f32 %v430, %v1454
    %v1711 = vadd.f32 %v431, %v1455
    %v1712 = vadd.f32 %v432, %v1456
    %v1713 = vadd.f32 %v433, %v1457
    %v1714 = vadd.f32 %v434, %v1458
    %v1715 = vadd.f32 %v435, %v1459
    %v1716 = vadd.f32 %v436, %v1460
    %v1717 = vadd.f32 %v437, %v1461
    %v1718 = vadd.f32 %v438, %v1462
    %v1719 = vadd.f32 %v439, %v1463
    %v1720 = vadd.f32 %v440, %v1464
    %v1721 = vadd.f32 %v441, %v1465
    %v1722 = vadd.f32 %v442, %v1466
    %v1723 = vadd.f32 %v443, %v1467
    %v1724 = vadd.f32 %v444, %v1468
    %v1725 = vadd.f32 %v445, %v1469
    %v1726 = vadd.f32 %v446, %v1470
    %v1727 = vadd.f32 %v447, %v1471
    %v1728 = vadd.f32 %v448, %v1472
    %v1729 = vadd.f32 %v449, %v1473
    %v1730 = vadd.f32 %v450, %v1474
    %v1731 = vadd.f32 %v451, %v1475
    %v1732 = vadd.f32 %v452, %v1476
    %v1733 = vadd.f32 %v453, %v1477
    %v1734 = vadd.f32 %v454, %v1478
    %v1735 = vadd.f32 %v455, %v1479
    %v1736 = vadd.f32 %v456, %v1480
    %v1737 = vadd.f32 %v457, %v1481
    %v1738 = vadd.f32 %v458, %v1482
    %v1739 = vadd.f32 %v459, %v1483
    %v1740 = vadd.f32 %v460, %v1484
    %v1741 = vadd.f32 %v461, %v1485
    %v1742 = vadd.f32 %v462, %v1486
    %v1743 = vadd.f32 %v463, %v1487
    %v1744 = vadd.f32 %v464, %v1488
    %v1745 = vadd.f32 %v465, %v1489
    %v1746 = vadd.f32 %v466, %v1490
    %v1747 = vadd.f32 %v467, %v1491
    %v1748 = vadd.f32 %v468, %v1492
    %v1749 = vadd.f32 %v469, %v1493
    %v1750 = vadd.f32 %v470, %v1494
    %v1751 = vadd.f32 %v471, %v1495
    %v1752 = vadd.f32 %v472, %v1496
    %v1753 = vadd.f32 %v473, %v1497
    %v1754 = vadd.f32 %v474, %v1498
    %v1755 = vadd.f32 %v475, %v1499
    %v1756 = vadd.f32 %v476, %v1500
    %v1757 = vadd.f32 %v477, %v1501
    %v1758 = vadd.f32 %v478, %v1502
    %v1759 = vadd.f32 %v479, %v1503
    %v1760 = vadd.f32 %v480, %v1504
    %v1761 = vadd.f32 %v481, %v1505
    %v1762 = vadd.f32 %v482, %v1506
    %v1763 = vadd.f32 %v483, %v1507
    %v1764 = vadd.f32 %v484, %v1508
    %v1765 = vadd.f32 %v485, %v1509
    %v1766 = vadd.f32 %v486, %v1510
    %v1767 = vadd.f32 %v487, %v1511
    %v1768 = vadd.f32 %v488, %v1512
    %v1769 = vadd.f32 %v489, %v1513
    %v1770 = vadd.f32 %v490, %v1514
    %v1771 = vadd.f32 %v491, %v1515
    %v1772 = vadd.f32 %v492, %v1516
    %v1773 = vadd.f32 %v493, %v1517
    %v1774 = vadd.f32 %v494, %v1518
    %v1775 = vadd.f32 %v495, %v1519
    %v1776 = vadd.f32 %v496, %v1520
    %v1777 = vadd.f32 %v497, %v1521
    %v1778 = vadd.f32 %v498, %v1522
    %v1779 = vadd.f32 %v499, %v1523
    %v1780 = vadd.f32 %v500, %v1524
    %v1781 = vadd.f32 %v501, %v1525
    %v1782 = vadd.f32 %v502, %v1526
    %v1783 = vadd.f32 %v503, %v1527
    %v1784 = vadd.f32 %v504, %v1528
    %v1785 = vadd.f32 %v505, %v1529
    %v1786 = vadd.f32 %v506, %v1530
    %v1787 = vadd.f32 %v507, %v1531
    %v1788 = vadd.f32 %v508, %v1532
    %v1789 = vadd.f32 %v509, %v1533
    %v1790 = vadd.f32 %v510, %v1534
    %v1791 = vadd.f32 %v511, %v1535
    %v1792 = vadd.f32 %v512, %v1536
    %v1793 = vadd.f32 %v513, %v1537
    %v1794 = vadd.f32 %v514, %v1538
    %v1795 = vadd.f32 %v515, %v1539
    %v1796 = vadd.f32 %v516, %v1540
    %v1797 = vadd.f32 %v517, %v1541
    %v1798 = vadd.f32 %v518, %v1542
    %v1799 = vadd.f32 %v519, %v1543
    %v1800 = vadd.f32 %v520, %v1544
    %v1801 = vadd.f32 %v521, %v1545
    %v1802 = vadd.f32 %v522, %v1546
    %v1803 = vadd.f32 %v523, %v1547
    %v1804 = vadd.f32 %v524, %v1548
    %v1805 = vadd.f32 %v525, %v1549
    %v1806 = vadd.f32 %v526, %v1550
    %v1807 = vadd.f32 %v527, %v1551
    %v1808 = vadd.f32 %v528, %v1552
    %v1809 = vadd.f32 %v529, %v1553
    %v1810 = vadd.f32 %v530, %v1554
    %v1811 = vadd.f32 %v531, %v1555
    %v1812 = vadd.f32 %v532, %v1556
    %v1813 = vadd.f32 %v533, %v1557
    %v1814 = vadd.f32 %v534, %v1558
    %v1815 = vadd.f32 %v535, %v1559
    %v1816 = vadd.f32 %v536, %v1560
    %v1817 = vadd.f32 %v537, %v1561
    %v1818 = vadd.f32 %v538, %v1562
    %v1819 = vadd.f32 %v539, %v1563
    %v1820 = vadd.f32 %v540, %v1564
    %v1821 = vadd.f32 %v541, %v1565
    %v1822 = vadd.f32 %v542, %v1566
    %v1823 = vadd.f32 %v543, %v1567
    %v1824 = vadd.f32 %v544, %v1568
    %v1825 = vadd.f32 %v545, %v1569
    %v1826 = vadd.f32 %v546, %v1570
    %v1827 = vadd.f32 %v547, %v1571
    %v1828 = vadd.f32 %v548, %v1572
    %v1829 = vadd.f32 %v549, %v1573
    %v1830 = vadd.f32 %v550, %v1574
    %v1831 = vadd.f32 %v551, %v1575
    %v1832 = vadd.f32 %v552, %v1576
    %v1833 = vadd.f32 %v553, %v1577
    %v1834 = vadd.f32 %v554, %v1578
    %v1835 = vadd.f32 %v555, %v1579
    %v1836 = vadd.f32 %v556, %v1580
    %v1837 = vadd.f32 %v557, %v1581
    %v1838 = vadd.f32 %v558, %v1582
    %v1839 = vadd.f32 %v559, %v1583
    %v1840 = vadd.f32 %v560, %v1584
    %v1841 = vadd.f32 %v561, %v1585
    %v1842 = vadd.f32 %v562, %v1586
    %v1843 = vadd.f32 %v563, %v1587
    %v1844 = vadd.f32 %v564, %v1588
    %v1845 = vadd.f32 %v565, %v1589
    %v1846 = vadd.f32 %v566, %v1590
    %v1847 = vadd.f32 %v567, %v1591
    %v1848 = vadd.f32 %v568, %v1592
    %v1849 = vadd.f32 %v569, %v1593
    %v1850 = vadd.f32 %v570, %v1594
    %v1851 = vadd.f32 %v571, %v1595
    %v1852 = vadd.f32 %v572, %v1596
    %v1853 = vadd.f32 %v573, %v1597
    %v1854 = vadd.f32 %v574, %v1598
    %v1855 = vadd.f32 %v575, %v1599
    %v1856 = vadd.f32 %v576, %v1600
    %v1857 = vadd.f32 %v577, %v1601
    %v1858 = vadd.f32 %v578, %v1602
    %v1859 = vadd.f32 %v579, %v1603
    %v1860 = vadd.f32 %v580, %v1604
    %v1861 = vadd.f32 %v581, %v1605
    %1862 = vst [vmem:[#allocation2] sm:$0xff] %v1606
    %1863 = vst [vmem:[#allocation2 + $0x8] sm:$0xff] %v1607
    %1864 = vst [vmem:[#allocation2 + $0x10] sm:$0xff] %v1608
    %1865 = vst [vmem:[#allocation2 + $0x18] sm:$0xff] %v1609
    %1866 = vst [vmem:[#allocation2 + $0x20] sm:$0xff] %v1610
    %1867 = vst [vmem:[#allocation2 + $0x28] sm:$0xff] %v1611
    %1868 = vst [vmem:[#allocation2 + $0x30] sm:$0xff] %v1612
    %1869 = vst [vmem:[#allocation2 + $0x38] sm:$0xff] %v1613
    %1870 = vst [vmem:[#allocation2 + $0x40] sm:$0xff] %v1614
    %1871 = vst [vmem:[#allocation2 + $0x48] sm:$0xff] %v1615
    %1872 = vst [vmem:[#allocation2 + $0x50] sm:$0xff] %v1616
    %1873 = vst [vmem:[#allocation2 + $0x58] sm:$0xff] %v1617
    %1874 = vst [vmem:[#allocation2 + $0x60] sm:$0xff] %v1618
    %1875 = vst [vmem:[#allocation2 + $0x68] sm:$0xff] %v1619
    %1876 = vst [vmem:[#allocation2 + $0x70] sm:$0xff] %v1620
    %1877 = vst [vmem:[#allocation2 + $0x78] sm:$0xff] %v1621
    %1878 = vst [vmem:[#allocation2 + $0x80] sm:$0xff] %v1622
    %1879 = vst [vmem:[#allocation2 + $0x88] sm:$0xff] %v1623
    %1880 = vst [vmem:[#allocation2 + $0x90] sm:$0xff] %v1624
    %1881 = vst [vmem:[#allocation2 + $0x98] sm:$0xff] %v1625
    %1882 = vst [vmem:[#allocation2 + $0xa0] sm:$0xff] %v1626
    %1883 = vst [vmem:[#allocation2 + $0xa8] sm:$0xff] %v1627
    %1884 = vst [vmem:[#allocation2 + $0xb0] sm:$0xff] %v1628
    %1885 = vst [vmem:[#allocation2 + $0xb8] sm:$0xff] %v1629
    %1886 = vst [vmem:[#allocation2 + $0xc0] sm:$0xff] %v1630
    %1887 = vst [vmem:[#allocation2 + $0xc8] sm:$0xff] %v1631
    %1888 = vst [vmem:[#allocation2 + $0xd0] sm:$0xff] %v1632
    %1889 = vst [vmem:[#allocation2 + $0xd8] sm:$0xff] %v1633
    %1890 = vst [vmem:[#allocation2 + $0xe0] sm:$0xff] %v1634
    %1891 = vst [vmem:[#allocation2 + $0xe8] sm:$0xff] %v1635
    %1892 = vst [vmem:[#allocation2 + $0xf0] sm:$0xff] %v1636
    %1893 = vst [vmem:[#allocation2 + $0xf8] sm:$0xff] %v1637
    %1894 = vst [vmem:[#allocation2 + $0x100] sm:$0xff] %v1638
    %1895 = vst [vmem:[#allocation2 + $0x108] sm:$0xff] %v1639
    %1896 = vst [vmem:[#allocation2 + $0x110] sm:$0xff] %v1640
    %1897 = vst [vmem:[#allocation2 + $0x118] sm:$0xff] %v1641
    %1898 = vst [vmem:[#allocation2 + $0x120] sm:$0xff] %v1642
    %1899 = vst [vmem:[#allocation2 + $0x128] sm:$0xff] %v1643
    %1900 = vst [vmem:[#allocation2 + $0x130] sm:$0xff] %v1644
    %1901 = vst [vmem:[#allocation2 + $0x138] sm:$0xff] %v1645
    %1902 = vst [vmem:[#allocation2 + $0x140] sm:$0xff] %v1646
    %1903 = vst [vmem:[#allocation2 + $0x148] sm:$0xff] %v1647
    %1904 = vst [vmem:[#allocation2 + $0x150] sm:$0xff] %v1648
    %1905 = vst [vmem:[#allocation2 + $0x158] sm:$0xff] %v1649
    %1906 = vst [vmem:[#allocation2 + $0x160] sm:$0xff] %v1650
    %1907 = vst [vmem:[#allocation2 + $0x168] sm:$0xff] %v1651
    %1908 = vst [vmem:[#allocation2 + $0x170] sm:$0xff] %v1652
    %1909 = vst [vmem:[#allocation2 + $0x178] sm:$0xff] %v1653
    %1910 = vst [vmem:[#allocation2 + $0x180] sm:$0xff] %v1654
    %1911 = vst [vmem:[#allocation2 + $0x188] sm:$0xff] %v1655
    %1912 = vst [vmem:[#allocation2 + $0x190] sm:$0xff] %v1656
    %1913 = vst [vmem:[#allocation2 + $0x198] sm:$0xff] %v1657
    %1914 = vst [vmem:[#allocation2 + $0x1a0] sm:$0xff] %v1658
    %1915 = vst [vmem:[#allocation2 + $0x1a8] sm:$0xff] %v1659
    %1916 = vst [vmem:[#allocation2 + $0x1b0] sm:$0xff] %v1660
    %1917 = vst [vmem:[#allocation2 + $0x1b8] sm:$0xff] %v1661
    %1918 = vst [vmem:[#allocation2 + $0x1c0] sm:$0xff] %v1662
    %1919 = vst [vmem:[#allocation2 + $0x1c8] sm:$0xff] %v1663
    %1920 = vst [vmem:[#allocation2 + $0x1d0] sm:$0xff] %v1664
    %1921 = vst [vmem:[#allocation2 + $0x1d8] sm:$0xff] %v1665
    %1922 = vst [vmem:[#allocation2 + $0x1e0] sm:$0xff] %v1666
    %1923 = vst [vmem:[#allocation2 + $0x1e8] sm:$0xff] %v1667
    %1924 = vst [vmem:[#allocation2 + $0x1f0] sm:$0xff] %v1668
    %1925 = vst [vmem:[#allocation2 + $0x1f8] sm:$0xff] %v1669
    %1926 = vst [vmem:[#allocation2 + $0x200] sm:$0xff] %v1670
    %1927 = vst [vmem:[#allocation2 + $0x208] sm:$0xff] %v1671
    %1928 = vst [vmem:[#allocation2 + $0x210] sm:$0xff] %v1672
    %1929 = vst [vmem:[#allocation2 + $0x218] sm:$0xff] %v1673
    %1930 = vst [vmem:[#allocation2 + $0x220] sm:$0xff] %v1674
    %1931 = vst [vmem:[#allocation2 + $0x228] sm:$0xff] %v1675
    %1932 = vst [vmem:[#allocation2 + $0x230] sm:$0xff] %v1676
    %1933 = vst [vmem:[#allocation2 + $0x238] sm:$0xff] %v1677
    %1934 = vst [vmem:[#allocation2 + $0x240] sm:$0xff] %v1678
    %1935 = vst [vmem:[#allocation2 + $0x248] sm:$0xff] %v1679
    %1936 = vst [vmem:[#allocation2 + $0x250] sm:$0xff] %v1680
    %1937 = vst [vmem:[#allocation2 + $0x258] sm:$0xff] %v1681
    %1938 = vst [vmem:[#allocation2 + $0x260] sm:$0xff] %v1682
    %1939 = vst [vmem:[#allocation2 + $0x268] sm:$0xff] %v1683
    %1940 = vst [vmem:[#allocation2 + $0x270] sm:$0xff] %v1684
    %1941 = vst [vmem:[#allocation2 + $0x278] sm:$0xff] %v1685
    %1942 = vst [vmem:[#allocation2 + $0x280] sm:$0xff] %v1686
    %1943 = vst [vmem:[#allocation2 + $0x288] sm:$0xff] %v1687
    %1944 = vst [vmem:[#allocation2 + $0x290] sm:$0xff] %v1688
    %1945 = vst [vmem:[#allocation2 + $0x298] sm:$0xff] %v1689
    %1946 = vst [vmem:[#allocation2 + $0x2a0] sm:$0xff] %v1690
    %1947 = vst [vmem:[#allocation2 + $0x2a8] sm:$0xff] %v1691
    %1948 = vst [vmem:[#allocation2 + $0x2b0] sm:$0xff] %v1692
    %1949 = vst [vmem:[#allocation2 + $0x2b8] sm:$0xff] %v1693
    %1950 = vst [vmem:[#allocation2 + $0x2c0] sm:$0xff] %v1694
    %1951 = vst [vmem:[#allocation2 + $0x2c8] sm:$0xff] %v1695
    %1952 = vst [vmem:[#allocation2 + $0x2d0] sm:$0xff] %v1696
    %1953 = vst [vmem:[#allocation2 + $0x2d8] sm:$0xff] %v1697
    %1954 = vst [vmem:[#allocation2 + $0x2e0] sm:$0xff] %v1698
    %1955 = vst [vmem:[#allocation2 + $0x2e8] sm:$0xff] %v1699
    %1956 = vst [vmem:[#allocation2 + $0x2f0] sm:$0xff] %v1700
    %1957 = vst [vmem:[#allocation2 + $0x2f8] sm:$0xff] %v1701
    %1958 = vst [vmem:[#allocation2 + $0x300] sm:$0xff] %v1702
    %1959 = vst [vmem:[#allocation2 + $0x308] sm:$0xff] %v1703
    %1960 = vst [vmem:[#allocation2 + $0x310] sm:$0xff] %v1704
    %1961 = vst [vmem:[#allocation2 + $0x318] sm:$0xff] %v1705
    %1962 = vst [vmem:[#allocation2 + $0x320] sm:$0xff] %v1706
    %1963 = vst [vmem:[#allocation2 + $0x328] sm:$0xff] %v1707
    %1964 = vst [vmem:[#allocation2 + $0x330] sm:$0xff] %v1708
    %1965 = vst [vmem:[#allocation2 + $0x338] sm:$0xff] %v1709
    %1966 = vst [vmem:[#allocation2 + $0x340] sm:$0xff] %v1710
    %1967 = vst [vmem:[#allocation2 + $0x348] sm:$0xff] %v1711
    %1968 = vst [vmem:[#allocation2 + $0x350] sm:$0xff] %v1712
    %1969 = vst [vmem:[#allocation2 + $0x358] sm:$0xff] %v1713
    %1970 = vst [vmem:[#allocation2 + $0x360] sm:$0xff] %v1714
    %1971 = vst [vmem:[#allocation2 + $0x368] sm:$0xff] %v1715
    %1972 = vst [vmem:[#allocation2 + $0x370] sm:$0xff] %v1716
    %1973 = vst [vmem:[#allocation2 + $0x378] sm:$0xff] %v1717
    %1974 = vst [vmem:[#allocation2 + $0x380] sm:$0xff] %v1718
    %1975 = vst [vmem:[#allocation2 + $0x388] sm:$0xff] %v1719
    %1976 = vst [vmem:[#allocation2 + $0x390] sm:$0xff] %v1720
    %1977 = vst [vmem:[#allocation2 + $0x398] sm:$0xff] %v1721
    %1978 = vst [vmem:[#allocation2 + $0x3a0] sm:$0xff] %v1722
    %1979 = vst [vmem:[#allocation2 + $0x3a8] sm:$0xff] %v1723
    %1980 = vst [vmem:[#allocation2 + $0x3b0] sm:$0xff] %v1724
    %1981 = vst [vmem:[#allocation2 + $0x3b8] sm:$0xff] %v1725
    %1982 = vst [vmem:[#allocation2 + $0x3c0] sm:$0xff] %v1726
    %1983 = vst [vmem:[#allocation2 + $0x3c8] sm:$0xff] %v1727
    %1984 = vst [vmem:[#allocation2 + $0x3d0] sm:$0xff] %v1728
    %1985 = vst [vmem:[#allocation2 + $0x3d8] sm:$0xff] %v1729
    %1986 = vst [vmem:[#allocation2 + $0x3e0] sm:$0xff] %v1730
    %1987 = vst [vmem:[#allocation2 + $0x3e8] sm:$0xff] %v1731
    %1988 = vst [vmem:[#allocation2 + $0x3f0] sm:$0xff] %v1732
    %1989 = vst [vmem:[#allocation2 + $0x3f8] sm:$0xff] %v1733
    %1990 = vst [vmem:[#allocation2 + $0x400] sm:$0xff] %v1734
    %1991 = vst [vmem:[#allocation2 + $0x408] sm:$0xff] %v1735
    %1992 = vst [vmem:[#allocation2 + $0x410] sm:$0xff] %v1736
    %1993 = vst [vmem:[#allocation2 + $0x418] sm:$0xff] %v1737
    %1994 = vst [vmem:[#allocation2 + $0x420] sm:$0xff] %v1738
    %1995 = vst [vmem:[#allocation2 + $0x428] sm:$0xff] %v1739
    %1996 = vst [vmem:[#allocation2 + $0x430] sm:$0xff] %v1740
    %1997 = vst [vmem:[#allocation2 + $0x438] sm:$0xff] %v1741
    %1998 = vst [vmem:[#allocation2 + $0x440] sm:$0xff] %v1742
    %1999 = vst [vmem:[#allocation2 + $0x448] sm:$0xff] %v1743
    %2000 = vst [vmem:[#allocation2 + $0x450] sm:$0xff] %v1744
    %2001 = vst [vmem:[#allocation2 + $0x458] sm:$0xff] %v1745
    %2002 = vst [vmem:[#allocation2 + $0x460] sm:$0xff] %v1746
    %2003 = vst [vmem:[#allocation2 + $0x468] sm:$0xff] %v1747
    %2004 = vst [vmem:[#allocation2 + $0x470] sm:$0xff] %v1748
    %2005 = vst [vmem:[#allocation2 + $0x478] sm:$0xff] %v1749
    %2006 = vst [vmem:[#allocation2 + $0x480] sm:$0xff] %v1750
    %2007 = vst [vmem:[#allocation2 + $0x488] sm:$0xff] %v1751
    %2008 = vst [vmem:[#allocation2 + $0x490] sm:$0xff] %v1752
    %2009 = vst [vmem:[#allocation2 + $0x498] sm:$0xff] %v1753
    %2010 = vst [vmem:[#allocation2 + $0x4a0] sm:$0xff] %v1754
    %2011 = vst [vmem:[#allocation2 + $0x4a8] sm:$0xff] %v1755
    %2012 = vst [vmem:[#allocation2 + $0x4b0] sm:$0xff] %v1756
    %2013 = vst [vmem:[#allocation2 + $0x4b8] sm:$0xff] %v1757
    %2014 = vst [vmem:[#allocation2 + $0x4c0] sm:$0xff] %v1758
    %2015 = vst [vmem:[#allocation2 + $0x4c8] sm:$0xff] %v1759
    %2016 = vst [vmem:[#allocation2 + $0x4d0] sm:$0xff] %v1760
    %2017 = vst [vmem:[#allocation2 + $0x4d8] sm:$0xff] %v1761
    %2018 = vst [vmem:[#allocation2 + $0x4e0] sm:$0xff] %v1762
    %2019 = vst [vmem:[#allocation2 + $0x4e8] sm:$0xff] %v1763
    %2020 = vst [vmem:[#allocation2 + $0x4f0] sm:$0xff] %v1764
    %2021 = vst [vmem:[#allocation2 + $0x4f8] sm:$0xff] %v1765
    %2022 = vst [vmem:[#allocation2 + $0x500] sm:$0xff] %v1766
    %2023 = vst [vmem:[#allocation2 + $0x508] sm:$0xff] %v1767
    %2024 = vst [vmem:[#allocation2 + $0x510] sm:$0xff] %v1768
    %2025 = vst [vmem:[#allocation2 + $0x518] sm:$0xff] %v1769
    %2026 = vst [vmem:[#allocation2 + $0x520] sm:$0xff] %v1770
    %2027 = vst [vmem:[#allocation2 + $0x528] sm:$0xff] %v1771
    %2028 = vst [vmem:[#allocation2 + $0x530] sm:$0xff] %v1772
    %2029 = vst [vmem:[#allocation2 + $0x538] sm:$0xff] %v1773
    %2030 = vst [vmem:[#allocation2 + $0x540] sm:$0xff] %v1774
    %2031 = vst [vmem:[#allocation2 + $0x548] sm:$0xff] %v1775
    %2032 = vst [vmem:[#allocation2 + $0x550] sm:$0xff] %v1776
    %2033 = vst [vmem:[#allocation2 + $0x558] sm:$0xff] %v1777
    %2034 = vst [vmem:[#allocation2 + $0x560] sm:$0xff] %v1778
    %2035 = vst [vmem:[#allocation2 + $0x568] sm:$0xff] %v1779
    %2036 = vst [vmem:[#allocation2 + $0x570] sm:$0xff] %v1780
    %2037 = vst [vmem:[#allocation2 + $0x578] sm:$0xff] %v1781
    %2038 = vst [vmem:[#allocation2 + $0x580] sm:$0xff] %v1782
    %2039 = vst [vmem:[#allocation2 + $0x588] sm:$0xff] %v1783
    %2040 = vst [vmem:[#allocation2 + $0x590] sm:$0xff] %v1784
    %2041 = vst [vmem:[#allocation2 + $0x598] sm:$0xff] %v1785
    %2042 = vst [vmem:[#allocation2 + $0x5a0] sm:$0xff] %v1786
    %2043 = vst [vmem:[#allocation2 + $0x5a8] sm:$0xff] %v1787
    %2044 = vst [vmem:[#allocation2 + $0x5b0] sm:$0xff] %v1788
    %2045 = vst [vmem:[#allocation2 + $0x5b8] sm:$0xff] %v1789
    %2046 = vst [vmem:[#allocation2 + $0x5c0] sm:$0xff] %v1790
    %2047 = vst [vmem:[#allocation2 + $0x5c8] sm:$0xff] %v1791
    %2048 = vst [vmem:[#allocation2 + $0x5d0] sm:$0xff] %v1792
    %2049 = vst [vmem:[#allocation2 + $0x5d8] sm:$0xff] %v1793
    %2050 = vst [vmem:[#allocation2 + $0x5e0] sm:$0xff] %v1794
    %2051 = vst [vmem:[#allocation2 + $0x5e8] sm:$0xff] %v1795
    %2052 = vst [vmem:[#allocation2 + $0x5f0] sm:$0xff] %v1796
    %2053 = vst [vmem:[#allocation2 + $0x5f8] sm:$0xff] %v1797
    %2054 = vst [vmem:[#allocation2 + $0x600] sm:$0xff] %v1798
    %2055 = vst [vmem:[#allocation2 + $0x608] sm:$0xff] %v1799
    %2056 = vst [vmem:[#allocation2 + $0x610] sm:$0xff] %v1800
    %2057 = vst [vmem:[#allocation2 + $0x618] sm:$0xff] %v1801
    %2058 = vst [vmem:[#allocation2 + $0x620] sm:$0xff] %v1802
    %2059 = vst [vmem:[#allocation2 + $0x628] sm:$0xff] %v1803
    %2060 = vst [vmem:[#allocation2 + $0x630] sm:$0xff] %v1804
    %2061 = vst [vmem:[#allocation2 + $0x638] sm:$0xff] %v1805
    %2062 = vst [vmem:[#allocation2 + $0x640] sm:$0xff] %v1806
    %2063 = vst [vmem:[#allocation2 + $0x648] sm:$0xff] %v1807
    %2064 = vst [vmem:[#allocation2 + $0x650] sm:$0xff] %v1808
    %2065 = vst [vmem:[#allocation2 + $0x658] sm:$0xff] %v1809
    %2066 = vst [vmem:[#allocation2 + $0x660] sm:$0xff] %v1810
    %2067 = vst [vmem:[#allocation2 + $0x668] sm:$0xff] %v1811
    %2068 = vst [vmem:[#allocation2 + $0x670] sm:$0xff] %v1812
    %2069 = vst [vmem:[#allocation2 + $0x678] sm:$0xff] %v1813
    %2070 = vst [vmem:[#allocation2 + $0x680] sm:$0xff] %v1814
    %2071 = vst [vmem:[#allocation2 + $0x688] sm:$0xff] %v1815
    %2072 = vst [vmem:[#allocation2 + $0x690] sm:$0xff] %v1816
    %2073 = vst [vmem:[#allocation2 + $0x698] sm:$0xff] %v1817
    %2074 = vst [vmem:[#allocation2 + $0x6a0] sm:$0xff] %v1818
    %2075 = vst [vmem:[#allocation2 + $0x6a8] sm:$0xff] %v1819
    %2076 = vst [vmem:[#allocation2 + $0x6b0] sm:$0xff] %v1820
    %2077 = vst [vmem:[#allocation2 + $0x6b8] sm:$0xff] %v1821
    %2078 = vst [vmem:[#allocation2 + $0x6c0] sm:$0xff] %v1822
    %2079 = vst [vmem:[#allocation2 + $0x6c8] sm:$0xff] %v1823
    %2080 = vst [vmem:[#allocation2 + $0x6d0] sm:$0xff] %v1824
    %2081 = vst [vmem:[#allocation2 + $0x6d8] sm:$0xff] %v1825
    %2082 = vst [vmem:[#allocation2 + $0x6e0] sm:$0xff] %v1826
    %2083 = vst [vmem:[#allocation2 + $0x6e8] sm:$0xff] %v1827
    %2084 = vst [vmem:[#allocation2 + $0x6f0] sm:$0xff] %v1828
    %2085 = vst [vmem:[#allocation2 + $0x6f8] sm:$0xff] %v1829
    %2086 = vst [vmem:[#allocation2 + $0x700] sm:$0xff] %v1830
    %2087 = vst [vmem:[#allocation2 + $0x708] sm:$0xff] %v1831
    %2088 = vst [vmem:[#allocation2 + $0x710] sm:$0xff] %v1832
    %2089 = vst [vmem:[#allocation2 + $0x718] sm:$0xff] %v1833
    %2090 = vst [vmem:[#allocation2 + $0x720] sm:$0xff] %v1834
    %2091 = vst [vmem:[#allocation2 + $0x728] sm:$0xff] %v1835
    %2092 = vst [vmem:[#allocation2 + $0x730] sm:$0xff] %v1836
    %2093 = vst [vmem:[#allocation2 + $0x738] sm:$0xff] %v1837
    %2094 = vst [vmem:[#allocation2 + $0x740] sm:$0xff] %v1838
    %2095 = vst [vmem:[#allocation2 + $0x748] sm:$0xff] %v1839
    %2096 = vst [vmem:[#allocation2 + $0x750] sm:$0xff] %v1840
    %2097 = vst [vmem:[#allocation2 + $0x758] sm:$0xff] %v1841
    %2098 = vst [vmem:[#allocation2 + $0x760] sm:$0xff] %v1842
    %2099 = vst [vmem:[#allocation2 + $0x768] sm:$0xff] %v1843
    %2100 = vst [vmem:[#allocation2 + $0x770] sm:$0xff] %v1844
    %2101 = vst [vmem:[#allocation2 + $0x778] sm:$0xff] %v1845
    %2102 = vst [vmem:[#allocation2 + $0x780] sm:$0xff] %v1846
    %2103 = vst [vmem:[#allocation2 + $0x788] sm:$0xff] %v1847
    %2104 = vst [vmem:[#allocation2 + $0x790] sm:$0xff] %v1848
    %2105 = vst [vmem:[#allocation2 + $0x798] sm:$0xff] %v1849
    %2106 = vst [vmem:[#allocation2 + $0x7a0] sm:$0xff] %v1850
    %2107 = vst [vmem:[#allocation2 + $0x7a8] sm:$0xff] %v1851
    %2108 = vst [vmem:[#allocation2 + $0x7b0] sm:$0xff] %v1852
    %2109 = vst [vmem:[#allocation2 + $0x7b8] sm:$0xff] %v1853
    %2110 = vst [vmem:[#allocation2 + $0x7c0] sm:$0xff] %v1854
    %2111 = vst [vmem:[#allocation2 + $0x7c8] sm:$0xff] %v1855
    %2112 = vst [vmem:[#allocation2 + $0x7d0] sm:$0xff] %v1856
    %2113 = vst [vmem:[#allocation2 + $0x7d8] sm:$0xff] %v1857
    %2114 = vst [vmem:[#allocation2 + $0x7e0] sm:$0xff] %v1858
    %2115 = vst [vmem:[#allocation2 + $0x7e8] sm:$0xff] %v1859
    %2116 = vst [vmem:[#allocation2 + $0x7f0] sm:$0xff] %v1860
    %2117 = vst [vmem:[#allocation2 + $0x7f8] sm:$0xff] %v1861
    // Predicated region
    $region22: #{tpu_custom_call.1} parent=1 // pred_check
      %p2118 = pneg %p66
    $region23: #{tpu_custom_call.1} parent=1 // pred_check_branch
      %2120 = sbr.rel (%p2118) target = $region25
    $region24: #{tpu_custom_call.1} parent=1 // pred_region
      %v2121 = vld [vmem:[#allocation2] sm:$0xff]
      %v2122 = vld [vmem:[#allocation2 + $0x8] sm:$0xff]
      %v2123 = vld [vmem:[#allocation2 + $0x10] sm:$0xff]
      %v2124 = vld [vmem:[#allocation2 + $0x18] sm:$0xff]
      %v2125 = vld [vmem:[#allocation2 + $0x20] sm:$0xff]
      %v2126 = vld [vmem:[#allocation2 + $0x28] sm:$0xff]
      %v2127 = vld [vmem:[#allocation2 + $0x30] sm:$0xff]
      %v2128 = vld [vmem:[#allocation2 + $0x38] sm:$0xff]
      %v2129 = vld [vmem:[#allocation2 + $0x40] sm:$0xff]
      %v2130 = vld [vmem:[#allocation2 + $0x48] sm:$0xff]
      %v2131 = vld [vmem:[#allocation2 + $0x50] sm:$0xff]
      %v2132 = vld [vmem:[#allocation2 + $0x58] sm:$0xff]
      %v2133 = vld [vmem:[#allocation2 + $0x60] sm:$0xff]
      %v2134 = vld [vmem:[#allocation2 + $0x68] sm:$0xff]
      %v2135 = vld [vmem:[#allocation2 + $0x70] sm:$0xff]
      %v2136 = vld [vmem:[#allocation2 + $0x78] sm:$0xff]
      %v2137 = vld [vmem:[#allocation2 + $0x80] sm:$0xff]
      %v2138 = vld [vmem:[#allocation2 + $0x88] sm:$0xff]
      %v2139 = vld [vmem:[#allocation2 + $0x90] sm:$0xff]
      %v2140 = vld [vmem:[#allocation2 + $0x98] sm:$0xff]
      %v2141 = vld [vmem:[#allocation2 + $0xa0] sm:$0xff]
      %v2142 = vld [vmem:[#allocation2 + $0xa8] sm:$0xff]
      %v2143 = vld [vmem:[#allocation2 + $0xb0] sm:$0xff]
      %v2144 = vld [vmem:[#allocation2 + $0xb8] sm:$0xff]
      %v2145 = vld [vmem:[#allocation2 + $0xc0] sm:$0xff]
      %v2146 = vld [vmem:[#allocation2 + $0xc8] sm:$0xff]
      %v2147 = vld [vmem:[#allocation2 + $0xd0] sm:$0xff]
      %v2148 = vld [vmem:[#allocation2 + $0xd8] sm:$0xff]
      %v2149 = vld [vmem:[#allocation2 + $0xe0] sm:$0xff]
      %v2150 = vld [vmem:[#allocation2 + $0xe8] sm:$0xff]
      %v2151 = vld [vmem:[#allocation2 + $0xf0] sm:$0xff]
      %v2152 = vld [vmem:[#allocation2 + $0xf8] sm:$0xff]
      %v2153 = vld [vmem:[#allocation2 + $0x100] sm:$0xff]
      %v2154 = vld [vmem:[#allocation2 + $0x108] sm:$0xff]
      %v2155 = vld [vmem:[#allocation2 + $0x110] sm:$0xff]
      %v2156 = vld [vmem:[#allocation2 + $0x118] sm:$0xff]
      %v2157 = vld [vmem:[#allocation2 + $0x120] sm:$0xff]
      %v2158 = vld [vmem:[#allocation2 + $0x128] sm:$0xff]
      %v2159 = vld [vmem:[#allocation2 + $0x130] sm:$0xff]
      %v2160 = vld [vmem:[#allocation2 + $0x138] sm:$0xff]
      %v2161 = vld [vmem:[#allocation2 + $0x140] sm:$0xff]
      %v2162 = vld [vmem:[#allocation2 + $0x148] sm:$0xff]
      %v2163 = vld [vmem:[#allocation2 + $0x150] sm:$0xff]
      %v2164 = vld [vmem:[#allocation2 + $0x158] sm:$0xff]
      %v2165 = vld [vmem:[#allocation2 + $0x160] sm:$0xff]
      %v2166 = vld [vmem:[#allocation2 + $0x168] sm:$0xff]
      %v2167 = vld [vmem:[#allocation2 + $0x170] sm:$0xff]
      %v2168 = vld [vmem:[#allocation2 + $0x178] sm:$0xff]
      %v2169 = vld [vmem:[#allocation2 + $0x180] sm:$0xff]
      %v2170 = vld [vmem:[#allocation2 + $0x188] sm:$0xff]
      %v2171 = vld [vmem:[#allocation2 + $0x190] sm:$0xff]
      %v2172 = vld [vmem:[#allocation2 + $0x198] sm:$0xff]
      %v2173 = vld [vmem:[#allocation2 + $0x1a0] sm:$0xff]
      %v2174 = vld [vmem:[#allocation2 + $0x1a8] sm:$0xff]
      %v2175 = vld [vmem:[#allocation2 + $0x1b0] sm:$0xff]
      %v2176 = vld [vmem:[#allocation2 + $0x1b8] sm:$0xff]
      %v2177 = vld [vmem:[#allocation2 + $0x1c0] sm:$0xff]
      %v2178 = vld [vmem:[#allocation2 + $0x1c8] sm:$0xff]
      %v2179 = vld [vmem:[#allocation2 + $0x1d0] sm:$0xff]
      %v2180 = vld [vmem:[#allocation2 + $0x1d8] sm:$0xff]
      %v2181 = vld [vmem:[#allocation2 + $0x1e0] sm:$0xff]
      %v2182 = vld [vmem:[#allocation2 + $0x1e8] sm:$0xff]
      %v2183 = vld [vmem:[#allocation2 + $0x1f0] sm:$0xff]
      %v2184 = vld [vmem:[#allocation2 + $0x1f8] sm:$0xff]
      %v2185 = vld [vmem:[#allocation2 + $0x200] sm:$0xff]
      %v2186 = vld [vmem:[#allocation2 + $0x208] sm:$0xff]
      %v2187 = vld [vmem:[#allocation2 + $0x210] sm:$0xff]
      %v2188 = vld [vmem:[#allocation2 + $0x218] sm:$0xff]
      %v2189 = vld [vmem:[#allocation2 + $0x220] sm:$0xff]
      %v2190 = vld [vmem:[#allocation2 + $0x228] sm:$0xff]
      %v2191 = vld [vmem:[#allocation2 + $0x230] sm:$0xff]
      %v2192 = vld [vmem:[#allocation2 + $0x238] sm:$0xff]
      %v2193 = vld [vmem:[#allocation2 + $0x240] sm:$0xff]
      %v2194 = vld [vmem:[#allocation2 + $0x248] sm:$0xff]
      %v2195 = vld [vmem:[#allocation2 + $0x250] sm:$0xff]
      %v2196 = vld [vmem:[#allocation2 + $0x258] sm:$0xff]
      %v2197 = vld [vmem:[#allocation2 + $0x260] sm:$0xff]
      %v2198 = vld [vmem:[#allocation2 + $0x268] sm:$0xff]
      %v2199 = vld [vmem:[#allocation2 + $0x270] sm:$0xff]
      %v2200 = vld [vmem:[#allocation2 + $0x278] sm:$0xff]
      %v2201 = vld [vmem:[#allocation2 + $0x280] sm:$0xff]
      %v2202 = vld [vmem:[#allocation2 + $0x288] sm:$0xff]
      %v2203 = vld [vmem:[#allocation2 + $0x290] sm:$0xff]
      %v2204 = vld [vmem:[#allocation2 + $0x298] sm:$0xff]
      %v2205 = vld [vmem:[#allocation2 + $0x2a0] sm:$0xff]
      %v2206 = vld [vmem:[#allocation2 + $0x2a8] sm:$0xff]
      %v2207 = vld [vmem:[#allocation2 + $0x2b0] sm:$0xff]
      %v2208 = vld [vmem:[#allocation2 + $0x2b8] sm:$0xff]
      %v2209 = vld [vmem:[#allocation2 + $0x2c0] sm:$0xff]
      %v2210 = vld [vmem:[#allocation2 + $0x2c8] sm:$0xff]
      %v2211 = vld [vmem:[#allocation2 + $0x2d0] sm:$0xff]
      %v2212 = vld [vmem:[#allocation2 + $0x2d8] sm:$0xff]
      %v2213 = vld [vmem:[#allocation2 + $0x2e0] sm:$0xff]
      %v2214 = vld [vmem:[#allocation2 + $0x2e8] sm:$0xff]
      %v2215 = vld [vmem:[#allocation2 + $0x2f0] sm:$0xff]
      %v2216 = vld [vmem:[#allocation2 + $0x2f8] sm:$0xff]
      %v2217 = vld [vmem:[#allocation2 + $0x300] sm:$0xff]
      %v2218 = vld [vmem:[#allocation2 + $0x308] sm:$0xff]
      %v2219 = vld [vmem:[#allocation2 + $0x310] sm:$0xff]
      %v2220 = vld [vmem:[#allocation2 + $0x318] sm:$0xff]
      %v2221 = vld [vmem:[#allocation2 + $0x320] sm:$0xff]
      %v2222 = vld [vmem:[#allocation2 + $0x328] sm:$0xff]
      %v2223 = vld [vmem:[#allocation2 + $0x330] sm:$0xff]
      %v2224 = vld [vmem:[#allocation2 + $0x338] sm:$0xff]
      %v2225 = vld [vmem:[#allocation2 + $0x340] sm:$0xff]
      %v2226 = vld [vmem:[#allocation2 + $0x348] sm:$0xff]
      %v2227 = vld [vmem:[#allocation2 + $0x350] sm:$0xff]
      %v2228 = vld [vmem:[#allocation2 + $0x358] sm:$0xff]
      %v2229 = vld [vmem:[#allocation2 + $0x360] sm:$0xff]
      %v2230 = vld [vmem:[#allocation2 + $0x368] sm:$0xff]
      %v2231 = vld [vmem:[#allocation2 + $0x370] sm:$0xff]
      %v2232 = vld [vmem:[#allocation2 + $0x378] sm:$0xff]
      %v2233 = vld [vmem:[#allocation2 + $0x380] sm:$0xff]
      %v2234 = vld [vmem:[#allocation2 + $0x388] sm:$0xff]
      %v2235 = vld [vmem:[#allocation2 + $0x390] sm:$0xff]
      %v2236 = vld [vmem:[#allocation2 + $0x398] sm:$0xff]
      %v2237 = vld [vmem:[#allocation2 + $0x3a0] sm:$0xff]
      %v2238 = vld [vmem:[#allocation2 + $0x3a8] sm:$0xff]
      %v2239 = vld [vmem:[#allocation2 + $0x3b0] sm:$0xff]
      %v2240 = vld [vmem:[#allocation2 + $0x3b8] sm:$0xff]
      %v2241 = vld [vmem:[#allocation2 + $0x3c0] sm:$0xff]
      %v2242 = vld [vmem:[#allocation2 + $0x3c8] sm:$0xff]
      %v2243 = vld [vmem:[#allocation2 + $0x3d0] sm:$0xff]
      %v2244 = vld [vmem:[#allocation2 + $0x3d8] sm:$0xff]
      %v2245 = vld [vmem:[#allocation2 + $0x3e0] sm:$0xff]
      %v2246 = vld [vmem:[#allocation2 + $0x3e8] sm:$0xff]
      %v2247 = vld [vmem:[#allocation2 + $0x3f0] sm:$0xff]
      %v2248 = vld [vmem:[#allocation2 + $0x3f8] sm:$0xff]
      %v2249 = vld [vmem:[#allocation2 + $0x400] sm:$0xff]
      %v2250 = vld [vmem:[#allocation2 + $0x408] sm:$0xff]
      %v2251 = vld [vmem:[#allocation2 + $0x410] sm:$0xff]
      %v2252 = vld [vmem:[#allocation2 + $0x418] sm:$0xff]
      %v2253 = vld [vmem:[#allocation2 + $0x420] sm:$0xff]
      %v2254 = vld [vmem:[#allocation2 + $0x428] sm:$0xff]
      %v2255 = vld [vmem:[#allocation2 + $0x430] sm:$0xff]
      %v2256 = vld [vmem:[#allocation2 + $0x438] sm:$0xff]
      %v2257 = vld [vmem:[#allocation2 + $0x440] sm:$0xff]
      %v2258 = vld [vmem:[#allocation2 + $0x448] sm:$0xff]
      %v2259 = vld [vmem:[#allocation2 + $0x450] sm:$0xff]
      %v2260 = vld [vmem:[#allocation2 + $0x458] sm:$0xff]
      %v2261 = vld [vmem:[#allocation2 + $0x460] sm:$0xff]
      %v2262 = vld [vmem:[#allocation2 + $0x468] sm:$0xff]
      %v2263 = vld [vmem:[#allocation2 + $0x470] sm:$0xff]
      %v2264 = vld [vmem:[#allocation2 + $0x478] sm:$0xff]
      %v2265 = vld [vmem:[#allocation2 + $0x480] sm:$0xff]
      %v2266 = vld [vmem:[#allocation2 + $0x488] sm:$0xff]
      %v2267 = vld [vmem:[#allocation2 + $0x490] sm:$0xff]
      %v2268 = vld [vmem:[#allocation2 + $0x498] sm:$0xff]
      %v2269 = vld [vmem:[#allocation2 + $0x4a0] sm:$0xff]
      %v2270 = vld [vmem:[#allocation2 + $0x4a8] sm:$0xff]
      %v2271 = vld [vmem:[#allocation2 + $0x4b0] sm:$0xff]
      %v2272 = vld [vmem:[#allocation2 + $0x4b8] sm:$0xff]
      %v2273 = vld [vmem:[#allocation2 + $0x4c0] sm:$0xff]
      %v2274 = vld [vmem:[#allocation2 + $0x4c8] sm:$0xff]
      %v2275 = vld [vmem:[#allocation2 + $0x4d0] sm:$0xff]
      %v2276 = vld [vmem:[#allocation2 + $0x4d8] sm:$0xff]
      %v2277 = vld [vmem:[#allocation2 + $0x4e0] sm:$0xff]
      %v2278 = vld [vmem:[#allocation2 + $0x4e8] sm:$0xff]
      %v2279 = vld [vmem:[#allocation2 + $0x4f0] sm:$0xff]
      %v2280 = vld [vmem:[#allocation2 + $0x4f8] sm:$0xff]
      %v2281 = vld [vmem:[#allocation2 + $0x500] sm:$0xff]
      %v2282 = vld [vmem:[#allocation2 + $0x508] sm:$0xff]
      %v2283 = vld [vmem:[#allocation2 + $0x510] sm:$0xff]
      %v2284 = vld [vmem:[#allocation2 + $0x518] sm:$0xff]
      %v2285 = vld [vmem:[#allocation2 + $0x520] sm:$0xff]
      %v2286 = vld [vmem:[#allocation2 + $0x528] sm:$0xff]
      %v2287 = vld [vmem:[#allocation2 + $0x530] sm:$0xff]
      %v2288 = vld [vmem:[#allocation2 + $0x538] sm:$0xff]
      %v2289 = vld [vmem:[#allocation2 + $0x540] sm:$0xff]
      %v2290 = vld [vmem:[#allocation2 + $0x548] sm:$0xff]
      %v2291 = vld [vmem:[#allocation2 + $0x550] sm:$0xff]
      %v2292 = vld [vmem:[#allocation2 + $0x558] sm:$0xff]
      %v2293 = vld [vmem:[#allocation2 + $0x560] sm:$0xff]
      %v2294 = vld [vmem:[#allocation2 + $0x568] sm:$0xff]
      %v2295 = vld [vmem:[#allocation2 + $0x570] sm:$0xff]
      %v2296 = vld [vmem:[#allocation2 + $0x578] sm:$0xff]
      %v2297 = vld [vmem:[#allocation2 + $0x580] sm:$0xff]
      %v2298 = vld [vmem:[#allocation2 + $0x588] sm:$0xff]
      %v2299 = vld [vmem:[#allocation2 + $0x590] sm:$0xff]
      %v2300 = vld [vmem:[#allocation2 + $0x598] sm:$0xff]
      %v2301 = vld [vmem:[#allocation2 + $0x5a0] sm:$0xff]
      %v2302 = vld [vmem:[#allocation2 + $0x5a8] sm:$0xff]
      %v2303 = vld [vmem:[#allocation2 + $0x5b0] sm:$0xff]
      %v2304 = vld [vmem:[#allocation2 + $0x5b8] sm:$0xff]
      %v2305 = vld [vmem:[#allocation2 + $0x5c0] sm:$0xff]
      %v2306 = vld [vmem:[#allocation2 + $0x5c8] sm:$0xff]
      %v2307 = vld [vmem:[#allocation2 + $0x5d0] sm:$0xff]
      %v2308 = vld [vmem:[#allocation2 + $0x5d8] sm:$0xff]
      %v2309 = vld [vmem:[#allocation2 + $0x5e0] sm:$0xff]
      %v2310 = vld [vmem:[#allocation2 + $0x5e8] sm:$0xff]
      %v2311 = vld [vmem:[#allocation2 + $0x5f0] sm:$0xff]
      %v2312 = vld [vmem:[#allocation2 + $0x5f8] sm:$0xff]
      %v2313 = vld [vmem:[#allocation2 + $0x600] sm:$0xff]
      %v2314 = vld [vmem:[#allocation2 + $0x608] sm:$0xff]
      %v2315 = vld [vmem:[#allocation2 + $0x610] sm:$0xff]
      %v2316 = vld [vmem:[#allocation2 + $0x618] sm:$0xff]
      %v2317 = vld [vmem:[#allocation2 + $0x620] sm:$0xff]
      %v2318 = vld [vmem:[#allocation2 + $0x628] sm:$0xff]
      %v2319 = vld [vmem:[#allocation2 + $0x630] sm:$0xff]
      %v2320 = vld [vmem:[#allocation2 + $0x638] sm:$0xff]
      %v2321 = vld [vmem:[#allocation2 + $0x640] sm:$0xff]
      %v2322 = vld [vmem:[#allocation2 + $0x648] sm:$0xff]
      %v2323 = vld [vmem:[#allocation2 + $0x650] sm:$0xff]
      %v2324 = vld [vmem:[#allocation2 + $0x658] sm:$0xff]
      %v2325 = vld [vmem:[#allocation2 + $0x660] sm:$0xff]
      %v2326 = vld [vmem:[#allocation2 + $0x668] sm:$0xff]
      %v2327 = vld [vmem:[#allocation2 + $0x670] sm:$0xff]
      %v2328 = vld [vmem:[#allocation2 + $0x678] sm:$0xff]
      %v2329 = vld [vmem:[#allocation2 + $0x680] sm:$0xff]
      %v2330 = vld [vmem:[#allocation2 + $0x688] sm:$0xff]
      %v2331 = vld [vmem:[#allocation2 + $0x690] sm:$0xff]
      %v2332 = vld [vmem:[#allocation2 + $0x698] sm:$0xff]
      %v2333 = vld [vmem:[#allocation2 + $0x6a0] sm:$0xff]
      %v2334 = vld [vmem:[#allocation2 + $0x6a8] sm:$0xff]
      %v2335 = vld [vmem:[#allocation2 + $0x6b0] sm:$0xff]
      %v2336 = vld [vmem:[#allocation2 + $0x6b8] sm:$0xff]
      %v2337 = vld [vmem:[#allocation2 + $0x6c0] sm:$0xff]
      %v2338 = vld [vmem:[#allocation2 + $0x6c8] sm:$0xff]
      %v2339 = vld [vmem:[#allocation2 + $0x6d0] sm:$0xff]
      %v2340 = vld [vmem:[#allocation2 + $0x6d8] sm:$0xff]
      %v2341 = vld [vmem:[#allocation2 + $0x6e0] sm:$0xff]
      %v2342 = vld [vmem:[#allocation2 + $0x6e8] sm:$0xff]
      %v2343 = vld [vmem:[#allocation2 + $0x6f0] sm:$0xff]
      %v2344 = vld [vmem:[#allocation2 + $0x6f8] sm:$0xff]
      %v2345 = vld [vmem:[#allocation2 + $0x700] sm:$0xff]
      %v2346 = vld [vmem:[#allocation2 + $0x708] sm:$0xff]
      %v2347 = vld [vmem:[#allocation2 + $0x710] sm:$0xff]
      %v2348 = vld [vmem:[#allocation2 + $0x718] sm:$0xff]
      %v2349 = vld [vmem:[#allocation2 + $0x720] sm:$0xff]
      %v2350 = vld [vmem:[#allocation2 + $0x728] sm:$0xff]
      %v2351 = vld [vmem:[#allocation2 + $0x730] sm:$0xff]
      %v2352 = vld [vmem:[#allocation2 + $0x738] sm:$0xff]
      %v2353 = vld [vmem:[#allocation2 + $0x740] sm:$0xff]
      %v2354 = vld [vmem:[#allocation2 + $0x748] sm:$0xff]
      %v2355 = vld [vmem:[#allocation2 + $0x750] sm:$0xff]
      %v2356 = vld [vmem:[#allocation2 + $0x758] sm:$0xff]
      %v2357 = vld [vmem:[#allocation2 + $0x760] sm:$0xff]
      %v2358 = vld [vmem:[#allocation2 + $0x768] sm:$0xff]
      %v2359 = vld [vmem:[#allocation2 + $0x770] sm:$0xff]
      %v2360 = vld [vmem:[#allocation2 + $0x778] sm:$0xff]
      %v2361 = vld [vmem:[#allocation2 + $0x780] sm:$0xff]
      %v2362 = vld [vmem:[#allocation2 + $0x788] sm:$0xff]
      %v2363 = vld [vmem:[#allocation2 + $0x790] sm:$0xff]
      %v2364 = vld [vmem:[#allocation2 + $0x798] sm:$0xff]
      %v2365 = vld [vmem:[#allocation2 + $0x7a0] sm:$0xff]
      %v2366 = vld [vmem:[#allocation2 + $0x7a8] sm:$0xff]
      %v2367 = vld [vmem:[#allocation2 + $0x7b0] sm:$0xff]
      %v2368 = vld [vmem:[#allocation2 + $0x7b8] sm:$0xff]
      %v2369 = vld [vmem:[#allocation2 + $0x7c0] sm:$0xff]
      %v2370 = vld [vmem:[#allocation2 + $0x7c8] sm:$0xff]
      %v2371 = vld [vmem:[#allocation2 + $0x7d0] sm:$0xff]
      %v2372 = vld [vmem:[#allocation2 + $0x7d8] sm:$0xff]
      %v2373 = vld [vmem:[#allocation2 + $0x7e0] sm:$0xff]
      %v2374 = vld [vmem:[#allocation2 + $0x7e8] sm:$0xff]
      %v2375 = vld [vmem:[#allocation2 + $0x7f0] sm:$0xff]
      %v2376 = vld [vmem:[#allocation2 + $0x7f8] sm:$0xff]
      %v2377 = vadd.f32 %v2121, %v2122
      %v2378 = vadd.f32 %v2377, %v2123
      %v2379 = vadd.f32 %v2378, %v2124
      %v2380 = vadd.f32 %v2379, %v2125
      %v2381 = vadd.f32 %v2380, %v2126
      %v2382 = vadd.f32 %v2381, %v2127
      %v2383 = vadd.f32 %v2382, %v2128
      %v2384 = vadd.f32 %v2383, %v2129
      %v2385 = vadd.f32 %v2384, %v2130
      %v2386 = vadd.f32 %v2385, %v2131
      %v2387 = vadd.f32 %v2386, %v2132
      %v2388 = vadd.f32 %v2387, %v2133
      %v2389 = vadd.f32 %v2388, %v2134
      %v2390 = vadd.f32 %v2389, %v2135
      %v2391 = vadd.f32 %v2390, %v2136
      %v2392 = vadd.f32 %v2391, %v2137
      %v2393 = vadd.f32 %v2392, %v2138
      %v2394 = vadd.f32 %v2393, %v2139
      %v2395 = vadd.f32 %v2394, %v2140
      %v2396 = vadd.f32 %v2395, %v2141
      %v2397 = vadd.f32 %v2396, %v2142
      %v2398 = vadd.f32 %v2397, %v2143
      %v2399 = vadd.f32 %v2398, %v2144
      %v2400 = vadd.f32 %v2399, %v2145
      %v2401 = vadd.f32 %v2400, %v2146
      %v2402 = vadd.f32 %v2401, %v2147
      %v2403 = vadd.f32 %v2402, %v2148
      %v2404 = vadd.f32 %v2403, %v2149
      %v2405 = vadd.f32 %v2404, %v2150
      %v2406 = vadd.f32 %v2405, %v2151
      %v2407 = vadd.f32 %v2406, %v2152
      %v2408 = vadd.f32 %v2407, %v2153
      %v2409 = vadd.f32 %v2408, %v2154
      %v2410 = vadd.f32 %v2409, %v2155
      %v2411 = vadd.f32 %v2410, %v2156
      %v2412 = vadd.f32 %v2411, %v2157
      %v2413 = vadd.f32 %v2412, %v2158
      %v2414 = vadd.f32 %v2413, %v2159
      %v2415 = vadd.f32 %v2414, %v2160
      %v2416 = vadd.f32 %v2415, %v2161
      %v2417 = vadd.f32 %v2416, %v2162
      %v2418 = vadd.f32 %v2417, %v2163
      %v2419 = vadd.f32 %v2418, %v2164
      %v2420 = vadd.f32 %v2419, %v2165
      %v2421 = vadd.f32 %v2420, %v2166
      %v2422 = vadd.f32 %v2421, %v2167
      %v2423 = vadd.f32 %v2422, %v2168
      %v2424 = vadd.f32 %v2423, %v2169
      %v2425 = vadd.f32 %v2424, %v2170
      %v2426 = vadd.f32 %v2425, %v2171
      %v2427 = vadd.f32 %v2426, %v2172
      %v2428 = vadd.f32 %v2427, %v2173
      %v2429 = vadd.f32 %v2428, %v2174
      %v2430 = vadd.f32 %v2429, %v2175
      %v2431 = vadd.f32 %v2430, %v2176
      %v2432 = vadd.f32 %v2431, %v2177
      %v2433 = vadd.f32 %v2432, %v2178
      %v2434 = vadd.f32 %v2433, %v2179
      %v2435 = vadd.f32 %v2434, %v2180
      %v2436 = vadd.f32 %v2435, %v2181
      %v2437 = vadd.f32 %v2436, %v2182
      %v2438 = vadd.f32 %v2437, %v2183
      %v2439 = vadd.f32 %v2438, %v2184
      %v2440 = vadd.f32 %v2439, %v2185
      %v2441 = vadd.f32 %v2440, %v2186
      %v2442 = vadd.f32 %v2441, %v2187
      %v2443 = vadd.f32 %v2442, %v2188
      %v2444 = vadd.f32 %v2443, %v2189
      %v2445 = vadd.f32 %v2444, %v2190
      %v2446 = vadd.f32 %v2445, %v2191
      %v2447 = vadd.f32 %v2446, %v2192
      %v2448 = vadd.f32 %v2447, %v2193
      %v2449 = vadd.f32 %v2448, %v2194
      %v2450 = vadd.f32 %v2449, %v2195
      %v2451 = vadd.f32 %v2450, %v2196
      %v2452 = vadd.f32 %v2451, %v2197
      %v2453 = vadd.f32 %v2452, %v2198
      %v2454 = vadd.f32 %v2453, %v2199
      %v2455 = vadd.f32 %v2454, %v2200
      %v2456 = vadd.f32 %v2455, %v2201
      %v2457 = vadd.f32 %v2456, %v2202
      %v2458 = vadd.f32 %v2457, %v2203
      %v2459 = vadd.f32 %v2458, %v2204
      %v2460 = vadd.f32 %v2459, %v2205
      %v2461 = vadd.f32 %v2460, %v2206
      %v2462 = vadd.f32 %v2461, %v2207
      %v2463 = vadd.f32 %v2462, %v2208
      %v2464 = vadd.f32 %v2463, %v2209
      %v2465 = vadd.f32 %v2464, %v2210
      %v2466 = vadd.f32 %v2465, %v2211
      %v2467 = vadd.f32 %v2466, %v2212
      %v2468 = vadd.f32 %v2467, %v2213
      %v2469 = vadd.f32 %v2468, %v2214
      %v2470 = vadd.f32 %v2469, %v2215
      %v2471 = vadd.f32 %v2470, %v2216
      %v2472 = vadd.f32 %v2471, %v2217
      %v2473 = vadd.f32 %v2472, %v2218
      %v2474 = vadd.f32 %v2473, %v2219
      %v2475 = vadd.f32 %v2474, %v2220
      %v2476 = vadd.f32 %v2475, %v2221
      %v2477 = vadd.f32 %v2476, %v2222
      %v2478 = vadd.f32 %v2477, %v2223
      %v2479 = vadd.f32 %v2478, %v2224
      %v2480 = vadd.f32 %v2479, %v2225
      %v2481 = vadd.f32 %v2480, %v2226
      %v2482 = vadd.f32 %v2481, %v2227
      %v2483 = vadd.f32 %v2482, %v2228
      %v2484 = vadd.f32 %v2483, %v2229
      %v2485 = vadd.f32 %v2484, %v2230
      %v2486 = vadd.f32 %v2485, %v2231
      %v2487 = vadd.f32 %v2486, %v2232
      %v2488 = vadd.f32 %v2487, %v2233
      %v2489 = vadd.f32 %v2488, %v2234
      %v2490 = vadd.f32 %v2489, %v2235
      %v2491 = vadd.f32 %v2490, %v2236
      %v2492 = vadd.f32 %v2491, %v2237
      %v2493 = vadd.f32 %v2492, %v2238
      %v2494 = vadd.f32 %v2493, %v2239
      %v2495 = vadd.f32 %v2494, %v2240
      %v2496 = vadd.f32 %v2495, %v2241
      %v2497 = vadd.f32 %v2496, %v2242
      %v2498 = vadd.f32 %v2497, %v2243
      %v2499 = vadd.f32 %v2498, %v2244
      %v2500 = vadd.f32 %v2499, %v2245
      %v2501 = vadd.f32 %v2500, %v2246
      %v2502 = vadd.f32 %v2501, %v2247
      %v2503 = vadd.f32 %v2502, %v2248
      %v2504 = vadd.f32 %v2503, %v2249
      %v2505 = vadd.f32 %v2504, %v2250
      %v2506 = vadd.f32 %v2505, %v2251
      %v2507 = vadd.f32 %v2506, %v2252
      %v2508 = vadd.f32 %v2507, %v2253
      %v2509 = vadd.f32 %v2508, %v2254
      %v2510 = vadd.f32 %v2509, %v2255
      %v2511 = vadd.f32 %v2510, %v2256
      %v2512 = vadd.f32 %v2511, %v2257
      %v2513 = vadd.f32 %v2512, %v2258
      %v2514 = vadd.f32 %v2513, %v2259
      %v2515 = vadd.f32 %v2514, %v2260
      %v2516 = vadd.f32 %v2515, %v2261
      %v2517 = vadd.f32 %v2516, %v2262
      %v2518 = vadd.f32 %v2517, %v2263
      %v2519 = vadd.f32 %v2518, %v2264
      %v2520 = vadd.f32 %v2519, %v2265
      %v2521 = vadd.f32 %v2520, %v2266
      %v2522 = vadd.f32 %v2521, %v2267
      %v2523 = vadd.f32 %v2522, %v2268
      %v2524 = vadd.f32 %v2523, %v2269
      %v2525 = vadd.f32 %v2524, %v2270
      %v2526 = vadd.f32 %v2525, %v2271
      %v2527 = vadd.f32 %v2526, %v2272
      %v2528 = vadd.f32 %v2527, %v2273
      %v2529 = vadd.f32 %v2528, %v2274
      %v2530 = vadd.f32 %v2529, %v2275
      %v2531 = vadd.f32 %v2530, %v2276
      %v2532 = vadd.f32 %v2531, %v2277
      %v2533 = vadd.f32 %v2532, %v2278
      %v2534 = vadd.f32 %v2533, %v2279
      %v2535 = vadd.f32 %v2534, %v2280
      %v2536 = vadd.f32 %v2535, %v2281
      %v2537 = vadd.f32 %v2536, %v2282
      %v2538 = vadd.f32 %v2537, %v2283
      %v2539 = vadd.f32 %v2538, %v2284
      %v2540 = vadd.f32 %v2539, %v2285
      %v2541 = vadd.f32 %v2540, %v2286
      %v2542 = vadd.f32 %v2541, %v2287
      %v2543 = vadd.f32 %v2542, %v2288
      %v2544 = vadd.f32 %v2543, %v2289
      %v2545 = vadd.f32 %v2544, %v2290
      %v2546 = vadd.f32 %v2545, %v2291
      %v2547 = vadd.f32 %v2546, %v2292
      %v2548 = vadd.f32 %v2547, %v2293
      %v2549 = vadd.f32 %v2548, %v2294
      %v2550 = vadd.f32 %v2549, %v2295
      %v2551 = vadd.f32 %v2550, %v2296
      %v2552 = vadd.f32 %v2551, %v2297
      %v2553 = vadd.f32 %v2552, %v2298
      %v2554 = vadd.f32 %v2553, %v2299
      %v2555 = vadd.f32 %v2554, %v2300
      %v2556 = vadd.f32 %v2555, %v2301
      %v2557 = vadd.f32 %v2556, %v2302
      %v2558 = vadd.f32 %v2557, %v2303
      %v2559 = vadd.f32 %v2558, %v2304
      %v2560 = vadd.f32 %v2559, %v2305
      %v2561 = vadd.f32 %v2560, %v2306
      %v2562 = vadd.f32 %v2561, %v2307
      %v2563 = vadd.f32 %v2562, %v2308
      %v2564 = vadd.f32 %v2563, %v2309
      %v2565 = vadd.f32 %v2564, %v2310
      %v2566 = vadd.f32 %v2565, %v2311
      %v2567 = vadd.f32 %v2566, %v2312
      %v2568 = vadd.f32 %v2567, %v2313
      %v2569 = vadd.f32 %v2568, %v2314
      %v2570 = vadd.f32 %v2569, %v2315
      %v2571 = vadd.f32 %v2570, %v2316
      %v2572 = vadd.f32 %v2571, %v2317
      %v2573 = vadd.f32 %v2572, %v2318
      %v2574 = vadd.f32 %v2573, %v2319
      %v2575 = vadd.f32 %v2574, %v2320
      %v2576 = vadd.f32 %v2575, %v2321
      %v2577 = vadd.f32 %v2576, %v2322
      %v2578 = vadd.f32 %v2577, %v2323
      %v2579 = vadd.f32 %v2578, %v2324
      %v2580 = vadd.f32 %v2579, %v2325
      %v2581 = vadd.f32 %v2580, %v2326
      %v2582 = vadd.f32 %v2581, %v2327
      %v2583 = vadd.f32 %v2582, %v2328
      %v2584 = vadd.f32 %v2583, %v2329
      %v2585 = vadd.f32 %v2584, %v2330
      %v2586 = vadd.f32 %v2585, %v2331
      %v2587 = vadd.f32 %v2586, %v2332
      %v2588 = vadd.f32 %v2587, %v2333
      %v2589 = vadd.f32 %v2588, %v2334
      %v2590 = vadd.f32 %v2589, %v2335
      %v2591 = vadd.f32 %v2590, %v2336
      %v2592 = vadd.f32 %v2591, %v2337
      %v2593 = vadd.f32 %v2592, %v2338
      %v2594 = vadd.f32 %v2593, %v2339
      %v2595 = vadd.f32 %v2594, %v2340
      %v2596 = vadd.f32 %v2595, %v2341
      %v2597 = vadd.f32 %v2596, %v2342
      %v2598 = vadd.f32 %v2597, %v2343
      %v2599 = vadd.f32 %v2598, %v2344
      %v2600 = vadd.f32 %v2599, %v2345
      %v2601 = vadd.f32 %v2600, %v2346
      %v2602 = vadd.f32 %v2601, %v2347
      %v2603 = vadd.f32 %v2602, %v2348
      %v2604 = vadd.f32 %v2603, %v2349
      %v2605 = vadd.f32 %v2604, %v2350
      %v2606 = vadd.f32 %v2605, %v2351
      %v2607 = vadd.f32 %v2606, %v2352
      %v2608 = vadd.f32 %v2607, %v2353
      %v2609 = vadd.f32 %v2608, %v2354
      %v2610 = vadd.f32 %v2609, %v2355
      %v2611 = vadd.f32 %v2610, %v2356
      %v2612 = vadd.f32 %v2611, %v2357
      %v2613 = vadd.f32 %v2612, %v2358
      %v2614 = vadd.f32 %v2613, %v2359
      %v2615 = vadd.f32 %v2614, %v2360
      %v2616 = vadd.f32 %v2615, %v2361
      %v2617 = vadd.f32 %v2616, %v2362
      %v2618 = vadd.f32 %v2617, %v2363
      %v2619 = vadd.f32 %v2618, %v2364
      %v2620 = vadd.f32 %v2619, %v2365
      %v2621 = vadd.f32 %v2620, %v2366
      %v2622 = vadd.f32 %v2621, %v2367
      %v2623 = vadd.f32 %v2622, %v2368
      %v2624 = vadd.f32 %v2623, %v2369
      %v2625 = vadd.f32 %v2624, %v2370
      %v2626 = vadd.f32 %v2625, %v2371
      %v2627 = vadd.f32 %v2626, %v2372
      %v2628 = vadd.f32 %v2627, %v2373
      %v2629 = vadd.f32 %v2628, %v2374
      %v2630 = vadd.f32 %v2629, %v2375
      %v2631 = vadd.f32 %v2630, %v2376
      %2632 = vadd.xlane.f32.xlu0 %v2631
      %v2633 = vpop.xlane.xlu0 %2632
      %v2634 = vrot.slane %v2633, 4
      %v2635 = vadd.f32 %v2633, %v2634
      %v2636 = vrot.slane %v2635, 2
      %v2637 = vadd.f32 %v2635, %v2636
      %v2638 = vrot.slane %v2637, 1
      %v2639 = vadd.f32 %v2637, %v2638
      %s2640 = vtos %v2639
      %s2641 = scalar_lea.smem [#allocation8], 0
      %2642 = sst [smem:[%s2641]] %s2640
    $region25: #{tpu_custom_call.1} parent=1 // pred_fallthru
      _
    // Predicated region
    $region26: #{tpu_custom_call.1} parent=1 // pred_check
      _
    $region27: #{tpu_custom_call.1} parent=1 // pred_check_branch
      %2644 = sbr.rel (0) target = $region29
    $region28: #{tpu_custom_call.1} parent=1 // pred_region
      %2646 = vsyncadd [#allocation5], 0
      %s2648 = sshll.u32 %s2, 4
      %s2649 = int_to_ptr.hbm [resolvable:$true] %s2648
      %2651 = dma.smem_to_hbm [#allocation8], 16, %s2649, [#allocation5]
    $region29: #{tpu_custom_call.1} parent=1 // pred_fallthru
      _
    // Predicated region
    $region30: #{tpu_custom_call.1} parent=1 // pred_check
      _
    $region31: #{tpu_custom_call.1} parent=1 // pred_check_branch
      %2653 = sbr.rel (0) target = $region33
    $region32: #{tpu_custom_call.1} parent=1 // pred_region
      %2655 = dma.done [#allocation5], 16
    $region33: #{tpu_custom_call.1} parent=1 // pred_fallthru
      _
    %2656 = sfence
    %2657 = vsyncpa [#allocation4], 1
    %2658 = vsyncpa [#allocation7], 1
    %2659 = vsyncpa [#allocation5], 1

</llo_original>
